<compile_context>
chip_gen: v5e
topology: v5e:2x2
jax: 0.10.0
libtpu: 0.0.40
codegen_flags: <defaults>
</compile_context>

<pallas_src>
import jax
import jax.numpy as jnp
from jax import lax
from jax.experimental import pallas as pl
from jax.experimental.pallas import tpu as pltpu

N_EMBD = 128          # fixed by the module
BLOCK_SIZE = 64       # max sequence length (tril buffer size)
N_HEAD = 4
HEAD_SIZE = N_EMBD // N_HEAD
LN_EPS = 1e-5
NEG_BIG = -1e30       # large negative bias instead of -inf (robust masking)


def _layernorm(x, w, b):
    mu = jnp.mean(x, axis=-1, keepdims=True)
    var = jnp.mean((x - mu) ** 2, axis=-1, keepdims=True)
    return (x - mu) * lax.rsqrt(var + LN_EPS) * w + b


def block_kernel(x_ref,
                 ln1_w_ref, ln1_b_ref,
                 wqkv_ref, wp_ref, bp_ref,
                 ln2_w_ref, ln2_b_ref,
                 w1_ref, b1_ref, w2_ref, b2_ref,
                 o_ref):
    bb, T, C = x_ref.shape              # static block shape
    H, hs = N_HEAD, HEAD_SIZE
    M = bb * T
    x = x_ref[...].reshape(M, C)        # (M, C) f32 rows for dense matmuls

    # ---------------- self-attention branch ----------------
    xn = _layernorm(x, ln1_w_ref[...], ln1_b_ref[...])                    # f32
    # C**-0.5 softmax scale is pre-folded into the Q columns of wqkv (pack time).
    qkv = jnp.dot(xn.astype(jnp.bfloat16), wqkv_ref[...],
                  preferred_element_type=jnp.float32)                     # (M, 3C) f32

    q = qkv[:, 0:C].astype(jnp.bfloat16).reshape(bb, T, C)
    k = qkv[:, C:2 * C].astype(jnp.bfloat16).reshape(bb, T, C)
    v = qkv[:, 2 * C:3 * C].astype(jnp.bfloat16).reshape(bb, T, C)

    # Head-major batched layout (N = H*bb, T, hs): single pair of batched einsums
    # instead of per-(batch, head) unrolled matmuls + concatenates.
    qh = jnp.concatenate([q[:, :, h * hs:(h + 1) * hs] for h in range(H)], axis=0)
    kh = jnp.concatenate([k[:, :, h * hs:(h + 1) * hs] for h in range(H)], axis=0)
    vh = jnp.concatenate([v[:, :, h * hs:(h + 1) * hs] for h in range(H)], axis=0)

    # Causal mask built once, broadcast over all (head, batch) pairs.
    row = lax.broadcasted_iota(jnp.int32, (T, T), 0)
    col = lax.broadcasted_iota(jnp.int32, (T, T), 1)
    causal = (col <= row)[None, :, :]                                     # (1, T, T)

    wei = jnp.einsum('nqd,nkd->nqk', qh, kh,
                     preferred_element_type=jnp.float32)                  # (N, T, T) f32
    wei = jnp.where(causal, wei, NEG_BIG)
    wei = wei - jnp.max(wei, axis=-1, keepdims=True)
    p = jnp.exp(wei)
    p = p * pl.reciprocal(jnp.sum(p, axis=-1, keepdims=True), approx=True)
    # dropout(wei) in the reference is discarded / eval-mode -> identity
    oh = jnp.einsum('nqk,nkd->nqd', p.astype(jnp.bfloat16), vh,
                    preferred_element_type=jnp.float32)                   # (N, T, hs)

    # Reassemble heads along lanes -> lane-dense (M, C) proj input.
    att = jnp.concatenate([oh[h * bb:(h + 1) * bb] for h in range(H)], axis=-1)
    att = att.reshape(M, C)

    sa = jnp.dot(att.astype(jnp.bfloat16), wp_ref[...],
                 preferred_element_type=jnp.float32) + bp_ref[...]
    x = x + sa                                   # residual 1

    # ---------------- feed-forward branch ----------------
    xn2 = _layernorm(x, ln2_w_ref[...], ln2_b_ref[...])
    h1 = jnp.dot(xn2.astype(jnp.bfloat16), w1_ref[...],
                 preferred_element_type=jnp.float32) + b1_ref[...]
    h1 = jnp.maximum(h1, 0.0)                    # ReLU in f32
    ff = jnp.dot(h1.astype(jnp.bfloat16), w2_ref[...],
                 preferred_element_type=jnp.float32) + b2_ref[...]
    x = x + ff                                   # residual 2

    o_ref[...] = x.reshape(bb, T, C)


def _const_spec(shape):
    nd = len(shape)
    return pl.BlockSpec(shape, lambda i, _nd=nd: (0,) * _nd)


def _pick_batch_tile(B, T):
    """Generation-aware batch tiling.

    - Single grid step with the largest M = batch_tile*T that fits the row cap:
      best on 1-TC chips (v5e/v6e) and for small batches (one well-fed core
      beats two starved ones).
    - Two 'parallel' steps only when each step still has >= 256 rows (v7x megacore).
    - MAX_ROWS caps per-step f32 intermediates (~M * 6-10 KB) well inside the
      scoped VMEM budget (v7x: 32 MiB scoped default of 64 MiB/TC).
    """
    MAX_ROWS = 1024
    divisors = [d for d in range(1, B + 1) if B % d == 0]
    fitting = [d for d in divisors if d * T <= MAX_ROWS] or [divisors[0]]
    largest = fitting[-1]
    half = B // 2
    if B % 2 == 0 and half in fitting and half * T >= 256:
        return half
    return largest


def block_forward(x, kparams, batch_tile=None):
    B, T, C = x.shape
    if batch_tile is None:
        batch_tile = _pick_batch_tile(B, T)
    assert B % batch_tile == 0, "batch_tile must divide B"
    steps = B // batch_tile

    in_specs = [pl.BlockSpec((batch_tile, T, C), lambda i: (i, 0, 0))]
    # Constant-index weight/bias/LN blocks: fetched once, resident across steps.
    in_specs += [_const_spec(p.shape) for p in kparams]

    return pl.pallas_call(
        block_kernel,
        out_shape=jax.ShapeDtypeStruct((B, T, C), jnp.float32),
        grid_spec=pltpu.PrefetchScalarGridSpec(
            num_scalar_prefetch=0,
            grid=(steps,),
            in_specs=in_specs,
            out_specs=pl.BlockSpec((batch_tile, T, C), lambda i: (i, 0, 0)),
        ),
        compiler_params=pltpu.CompilerParams(
            dimension_semantics=("parallel",)),
    )(x, *kparams)


def init_logical_params(key):
    """f32 'logical' parameters mirroring the PyTorch module structure."""
    ks = jax.random.split(key, 8)
    std = 0.02
    ln1_w = jnp.ones((1, N_EMBD), jnp.float32)
    ln1_b = jnp.zeros((1, N_EMBD), jnp.float32)
    ln2_w = jnp.ones((1, N_EMBD), jnp.float32)
    ln2_b = jnp.zeros((1, N_EMBD), jnp.float32)
    # per-head projection weights, already transposed for x @ W
    wq = jax.random.normal(ks[0], (N_HEAD, N_EMBD, HEAD_SIZE), jnp.float32) * std
    wk = jax.random.normal(ks[1], (N_HEAD, N_EMBD, HEAD_SIZE), jnp.float32) * std
    wv = jax.random.normal(ks[2], (N_HEAD, N_EMBD, HEAD_SIZE), jnp.float32) * std
    wp = jax.random.normal(ks[3], (N_HEAD, HEAD_SIZE, N_EMBD), jnp.float32) * std
    bp = jax.random.normal(ks[4], (1, N_EMBD), jnp.float32) * std
    w1 = jax.random.normal(ks[5], (N_EMBD, 4 * N_EMBD), jnp.float32) * std
    b1 = jnp.zeros((1, 4 * N_EMBD), jnp.float32)
    w2 = jax.random.normal(ks[6], (4 * N_EMBD, N_EMBD), jnp.float32) * std
    b2 = jnp.zeros((1, N_EMBD), jnp.float32)
    return (ln1_w, ln1_b, wq, wk, wv, wp, bp, ln2_w, ln2_b, w1, b1, w2, b2)


def pack_kernel_params(logical):
    """Fuse per-head weights, fold the C**-0.5 softmax scale into the Q columns,
    and pre-cast MXU weights to bf16 (once, outside the kernel)."""
    (ln1_w, ln1_b, wq, wk, wv, wp, bp, ln2_w, ln2_b, w1, b1, w2, b2) = logical
    scale = float(N_EMBD) ** -0.5      # reference scales by n_embd**-0.5 (baby-gpt quirk)
    wq_all = jnp.transpose(wq, (1, 0, 2)).reshape(N_EMBD, N_EMBD) * scale
    wk_all = jnp.transpose(wk, (1, 0, 2)).reshape(N_EMBD, N_EMBD)
    wv_all = jnp.transpose(wv, (1, 0, 2)).reshape(N_EMBD, N_EMBD)
    wqkv = jnp.concatenate([wq_all, wk_all, wv_all], axis=1).astype(jnp.bfloat16)  # (C, 3C)
    wp_full = wp.reshape(N_EMBD, N_EMBD).astype(jnp.bfloat16)                      # (C, C)
    return (ln1_w, ln1_b, wqkv, wp_full, bp, ln2_w, ln2_b,
            w1.astype(jnp.bfloat16), b1, w2.astype(jnp.bfloat16), b2)


def block_reference(x, logical):
    """Pure-JAX f32 reference mirroring the PyTorch forward (eval mode)."""
    (ln1_w, ln1_b, wq, wk, wv, wp, bp, ln2_w, ln2_b, w1, b1, w2, b2) = logical
    B, T, C = x.shape

    def ln(v, w, b):
        mu = v.mean(-1, keepdims=True)
        var = ((v - mu) ** 2).mean(-1, keepdims=True)
        return (v - mu) / jnp.sqrt(var + LN_EPS) * w + b

    xn = ln(x, ln1_w, ln1_b)
    tril = jnp.tril(jnp.ones((T, T)))
    outs = []
    for h in range(N_HEAD):
        q = xn @ wq[h]; k = xn @ wk[h]; v = xn @ wv[h]
        wei = (q @ jnp.swapaxes(k, -1, -2)) * (C ** -0.5)
        wei = jnp.where(tril == 0.0, -jnp.inf, wei)
        wei = jax.nn.softmax(wei, axis=-1)
        outs.append(wei @ v)
    sa = jnp.concatenate(outs, axis=-1)
    sa = sa @ jnp.concatenate([wp[h] for h in range(N_HEAD)], axis=0) + bp
    x = x + sa
    xn2 = ln(x, ln2_w, ln2_b)
    ff = jnp.maximum(xn2 @ w1 + b1, 0.0) @ w2 + b2
    return x + ff


if __name__ == "__main__":
    key = jax.random.PRNGKey(0)
    k_x, k_p = jax.random.split(key)
    B, T = 2, BLOCK_SIZE              # (2, 64, 128) — n_embd fixed at 128 by the module
    x = jax.random.normal(k_x, (B, T, N_EMBD), jnp.float32)
    logical = init_logical_params(k_p)
    kparams = pack_kernel_params(logical)

    out = block_forward(x, kparams)
    out = jax.block_until_ready(out)

    ref = block_reference(x, logical)
    # bf16 MXU inputs vs. f32 reference -> relaxed tolerance
    assert jnp.allclose(out, ref, rtol=2e-2, atol=2e-2), "mismatch vs reference"
    print("KERNEL_OK")
</pallas_src>

<mosaic_0001>
module attributes {stable_mosaic.version = 11 : i64} {
  func.func @block_kernel(%arg0: i32, %arg1: memref<2x64x128xf32, #tpu.memory_space<vmem>>, %arg2: memref<1x128xf32, #tpu.memory_space<vmem>>, %arg3: memref<1x128xf32, #tpu.memory_space<vmem>>, %arg4: memref<128x384xbf16, #tpu.memory_space<vmem>>, %arg5: memref<128x128xbf16, #tpu.memory_space<vmem>>, %arg6: memref<1x128xf32, #tpu.memory_space<vmem>>, %arg7: memref<1x128xf32, #tpu.memory_space<vmem>>, %arg8: memref<1x128xf32, #tpu.memory_space<vmem>>, %arg9: memref<128x512xbf16, #tpu.memory_space<vmem>>, %arg10: memref<1x512xf32, #tpu.memory_space<vmem>>, %arg11: memref<512x128xbf16, #tpu.memory_space<vmem>>, %arg12: memref<1x128xf32, #tpu.memory_space<vmem>>, %arg13: memref<2x64x128xf32, #tpu.memory_space<vmem>>) attributes {dimension_semantics = [#tpu.dimension_semantics<parallel>], iteration_bounds = array<i64: 1>, scalar_prefetch = 0 : i64, scratch_operands = 0 : i64, tpu.core_type = #tpu.core_type<tc>, window_params = [{transform_indices = @transform_0, window_bounds = array<i64: 2, 64, 128>}, {pipeline_mode = #tpu.pipeline_mode<synchronous>, transform_indices = @transform_1, window_bounds = array<i64: 1, 128>}, {pipeline_mode = #tpu.pipeline_mode<synchronous>, transform_indices = @transform_2, window_bounds = array<i64: 1, 128>}, {pipeline_mode = #tpu.pipeline_mode<synchronous>, transform_indices = @transform_3, window_bounds = array<i64: 128, 384>}, {pipeline_mode = #tpu.pipeline_mode<synchronous>, transform_indices = @transform_4, window_bounds = array<i64: 128, 128>}, {pipeline_mode = #tpu.pipeline_mode<synchronous>, transform_indices = @transform_5, window_bounds = array<i64: 1, 128>}, {pipeline_mode = #tpu.pipeline_mode<synchronous>, transform_indices = @transform_6, window_bounds = array<i64: 1, 128>}, {pipeline_mode = #tpu.pipeline_mode<synchronous>, transform_indices = @transform_7, window_bounds = array<i64: 1, 128>}, {pipeline_mode = #tpu.pipeline_mode<synchronous>, transform_indices = @transform_8, window_bounds = array<i64: 128, 512>}, {pipeline_mode = #tpu.pipeline_mode<synchronous>, transform_indices = @transform_9, window_bounds = array<i64: 1, 512>}, {pipeline_mode = #tpu.pipeline_mode<synchronous>, transform_indices = @transform_10, window_bounds = array<i64: 512, 128>}, {pipeline_mode = #tpu.pipeline_mode<synchronous>, transform_indices = @transform_11, window_bounds = array<i64: 1, 128>}, {transform_indices = @transform_12, window_bounds = array<i64: 2, 64, 128>}]} {
    %c0 = arith.constant 0 : index
    %c0_0 = arith.constant 0 : index
    %c0_1 = arith.constant 0 : index
    %0 = vector.load %arg1[%c0, %c0_0, %c0_1] : memref<2x64x128xf32, #tpu.memory_space<vmem>>, vector<2x64x128xf32>
    %1 = vector.shape_cast %0 : vector<2x64x128xf32> to vector<128x128xf32>
    %c0_2 = arith.constant 0 : index
    %c0_3 = arith.constant 0 : index
    %2 = vector.load %arg2[%c0_2, %c0_3] : memref<1x128xf32, #tpu.memory_space<vmem>>, vector<1x128xf32>
    %c0_4 = arith.constant 0 : index
    %c0_5 = arith.constant 0 : index
    %3 = vector.load %arg3[%c0_4, %c0_5] : memref<1x128xf32, #tpu.memory_space<vmem>>, vector<1x128xf32>
    %cst = arith.constant dense<0.000000e+00> : vector<128xf32>
    %4 = vector.multi_reduction <add>, %1, %cst [1] : vector<128x128xf32> to vector<128xf32>
    %5 = vector.shape_cast %4 : vector<128xf32> to vector<128x1xf32>
    %cst_6 = arith.constant 1.280000e+02 : f32
    %6 = vector.broadcast %cst_6 : f32 to vector<128x1xf32>
    %7 = arith.divf %5, %6 : vector<128x1xf32>
    %8 = vector.broadcast %7 : vector<128x1xf32> to vector<128x128xf32>
    %9 = arith.subf %1, %8 : vector<128x128xf32>
    %10 = arith.mulf %9, %9 : vector<128x128xf32>
    %cst_7 = arith.constant dense<0.000000e+00> : vector<128xf32>
    %11 = vector.multi_reduction <add>, %10, %cst_7 [1] : vector<128x128xf32> to vector<128xf32>
    %12 = vector.shape_cast %11 : vector<128xf32> to vector<128x1xf32>
    %cst_8 = arith.constant 1.280000e+02 : f32
    %13 = vector.broadcast %cst_8 : f32 to vector<128x1xf32>
    %14 = arith.divf %12, %13 : vector<128x1xf32>
    %15 = vector.broadcast %7 : vector<128x1xf32> to vector<128x128xf32>
    %16 = arith.subf %1, %15 : vector<128x128xf32>
    %cst_9 = arith.constant 9.99999974E-6 : f32
    %17 = vector.broadcast %cst_9 : f32 to vector<128x1xf32>
    %18 = arith.addf %14, %17 : vector<128x1xf32>
    %19 = math.rsqrt %18 : vector<128x1xf32>
    %20 = vector.broadcast %19 : vector<128x1xf32> to vector<128x128xf32>
    %21 = arith.mulf %16, %20 : vector<128x128xf32>
    %22 = vector.broadcast %2 : vector<1x128xf32> to vector<128x128xf32>
    %23 = arith.mulf %21, %22 : vector<128x128xf32>
    %24 = vector.broadcast %3 : vector<1x128xf32> to vector<128x128xf32>
    %25 = arith.addf %23, %24 : vector<128x128xf32>
    %26 = arith.truncf %25 : vector<128x128xf32> to vector<128x128xbf16>
    %c0_10 = arith.constant 0 : index
    %c0_11 = arith.constant 0 : index
    %27 = vector.load %arg4[%c0_10, %c0_11] : memref<128x384xbf16, #tpu.memory_space<vmem>>, vector<128x384xbf16>
    %cst_12 = arith.constant dense<0.000000e+00> : vector<128x384xf32>
    %28 = tpu.matmul %26, %27, %cst_12 {dimension_numbers = #tpu.dot_dimension_numbers<[1], [0], [0], [1], [0, 0, 1, 1], [], []>} : vector<128x128xbf16>, vector<128x384xbf16>, vector<128x384xf32> -> vector<128x384xf32>
    %29 = vector.extract_strided_slice %28 {offsets = [0, 0], sizes = [128, 128], strides = [1, 1]} : vector<128x384xf32> to vector<128x128xf32>
    %30 = arith.truncf %29 : vector<128x128xf32> to vector<128x128xbf16>
    %31 = vector.shape_cast %30 : vector<128x128xbf16> to vector<2x64x128xbf16>
    %32 = vector.extract_strided_slice %28 {offsets = [0, 128], sizes = [128, 128], strides = [1, 1]} : vector<128x384xf32> to vector<128x128xf32>
    %33 = arith.truncf %32 : vector<128x128xf32> to vector<128x128xbf16>
    %34 = vector.shape_cast %33 : vector<128x128xbf16> to vector<2x64x128xbf16>
    %35 = vector.extract_strided_slice %28 {offsets = [0, 256], sizes = [128, 128], strides = [1, 1]} : vector<128x384xf32> to vector<128x128xf32>
    %36 = arith.truncf %35 : vector<128x128xf32> to vector<128x128xbf16>
    %37 = vector.shape_cast %36 : vector<128x128xbf16> to vector<2x64x128xbf16>
    %38 = vector.extract_strided_slice %31 {offsets = [0, 0, 0], sizes = [2, 64, 32], strides = [1, 1, 1]} : vector<2x64x128xbf16> to vector<2x64x32xbf16>
    %39 = vector.extract_strided_slice %31 {offsets = [0, 0, 32], sizes = [2, 64, 32], strides = [1, 1, 1]} : vector<2x64x128xbf16> to vector<2x64x32xbf16>
    %40 = vector.extract_strided_slice %31 {offsets = [0, 0, 64], sizes = [2, 64, 32], strides = [1, 1, 1]} : vector<2x64x128xbf16> to vector<2x64x32xbf16>
    %41 = vector.extract_strided_slice %31 {offsets = [0, 0, 96], sizes = [2, 64, 32], strides = [1, 1, 1]} : vector<2x64x128xbf16> to vector<2x64x32xbf16>
    %42 = tpu.concatenate %38, %39, %40, %41 in 0 : vector<2x64x32xbf16>, vector<2x64x32xbf16>, vector<2x64x32xbf16>, vector<2x64x32xbf16> -> vector<8x64x32xbf16>
    %43 = vector.extract_strided_slice %34 {offsets = [0, 0, 0], sizes = [2, 64, 32], strides = [1, 1, 1]} : vector<2x64x128xbf16> to vector<2x64x32xbf16>
    %44 = vector.extract_strided_slice %34 {offsets = [0, 0, 32], sizes = [2, 64, 32], strides = [1, 1, 1]} : vector<2x64x128xbf16> to vector<2x64x32xbf16>
    %45 = vector.extract_strided_slice %34 {offsets = [0, 0, 64], sizes = [2, 64, 32], strides = [1, 1, 1]} : vector<2x64x128xbf16> to vector<2x64x32xbf16>
    %46 = vector.extract_strided_slice %34 {offsets = [0, 0, 96], sizes = [2, 64, 32], strides = [1, 1, 1]} : vector<2x64x128xbf16> to vector<2x64x32xbf16>
    %47 = tpu.concatenate %43, %44, %45, %46 in 0 : vector<2x64x32xbf16>, vector<2x64x32xbf16>, vector<2x64x32xbf16>, vector<2x64x32xbf16> -> vector<8x64x32xbf16>
    %48 = vector.extract_strided_slice %37 {offsets = [0, 0, 0], sizes = [2, 64, 32], strides = [1, 1, 1]} : vector<2x64x128xbf16> to vector<2x64x32xbf16>
    %49 = vector.extract_strided_slice %37 {offsets = [0, 0, 32], sizes = [2, 64, 32], strides = [1, 1, 1]} : vector<2x64x128xbf16> to vector<2x64x32xbf16>
    %50 = vector.extract_strided_slice %37 {offsets = [0, 0, 64], sizes = [2, 64, 32], strides = [1, 1, 1]} : vector<2x64x128xbf16> to vector<2x64x32xbf16>
    %51 = vector.extract_strided_slice %37 {offsets = [0, 0, 96], sizes = [2, 64, 32], strides = [1, 1, 1]} : vector<2x64x128xbf16> to vector<2x64x32xbf16>
    %52 = tpu.concatenate %48, %49, %50, %51 in 0 : vector<2x64x32xbf16>, vector<2x64x32xbf16>, vector<2x64x32xbf16>, vector<2x64x32xbf16> -> vector<8x64x32xbf16>
    %53 = tpu.iota {dimensions = array<i32: 0>} : vector<64x64xi32>
    %54 = tpu.iota {dimensions = array<i32: 1>} : vector<64x64xi32>
    %55 = arith.cmpi sle, %54, %53 : vector<64x64xi32>
    %56 = vector.shape_cast %55 : vector<64x64xi1> to vector<1x64x64xi1>
    "tpu.trace_start"() <{level = 10 : i32, message = "nqd,nkd->nqk"}> : () -> ()
    %cst_13 = arith.constant dense<0.000000e+00> : vector<8x64x64xf32>
    %57 = tpu.matmul %42, %47, %cst_13 {dimension_numbers = #tpu.dot_dimension_numbers<[2], [2], [1], [1], [0, 0, 0, 1, 1, 1], [0], [0]>} : vector<8x64x32xbf16>, vector<8x64x32xbf16>, vector<8x64x64xf32> -> vector<8x64x64xf32>
    %cst_14 = arith.constant -1.000000e+30 : f32
    "tpu.trace_stop"() : () -> ()
    %58 = vector.shape_cast %56 : vector<1x64x64xi1> to vector<1x64x64xi1>
    %59 = vector.broadcast %58 : vector<1x64x64xi1> to vector<8x64x64xi1>
    %60 = vector.broadcast %cst_14 : f32 to vector<8x64x64xf32>
    %61 = arith.select %59, %57, %60 : vector<8x64x64xi1>, vector<8x64x64xf32>
    %cst_15 = arith.constant dense<0xFF800000> : vector<8x64xf32>
    %62 = vector.multi_reduction <maximumf>, %61, %cst_15 [2] : vector<8x64x64xf32> to vector<8x64xf32>
    %63 = vector.shape_cast %62 : vector<8x64xf32> to vector<8x64x1xf32>
    %64 = vector.broadcast %63 : vector<8x64x1xf32> to vector<8x64x64xf32>
    %65 = arith.subf %61, %64 : vector<8x64x64xf32>
    %66 = math.exp %65 : vector<8x64x64xf32>
    %cst_16 = arith.constant dense<0.000000e+00> : vector<8x64xf32>
    %67 = vector.multi_reduction <add>, %66, %cst_16 [2] : vector<8x64x64xf32> to vector<8x64xf32>
    %68 = vector.shape_cast %67 : vector<8x64xf32> to vector<8x64x1xf32>
    %69 = tpu.reciprocal %68 {approx = true} : vector<8x64x1xf32> -> vector<8x64x1xf32>
    %70 = vector.broadcast %69 : vector<8x64x1xf32> to vector<8x64x64xf32>
    %71 = arith.mulf %66, %70 : vector<8x64x64xf32>
    %72 = arith.truncf %71 : vector<8x64x64xf32> to vector<8x64x64xbf16>
    "tpu.trace_start"() <{level = 10 : i32, message = "nqk,nkd->nqd"}> : () -> ()
    %cst_17 = arith.constant dense<0.000000e+00> : vector<8x64x32xf32>
    %73 = tpu.matmul %72, %52, %cst_17 {dimension_numbers = #tpu.dot_dimension_numbers<[2], [1], [1], [2], [0, 0, 0, 1, 1, 2], [0], [0]>} : vector<8x64x64xbf16>, vector<8x64x32xbf16>, vector<8x64x32xf32> -> vector<8x64x32xf32>
    "tpu.trace_stop"() : () -> ()
    %74 = vector.extract_strided_slice %73 {offsets = [0, 0, 0], sizes = [2, 64, 32], strides = [1, 1, 1]} : vector<8x64x32xf32> to vector<2x64x32xf32>
    %75 = vector.extract_strided_slice %73 {offsets = [2, 0, 0], sizes = [2, 64, 32], strides = [1, 1, 1]} : vector<8x64x32xf32> to vector<2x64x32xf32>
    %76 = vector.extract_strided_slice %73 {offsets = [4, 0, 0], sizes = [2, 64, 32], strides = [1, 1, 1]} : vector<8x64x32xf32> to vector<2x64x32xf32>
    %77 = vector.extract_strided_slice %73 {offsets = [6, 0, 0], sizes = [2, 64, 32], strides = [1, 1, 1]} : vector<8x64x32xf32> to vector<2x64x32xf32>
    %78 = tpu.concatenate %74, %75, %76, %77 in 2 : vector<2x64x32xf32>, vector<2x64x32xf32>, vector<2x64x32xf32>, vector<2x64x32xf32> -> vector<2x64x128xf32>
    %79 = vector.shape_cast %78 : vector<2x64x128xf32> to vector<128x128xf32>
    %80 = arith.truncf %79 : vector<128x128xf32> to vector<128x128xbf16>
    %c0_18 = arith.constant 0 : index
    %c0_19 = arith.constant 0 : index
    %81 = vector.load %arg5[%c0_18, %c0_19] : memref<128x128xbf16, #tpu.memory_space<vmem>>, vector<128x128xbf16>
    %cst_20 = arith.constant dense<0.000000e+00> : vector<128x128xf32>
    %82 = tpu.matmul %80, %81, %cst_20 {dimension_numbers = #tpu.dot_dimension_numbers<[1], [0], [0], [1], [0, 0, 1, 1], [], []>} : vector<128x128xbf16>, vector<128x128xbf16>, vector<128x128xf32> -> vector<128x128xf32>
    %c0_21 = arith.constant 0 : index
    %c0_22 = arith.constant 0 : index
    %83 = vector.load %arg6[%c0_21, %c0_22] : memref<1x128xf32, #tpu.memory_space<vmem>>, vector<1x128xf32>
    %84 = vector.broadcast %83 : vector<1x128xf32> to vector<128x128xf32>
    %85 = arith.addf %82, %84 : vector<128x128xf32>
    %86 = arith.addf %1, %85 : vector<128x128xf32>
    %c0_23 = arith.constant 0 : index
    %c0_24 = arith.constant 0 : index
    %87 = vector.load %arg7[%c0_23, %c0_24] : memref<1x128xf32, #tpu.memory_space<vmem>>, vector<1x128xf32>
    %c0_25 = arith.constant 0 : index
    %c0_26 = arith.constant 0 : index
    %88 = vector.load %arg8[%c0_25, %c0_26] : memref<1x128xf32, #tpu.memory_space<vmem>>, vector<1x128xf32>
    %cst_27 = arith.constant dense<0.000000e+00> : vector<128xf32>
    %89 = vector.multi_reduction <add>, %86, %cst_27 [1] : vector<128x128xf32> to vector<128xf32>
    %90 = vector.shape_cast %89 : vector<128xf32> to vector<128x1xf32>
    %cst_28 = arith.constant 1.280000e+02 : f32
    %91 = vector.broadcast %cst_28 : f32 to vector<128x1xf32>
    %92 = arith.divf %90, %91 : vector<128x1xf32>
    %93 = vector.broadcast %92 : vector<128x1xf32> to vector<128x128xf32>
    %94 = arith.subf %86, %93 : vector<128x128xf32>
    %95 = arith.mulf %94, %94 : vector<128x128xf32>
    %cst_29 = arith.constant dense<0.000000e+00> : vector<128xf32>
    %96 = vector.multi_reduction <add>, %95, %cst_29 [1] : vector<128x128xf32> to vector<128xf32>
    %97 = vector.shape_cast %96 : vector<128xf32> to vector<128x1xf32>
    %cst_30 = arith.constant 1.280000e+02 : f32
    %98 = vector.broadcast %cst_30 : f32 to vector<128x1xf32>
    %99 = arith.divf %97, %98 : vector<128x1xf32>
    %100 = vector.broadcast %92 : vector<128x1xf32> to vector<128x128xf32>
    %101 = arith.subf %86, %100 : vector<128x128xf32>
    %cst_31 = arith.constant 9.99999974E-6 : f32
    %102 = vector.broadcast %cst_31 : f32 to vector<128x1xf32>
    %103 = arith.addf %99, %102 : vector<128x1xf32>
    %104 = math.rsqrt %103 : vector<128x1xf32>
    %105 = vector.broadcast %104 : vector<128x1xf32> to vector<128x128xf32>
    %106 = arith.mulf %101, %105 : vector<128x128xf32>
    %107 = vector.broadcast %87 : vector<1x128xf32> to vector<128x128xf32>
    %108 = arith.mulf %106, %107 : vector<128x128xf32>
    %109 = vector.broadcast %88 : vector<1x128xf32> to vector<128x128xf32>
    %110 = arith.addf %108, %109 : vector<128x128xf32>
    %111 = arith.truncf %110 : vector<128x128xf32> to vector<128x128xbf16>
    %c0_32 = arith.constant 0 : index
    %c0_33 = arith.constant 0 : index
    %112 = vector.load %arg9[%c0_32, %c0_33] : memref<128x512xbf16, #tpu.memory_space<vmem>>, vector<128x512xbf16>
    %cst_34 = arith.constant dense<0.000000e+00> : vector<128x512xf32>
    %113 = tpu.matmul %111, %112, %cst_34 {dimension_numbers = #tpu.dot_dimension_numbers<[1], [0], [0], [1], [0, 0, 1, 1], [], []>} : vector<128x128xbf16>, vector<128x512xbf16>, vector<128x512xf32> -> vector<128x512xf32>
    %c0_35 = arith.constant 0 : index
    %c0_36 = arith.constant 0 : index
    %114 = vector.load %arg10[%c0_35, %c0_36] : memref<1x512xf32, #tpu.memory_space<vmem>>, vector<1x512xf32>
    %115 = vector.broadcast %114 : vector<1x512xf32> to vector<128x512xf32>
    %116 = arith.addf %113, %115 : vector<128x512xf32>
    %cst_37 = arith.constant 0.000000e+00 : f32
    %117 = vector.broadcast %cst_37 : f32 to vector<128x512xf32>
    %118 = arith.maximumf %116, %117 : vector<128x512xf32>
    %119 = arith.truncf %118 : vector<128x512xf32> to vector<128x512xbf16>
    %c0_38 = arith.constant 0 : index
    %c0_39 = arith.constant 0 : index
    %120 = vector.load %arg11[%c0_38, %c0_39] : memref<512x128xbf16, #tpu.memory_space<vmem>>, vector<512x128xbf16>
    %cst_40 = arith.constant dense<0.000000e+00> : vector<128x128xf32>
    %121 = tpu.matmul %119, %120, %cst_40 {dimension_numbers = #tpu.dot_dimension_numbers<[1], [0], [0], [1], [0, 0, 1, 1], [], []>} : vector<128x512xbf16>, vector<512x128xbf16>, vector<128x128xf32> -> vector<128x128xf32>
    %c0_41 = arith.constant 0 : index
    %c0_42 = arith.constant 0 : index
    %122 = vector.load %arg12[%c0_41, %c0_42] : memref<1x128xf32, #tpu.memory_space<vmem>>, vector<1x128xf32>
    %123 = vector.broadcast %122 : vector<1x128xf32> to vector<128x128xf32>
    %124 = arith.addf %121, %123 : vector<128x128xf32>
    %125 = arith.addf %86, %124 : vector<128x128xf32>
    %126 = vector.shape_cast %125 : vector<128x128xf32> to vector<2x64x128xf32>
    %c0_43 = arith.constant 0 : index
    %c0_44 = arith.constant 0 : index
    %c0_45 = arith.constant 0 : index
    %127 = vector.load %arg13[%c0_43, %c0_44, %c0_45] : memref<2x64x128xf32, #tpu.memory_space<vmem>>, vector<2x64x128xf32>
    tpu.vector_store %arg13[%c0_43, %c0_44, %c0_45], %126 {strides = array<i32>} : memref<2x64x128xf32, #tpu.memory_space<vmem>>, vector<2x64x128xf32>,
    return
  }
  func.func @transform_0(%arg0: i32) -> (i32, i32, i32) {
    %c0_i32 = arith.constant 0 : i32
    %c0_i32_0 = arith.constant 0 : i32
    %c0_i32_1 = arith.constant 0 : i32
    return %arg0, %c0_i32, %c0_i32_0 : i32, i32, i32
  }
  func.func @transform_1(%arg0: i32) -> (i32, i32) {
    %c0_i32 = arith.constant 0 : i32
    %c0_i32_0 = arith.constant 0 : i32
    %c0_i32_1 = arith.constant 0 : i32
    return %c0_i32, %c0_i32_0 : i32, i32
  }
  func.func @transform_2(%arg0: i32) -> (i32, i32) {
    %c0_i32 = arith.constant 0 : i32
    %c0_i32_0 = arith.constant 0 : i32
    %c0_i32_1 = arith.constant 0 : i32
    return %c0_i32, %c0_i32_0 : i32, i32
  }
  func.func @transform_3(%arg0: i32) -> (i32, i32) {
    %c0_i32 = arith.constant 0 : i32
    %c0_i32_0 = arith.constant 0 : i32
    %c0_i32_1 = arith.constant 0 : i32
    return %c0_i32, %c0_i32_0 : i32, i32
  }
  func.func @transform_4(%arg0: i32) -> (i32, i32) {
    %c0_i32 = arith.constant 0 : i32
    %c0_i32_0 = arith.constant 0 : i32
    %c0_i32_1 = arith.constant 0 : i32
    return %c0_i32, %c0_i32_0 : i32, i32
  }
  func.func @transform_5(%arg0: i32) -> (i32, i32) {
    %c0_i32 = arith.constant 0 : i32
    %c0_i32_0 = arith.constant 0 : i32
    %c0_i32_1 = arith.constant 0 : i32
    return %c0_i32, %c0_i32_0 : i32, i32
  }
  func.func @transform_6(%arg0: i32) -> (i32, i32) {
    %c0_i32 = arith.constant 0 : i32
    %c0_i32_0 = arith.constant 0 : i32
    %c0_i32_1 = arith.constant 0 : i32
    return %c0_i32, %c0_i32_0 : i32, i32
  }
  func.func @transform_7(%arg0: i32) -> (i32, i32) {
    %c0_i32 = arith.constant 0 : i32
    %c0_i32_0 = arith.constant 0 : i32
    %c0_i32_1 = arith.constant 0 : i32
    return %c0_i32, %c0_i32_0 : i32, i32
  }
  func.func @transform_8(%arg0: i32) -> (i32, i32) {
    %c0_i32 = arith.constant 0 : i32
    %c0_i32_0 = arith.constant 0 : i32
    %c0_i32_1 = arith.constant 0 : i32
    return %c0_i32, %c0_i32_0 : i32, i32
  }
  func.func @transform_9(%arg0: i32) -> (i32, i32) {
    %c0_i32 = arith.constant 0 : i32
    %c0_i32_0 = arith.constant 0 : i32
    %c0_i32_1 = arith.constant 0 : i32
    return %c0_i32, %c0_i32_0 : i32, i32
  }
  func.func @transform_10(%arg0: i32) -> (i32, i32) {
    %c0_i32 = arith.constant 0 : i32
    %c0_i32_0 = arith.constant 0 : i32
    %c0_i32_1 = arith.constant 0 : i32
    return %c0_i32, %c0_i32_0 : i32, i32
  }
  func.func @transform_11(%arg0: i32) -> (i32, i32) {
    %c0_i32 = arith.constant 0 : i32
    %c0_i32_0 = arith.constant 0 : i32
    %c0_i32_1 = arith.constant 0 : i32
    return %c0_i32, %c0_i32_0 : i32, i32
  }
  func.func @transform_12(%arg0: i32) -> (i32, i32, i32) {
    %c0_i32 = arith.constant 0 : i32
    %c0_i32_0 = arith.constant 0 : i32
    %c0_i32_1 = arith.constant 0 : i32
    return %arg0, %c0_i32, %c0_i32_0 : i32, i32, i32
  }
}

</mosaic_0001>

<llo_original>
// kernel: tpu_custom_call.1
$region0: #{tpu_custom_call.1}
  #allocation0 [shape = 'u32[]', space=smem, size = 0x4, offset = 0x4, fixed_abs, tag = 'smem constant byte address 0x4 - core index']
  #allocation1 [shape = 'u32[72,128]{1,0:T(1,128)}', space=vmem, size = 0x9000, scoped, tag = 'internal scratch']
  %s0 = inlined_call_operand.hbm [shape: f32[2,64,128], index: 0, kind: input, shape index: {}]
  %s1 = inlined_call_operand.hbm [shape: f32[1,128], index: 1, kind: input, shape index: {}]
  %s2 = inlined_call_operand.vmem [shape: f32[1,128], index: 2, kind: input, shape index: {}]
  %s3 = inlined_call_operand.hbm [shape: bf16[128,384], index: 3, kind: input, shape index: {}]
  %s4 = inlined_call_operand.hbm [shape: bf16[128,128], index: 4, kind: input, shape index: {}]
  %s5 = inlined_call_operand.vmem [shape: f32[1,128], index: 5, kind: input, shape index: {}]
  %s6 = inlined_call_operand.vmem [shape: f32[1,128], index: 6, kind: input, shape index: {}]
  %s7 = inlined_call_operand.hbm [shape: f32[1,128], index: 7, kind: input, shape index: {}]
  %s8 = inlined_call_operand.hbm [shape: bf16[128,512], index: 8, kind: input, shape index: {}]
  %s9 = inlined_call_operand.vmem [shape: f32[1,512], index: 9, kind: input, shape index: {}]
  %s10 = inlined_call_operand.hbm [shape: bf16[512,128], index: 10, kind: input, shape index: {}]
  %s11 = inlined_call_operand.vmem [shape: f32[1,128], index: 11, kind: input, shape index: {}]
  %s12 = inlined_call_operand.hbm [shape: f32[2,64,128], index: 12, kind: output, shape index: {}]
  %s13 = sld [smem:[#allocation0]]
  $region86: #{tpu_custom_call.1} parent=0
    _
  %s15 = ssub.s32 1, %s13
  %s16 = scalar_select 0, %s15, %s13
  $region1: #{tpu_custom_call.1} parent=0
    #allocation2 [shape = 'u8[65536]{0}', space=vmem, size = 0x10000, scoped, tag = 'input window, operand 0, single buffered']
    #allocation3 [shape = 's32[1]{0}', space=sflag, size = 0x4, scoped, tag = 'scoped memory for tpu_custom_call.1']
    #allocation4 [shape = 's32[1]{0}', space=sflag, size = 0x4, scoped, tag = 'scoped memory for tpu_custom_call.1']
    #allocation5 [shape = 'u8[512]{0}', space=vmem, size = 0x400, scoped, tag = 'input window, operand 1, single buffered']
    #allocation6 [shape = 's32[1]{0}', space=sflag, size = 0x4, scoped, tag = 'scoped memory for tpu_custom_call.1']
    #allocation7 [shape = 'u8[98304]{0}', space=vmem, size = 0x18000, scoped, tag = 'input window, operand 3, single buffered']
    #allocation8 [shape = 'u8[32768]{0}', space=vmem, size = 0x8000, scoped, tag = 'input window, operand 4, single buffered']
    #allocation9 [shape = 's32[1]{0}', space=sflag, size = 0x4, scoped, tag = 'scoped memory for tpu_custom_call.1']
    #allocation10 [shape = 'u8[512]{0}', space=vmem, size = 0x400, scoped, tag = 'input window, operand 7, single buffered']
    #allocation11 [shape = 'u8[131072]{0}', space=vmem, size = 0x20000, scoped, tag = 'input window, operand 8, single buffered']
    #allocation12 [shape = 's32[1]{0}', space=sflag, size = 0x4, scoped, tag = 'scoped memory for tpu_custom_call.1']
    #allocation13 [shape = 'u8[131072]{0}', space=vmem, size = 0x20000, scoped, tag = 'input window, operand 10, single buffered']
    #allocation14 [shape = 'u8[65536]{0}', space=vmem, size = 0x10000, scoped, tag = 'output window, operand 0, single buffered']
    %17 = vsyncpa [#allocation3], 0
    %18 = vsyncpa [#allocation6], 0
    %19 = vsyncpa [#allocation9], 0
    %20 = vsyncpa [#allocation12], 0
    %21 = vsyncpa [#allocation4], 0
    // Predicated region
    $region2: #{tpu_custom_call.1} parent=1 // pred_check
      _
    $region3: #{tpu_custom_call.1} parent=1 // pred_check_branch
      %23 = sbr.rel (0) target = $region5
    $region4: #{tpu_custom_call.1} parent=1 // pred_region
      %25 = vsyncadd [#allocation3], 0
      %s26 = sshll.u32 %s0, 4
      %s27 = int_to_ptr.hbm [resolvable:$true] %s26
      %s28 = sshll.u32 [#allocation2], 4
      %s29 = int_to_ptr.vmem [resolvable:$true] %s28
      %34 = dma.hbm_to_vmem [thread:$0]  %s27, 2048, %s29, [#allocation3], 128, 128, 8
    $region5: #{tpu_custom_call.1} parent=1 // pred_fallthru
      _
    // Predicated region
    $region6: #{tpu_custom_call.1} parent=1 // pred_check
      _
    $region7: #{tpu_custom_call.1} parent=1 // pred_check_branch
      %36 = sbr.rel (0) target = $region9
    $region8: #{tpu_custom_call.1} parent=1 // pred_region
      %38 = vsyncadd [#allocation6], 0
      %s40 = sshll.u32 %s1, 4
      %s41 = int_to_ptr.hbm [resolvable:$true] %s40
      %s42 = sshll.u32 [#allocation5], 4
      %s43 = int_to_ptr.vmem [resolvable:$true] %s42
      %45 = dma.hbm_to_vmem [thread:$0]  %s41, 16, %s43, [#allocation6]
    $region9: #{tpu_custom_call.1} parent=1 // pred_fallthru
      _
    // Predicated region
    $region10: #{tpu_custom_call.1} parent=1 // pred_check
      _
    $region11: #{tpu_custom_call.1} parent=1 // pred_check_branch
      %47 = sbr.rel (0) target = $region13
    $region12: #{tpu_custom_call.1} parent=1 // pred_region
      _
    $region13: #{tpu_custom_call.1} parent=1 // pred_fallthru
      _
    // Predicated region
    $region14: #{tpu_custom_call.1} parent=1 // pred_check
      _
    $region15: #{tpu_custom_call.1} parent=1 // pred_check_branch
      %49 = sbr.rel (0) target = $region17
    $region16: #{tpu_custom_call.1} parent=1 // pred_region
      %51 = vsyncadd [#allocation6], 0
      %s52 = sshll.u32 %s3, 4
      %s53 = int_to_ptr.hbm [resolvable:$true] %s52
      %s54 = sshll.u32 [#allocation7], 4
      %s55 = int_to_ptr.vmem [resolvable:$true] %s54
      %60 = dma.hbm_to_vmem [thread:$0]  %s53, 3072, %s55, [#allocation6], 192, 192, 12
    $region17: #{tpu_custom_call.1} parent=1 // pred_fallthru
      _
    // Predicated region
    $region18: #{tpu_custom_call.1} parent=1 // pred_check
      _
    $region19: #{tpu_custom_call.1} parent=1 // pred_check_branch
      %62 = sbr.rel (0) target = $region21
    $region20: #{tpu_custom_call.1} parent=1 // pred_region
      %64 = vsyncadd [#allocation9], 0
      %s65 = sshll.u32 %s4, 4
      %s66 = int_to_ptr.hbm [resolvable:$true] %s65
      %s67 = sshll.u32 [#allocation8], 4
      %s68 = int_to_ptr.vmem [resolvable:$true] %s67
      %73 = dma.hbm_to_vmem [thread:$0]  %s66, 1024, %s68, [#allocation9], 64, 64, 4
    $region21: #{tpu_custom_call.1} parent=1 // pred_fallthru
      _
    // Predicated region
    $region22: #{tpu_custom_call.1} parent=1 // pred_check
      _
    $region23: #{tpu_custom_call.1} parent=1 // pred_check_branch
      %75 = sbr.rel (0) target = $region25
    $region24: #{tpu_custom_call.1} parent=1 // pred_region
      _
    $region25: #{tpu_custom_call.1} parent=1 // pred_fallthru
      _
    // Predicated region
    $region26: #{tpu_custom_call.1} parent=1 // pred_check
      _
    $region27: #{tpu_custom_call.1} parent=1 // pred_check_branch
      %77 = sbr.rel (0) target = $region29
    $region28: #{tpu_custom_call.1} parent=1 // pred_region
      _
    $region29: #{tpu_custom_call.1} parent=1 // pred_fallthru
      _
    // Predicated region
    $region30: #{tpu_custom_call.1} parent=1 // pred_check
      _
    $region31: #{tpu_custom_call.1} parent=1 // pred_check_branch
      %79 = sbr.rel (0) target = $region33
    $region32: #{tpu_custom_call.1} parent=1 // pred_region
      %81 = vsyncadd [#allocation9], 0
      %s83 = sshll.u32 %s7, 4
      %s84 = int_to_ptr.hbm [resolvable:$true] %s83
      %s85 = sshll.u32 [#allocation10], 4
      %s86 = int_to_ptr.vmem [resolvable:$true] %s85
      %88 = dma.hbm_to_vmem [thread:$0]  %s84, 16, %s86, [#allocation9]
    $region33: #{tpu_custom_call.1} parent=1 // pred_fallthru
      _
    // Predicated region
    $region34: #{tpu_custom_call.1} parent=1 // pred_check
      _
    $region35: #{tpu_custom_call.1} parent=1 // pred_check_branch
      %90 = sbr.rel (0) target = $region37
    $region36: #{tpu_custom_call.1} parent=1 // pred_region
      %92 = vsyncadd [#allocation12], 0
      %s93 = sshll.u32 %s8, 4
      %s94 = int_to_ptr.hbm [resolvable:$true] %s93
      %s95 = sshll.u32 [#allocation11], 4
      %s96 = int_to_ptr.vmem [resolvable:$true] %s95
      %101 = dma.hbm_to_vmem [thread:$0]  %s94, 4096, %s96, [#allocation12], 256, 256, 16
    $region37: #{tpu_custom_call.1} parent=1 // pred_fallthru
      _
    // Predicated region
    $region38: #{tpu_custom_call.1} parent=1 // pred_check
      _
    $region39: #{tpu_custom_call.1} parent=1 // pred_check_branch
      %103 = sbr.rel (0) target = $region41
    $region40: #{tpu_custom_call.1} parent=1 // pred_region
      _
    $region41: #{tpu_custom_call.1} parent=1 // pred_fallthru
      _
    // Predicated region
    $region42: #{tpu_custom_call.1} parent=1 // pred_check
      _
    $region43: #{tpu_custom_call.1} parent=1 // pred_check_branch
      %105 = sbr.rel (0) target = $region45
    $region44: #{tpu_custom_call.1} parent=1 // pred_region
      %107 = vsyncadd [#allocation12], 0
      %s108 = sshll.u32 %s10, 4
      %s109 = int_to_ptr.hbm [resolvable:$true] %s108
      %s110 = sshll.u32 [#allocation13], 4
      %s111 = int_to_ptr.vmem [resolvable:$true] %s110
      %116 = dma.hbm_to_vmem [thread:$0]  %s109, 4096, %s111, [#allocation12], 64, 64, 4
    $region45: #{tpu_custom_call.1} parent=1 // pred_fallthru
      _
    // Predicated region
    $region46: #{tpu_custom_call.1} parent=1 // pred_check
      _
    $region47: #{tpu_custom_call.1} parent=1 // pred_check_branch
      %118 = sbr.rel (0) target = $region49
    $region48: #{tpu_custom_call.1} parent=1 // pred_region
      _
    $region49: #{tpu_custom_call.1} parent=1 // pred_fallthru
      _
    // Predicated region
    $region50: #{tpu_custom_call.1} parent=1 // pred_check
      _
    $region51: #{tpu_custom_call.1} parent=1 // pred_check_branch
      %120 = sbr.rel (0) target = $region53
    $region52: #{tpu_custom_call.1} parent=1 // pred_region
      %122 = dma.done [#allocation3], 2048
    $region53: #{tpu_custom_call.1} parent=1 // pred_fallthru
      _
    // Predicated region
    $region54: #{tpu_custom_call.1} parent=1 // pred_check
      _
    $region55: #{tpu_custom_call.1} parent=1 // pred_check_branch
      %124 = sbr.rel (0) target = $region57
    $region56: #{tpu_custom_call.1} parent=1 // pred_region
      %126 = dma.done [#allocation6], 16
    $region57: #{tpu_custom_call.1} parent=1 // pred_fallthru
      _
    // Predicated region
    $region58: #{tpu_custom_call.1} parent=1 // pred_check
      _
    $region59: #{tpu_custom_call.1} parent=1 // pred_check_branch
      %128 = sbr.rel (0) target = $region61
    $region60: #{tpu_custom_call.1} parent=1 // pred_region
      %130 = dma.done [#allocation6], 3072
    $region61: #{tpu_custom_call.1} parent=1 // pred_fallthru
      _
    // Predicated region
    $region62: #{tpu_custom_call.1} parent=1 // pred_check
      _
    $region63: #{tpu_custom_call.1} parent=1 // pred_check_branch
      %132 = sbr.rel (0) target = $region65
    $region64: #{tpu_custom_call.1} parent=1 // pred_region
      %134 = dma.done [#allocation9], 1024
    $region65: #{tpu_custom_call.1} parent=1 // pred_fallthru
      _
    // Predicated region
    $region66: #{tpu_custom_call.1} parent=1 // pred_check
      _
    $region67: #{tpu_custom_call.1} parent=1 // pred_check_branch
      %136 = sbr.rel (0) target = $region69
    $region68: #{tpu_custom_call.1} parent=1 // pred_region
      %138 = dma.done [#allocation9], 16
    $region69: #{tpu_custom_call.1} parent=1 // pred_fallthru
      _
    // Predicated region
    $region70: #{tpu_custom_call.1} parent=1 // pred_check
      _
    $region71: #{tpu_custom_call.1} parent=1 // pred_check_branch
      %140 = sbr.rel (0) target = $region73
    $region72: #{tpu_custom_call.1} parent=1 // pred_region
      %142 = dma.done [#allocation12], 4096
    $region73: #{tpu_custom_call.1} parent=1 // pred_fallthru
      _
    // Predicated region
    $region74: #{tpu_custom_call.1} parent=1 // pred_check
      _
    $region75: #{tpu_custom_call.1} parent=1 // pred_check_branch
      %144 = sbr.rel (0) target = $region77
    $region76: #{tpu_custom_call.1} parent=1 // pred_region
      %146 = dma.done [#allocation12], 4096
    $region77: #{tpu_custom_call.1} parent=1 // pred_fallthru
      _
    %v148 = vld [vmem:[#allocation2] sm:$0xff]
    %v149 = vld [vmem:[#allocation2 + $0x8] sm:$0xff]
    %v150 = vld [vmem:[#allocation2 + $0x10] sm:$0xff]
    %v151 = vld [vmem:[#allocation2 + $0x18] sm:$0xff]
    %v152 = vld [vmem:[#allocation2 + $0x20] sm:$0xff]
    %v153 = vld [vmem:[#allocation2 + $0x28] sm:$0xff]
    %v154 = vld [vmem:[#allocation2 + $0x30] sm:$0xff]
    %v155 = vld [vmem:[#allocation2 + $0x38] sm:$0xff]
    %v156 = vld [vmem:[#allocation2 + $0x40] sm:$0xff]
    %v157 = vld [vmem:[#allocation2 + $0x48] sm:$0xff]
    %v158 = vld [vmem:[#allocation2 + $0x50] sm:$0xff]
    %v159 = vld [vmem:[#allocation2 + $0x58] sm:$0xff]
    %v160 = vld [vmem:[#allocation2 + $0x60] sm:$0xff]
    %v161 = vld [vmem:[#allocation2 + $0x68] sm:$0xff]
    %v162 = vld [vmem:[#allocation2 + $0x70] sm:$0xff]
    %v163 = vld [vmem:[#allocation2 + $0x78] sm:$0xff]
    %v164 = vld [vmem:[#allocation5] sm:$0x1]
    %v165 = vld [vmem:[%s2] sm:$0x1]
    %166 = vadd.xlane.f32.xlu0 %v148
    %v167 = vpop.xlane.xlu0 %166
    %168 = vadd.xlane.f32.xlu0 %v149
    %v169 = vpop.xlane.xlu0 %168
    %170 = vadd.xlane.f32.xlu0 %v150
    %v171 = vpop.xlane.xlu0 %170
    %172 = vadd.xlane.f32.xlu0 %v151
    %v173 = vpop.xlane.xlu0 %172
    %174 = vadd.xlane.f32.xlu0 %v152
    %v175 = vpop.xlane.xlu0 %174
    %176 = vadd.xlane.f32.xlu0 %v153
    %v177 = vpop.xlane.xlu0 %176
    %178 = vadd.xlane.f32.xlu0 %v154
    %v179 = vpop.xlane.xlu0 %178
    %180 = vadd.xlane.f32.xlu0 %v155
    %v181 = vpop.xlane.xlu0 %180
    %182 = vadd.xlane.f32.xlu0 %v156
    %v183 = vpop.xlane.xlu0 %182
    %184 = vadd.xlane.f32.xlu0 %v157
    %v185 = vpop.xlane.xlu0 %184
    %186 = vadd.xlane.f32.xlu0 %v158
    %v187 = vpop.xlane.xlu0 %186
    %188 = vadd.xlane.f32.xlu0 %v159
    %v189 = vpop.xlane.xlu0 %188
    %190 = vadd.xlane.f32.xlu0 %v160
    %v191 = vpop.xlane.xlu0 %190
    %192 = vadd.xlane.f32.xlu0 %v161
    %v193 = vpop.xlane.xlu0 %192
    %194 = vadd.xlane.f32.xlu0 %v162
    %v195 = vpop.xlane.xlu0 %194
    %196 = vadd.xlane.f32.xlu0 %v163
    %v197 = vpop.xlane.xlu0 %196
    %v198 = vrcp.pop 128.0
    %v199 = vmul.f32 128.0, %v198
    %v200 = vsub.f32 1.0, %v199
    %v201 = vmul.f32 %v198, %v200
    %v202 = vadd.f32 %v198, %v201
    %vm203 = vweird.f32 %v198
    %v204 = vsel %vm203, %v198, %v202
    %v205 = vmul.f32 %v167, %v204
    %v206 = vmul.f32 %v169, %v204
    %v207 = vmul.f32 %v171, %v204
    %v208 = vmul.f32 %v173, %v204
    %v209 = vmul.f32 %v175, %v204
    %v210 = vmul.f32 %v177, %v204
    %v211 = vmul.f32 %v179, %v204
    %v212 = vmul.f32 %v181, %v204
    %v213 = vmul.f32 %v183, %v204
    %v214 = vmul.f32 %v185, %v204
    %v215 = vmul.f32 %v187, %v204
    %v216 = vmul.f32 %v189, %v204
    %v217 = vmul.f32 %v191, %v204
    %v218 = vmul.f32 %v193, %v204
    %v219 = vmul.f32 %v195, %v204
    %v220 = vmul.f32 %v197, %v204
    %v221 = vsub.f32 %v148, %v205
    %v222 = vsub.f32 %v149, %v206
    %v223 = vsub.f32 %v150, %v207
    %v224 = vsub.f32 %v151, %v208
    %v225 = vsub.f32 %v152, %v209
    %v226 = vsub.f32 %v153, %v210
    %v227 = vsub.f32 %v154, %v211
    %v228 = vsub.f32 %v155, %v212
    %v229 = vsub.f32 %v156, %v213
    %v230 = vsub.f32 %v157, %v214
    %v231 = vsub.f32 %v158, %v215
    %v232 = vsub.f32 %v159, %v216
    %v233 = vsub.f32 %v160, %v217
    %v234 = vsub.f32 %v161, %v218
    %v235 = vsub.f32 %v162, %v219
    %v236 = vsub.f32 %v163, %v220
    %v237 = vmul.f32 %v221, %v221
    %v238 = vmul.f32 %v222, %v222
    %v239 = vmul.f32 %v223, %v223
    %v240 = vmul.f32 %v224, %v224
    %v241 = vmul.f32 %v225, %v225
    %v242 = vmul.f32 %v226, %v226
    %v243 = vmul.f32 %v227, %v227
    %v244 = vmul.f32 %v228, %v228
    %v245 = vmul.f32 %v229, %v229
    %v246 = vmul.f32 %v230, %v230
    %v247 = vmul.f32 %v231, %v231
    %v248 = vmul.f32 %v232, %v232
    %v249 = vmul.f32 %v233, %v233
    %v250 = vmul.f32 %v234, %v234
    %v251 = vmul.f32 %v235, %v235
    %v252 = vmul.f32 %v236, %v236
    %253 = vadd.xlane.f32.xlu0 %v237
    %v254 = vpop.xlane.xlu0 %253
    %255 = vadd.xlane.f32.xlu0 %v238
    %v256 = vpop.xlane.xlu0 %255
    %257 = vadd.xlane.f32.xlu0 %v239
    %v258 = vpop.xlane.xlu0 %257
    %259 = vadd.xlane.f32.xlu0 %v240
    %v260 = vpop.xlane.xlu0 %259
    %261 = vadd.xlane.f32.xlu0 %v241
    %v262 = vpop.xlane.xlu0 %261
    %263 = vadd.xlane.f32.xlu0 %v242
    %v264 = vpop.xlane.xlu0 %263
    %265 = vadd.xlane.f32.xlu0 %v243
    %v266 = vpop.xlane.xlu0 %265
    %267 = vadd.xlane.f32.xlu0 %v244
    %v268 = vpop.xlane.xlu0 %267
    %269 = vadd.xlane.f32.xlu0 %v245
    %v270 = vpop.xlane.xlu0 %269
    %271 = vadd.xlane.f32.xlu0 %v246
    %v272 = vpop.xlane.xlu0 %271
    %273 = vadd.xlane.f32.xlu0 %v247
    %v274 = vpop.xlane.xlu0 %273
    %275 = vadd.xlane.f32.xlu0 %v248
    %v276 = vpop.xlane.xlu0 %275
    %277 = vadd.xlane.f32.xlu0 %v249
    %v278 = vpop.xlane.xlu0 %277
    %279 = vadd.xlane.f32.xlu0 %v250
    %v280 = vpop.xlane.xlu0 %279
    %281 = vadd.xlane.f32.xlu0 %v251
    %v282 = vpop.xlane.xlu0 %281
    %283 = vadd.xlane.f32.xlu0 %v252
    %v284 = vpop.xlane.xlu0 %283
    %v285 = vmul.f32 %v254, %v204
    %v286 = vmul.f32 %v256, %v204
    %v287 = vmul.f32 %v258, %v204
    %v288 = vmul.f32 %v260, %v204
    %v289 = vmul.f32 %v262, %v204
    %v290 = vmul.f32 %v264, %v204
    %v291 = vmul.f32 %v266, %v204
    %v292 = vmul.f32 %v268, %v204
    %v293 = vmul.f32 %v270, %v204
    %v294 = vmul.f32 %v272, %v204
    %v295 = vmul.f32 %v274, %v204
    %v296 = vmul.f32 %v276, %v204
    %v297 = vmul.f32 %v278, %v204
    %v298 = vmul.f32 %v280, %v204
    %v299 = vmul.f32 %v282, %v204
    %v300 = vmul.f32 %v284, %v204
    %v301 = vadd.f32 %v285, 1e-05
    %v302 = vadd.f32 %v286, 1e-05
    %v303 = vadd.f32 %v287, 1e-05
    %v304 = vadd.f32 %v288, 1e-05
    %v305 = vadd.f32 %v289, 1e-05
    %v306 = vadd.f32 %v290, 1e-05
    %v307 = vadd.f32 %v291, 1e-05
    %v308 = vadd.f32 %v292, 1e-05
    %v309 = vadd.f32 %v293, 1e-05
    %v310 = vadd.f32 %v294, 1e-05
    %v311 = vadd.f32 %v295, 1e-05
    %v312 = vadd.f32 %v296, 1e-05
    %v313 = vadd.f32 %v297, 1e-05
    %v314 = vadd.f32 %v298, 1e-05
    %v315 = vadd.f32 %v299, 1e-05
    %v316 = vadd.f32 %v300, 1e-05
    %v317 = vrsqrt.pop %v301
    %v318 = vmul.f32 %v317, %v301
    %v319 = vmul.f32 %v318, %v317
    %v320 = vmul.f32 0.5, %v319
    %v321 = vsub.f32 1.5, %v320
    %v322 = vmul.f32 %v317, %v321
    %vm323 = vweird.f32 %v301
    %vm324 = vweird.f32 %v317
    %vm325 = vmor %vm323, %vm324
    %v326 = vsel %vm325, %v317, %v322
    %v327 = vrsqrt.pop %v302
    %v328 = vmul.f32 %v327, %v302
    %v329 = vmul.f32 %v328, %v327
    %v330 = vmul.f32 0.5, %v329
    %v331 = vsub.f32 1.5, %v330
    %v332 = vmul.f32 %v327, %v331
    %vm333 = vweird.f32 %v302
    %vm334 = vweird.f32 %v327
    %vm335 = vmor %vm333, %vm334
    %v336 = vsel %vm335, %v327, %v332
    %v337 = vrsqrt.pop %v303
    %v338 = vmul.f32 %v337, %v303
    %v339 = vmul.f32 %v338, %v337
    %v340 = vmul.f32 0.5, %v339
    %v341 = vsub.f32 1.5, %v340
    %v342 = vmul.f32 %v337, %v341
    %vm343 = vweird.f32 %v303
    %vm344 = vweird.f32 %v337
    %vm345 = vmor %vm343, %vm344
    %v346 = vsel %vm345, %v337, %v342
    %v347 = vrsqrt.pop %v304
    %v348 = vmul.f32 %v347, %v304
    %v349 = vmul.f32 %v348, %v347
    %v350 = vmul.f32 0.5, %v349
    %v351 = vsub.f32 1.5, %v350
    %v352 = vmul.f32 %v347, %v351
    %vm353 = vweird.f32 %v304
    %vm354 = vweird.f32 %v347
    %vm355 = vmor %vm353, %vm354
    %v356 = vsel %vm355, %v347, %v352
    %v357 = vrsqrt.pop %v305
    %v358 = vmul.f32 %v357, %v305
    %v359 = vmul.f32 %v358, %v357
    %v360 = vmul.f32 0.5, %v359
    %v361 = vsub.f32 1.5, %v360
    %v362 = vmul.f32 %v357, %v361
    %vm363 = vweird.f32 %v305
    %vm364 = vweird.f32 %v357
    %vm365 = vmor %vm363, %vm364
    %v366 = vsel %vm365, %v357, %v362
    %v367 = vrsqrt.pop %v306
    %v368 = vmul.f32 %v367, %v306
    %v369 = vmul.f32 %v368, %v367
    %v370 = vmul.f32 0.5, %v369
    %v371 = vsub.f32 1.5, %v370
    %v372 = vmul.f32 %v367, %v371
    %vm373 = vweird.f32 %v306
    %vm374 = vweird.f32 %v367
    %vm375 = vmor %vm373, %vm374
    %v376 = vsel %vm375, %v367, %v372
    %v377 = vrsqrt.pop %v307
    %v378 = vmul.f32 %v377, %v307
    %v379 = vmul.f32 %v378, %v377
    %v380 = vmul.f32 0.5, %v379
    %v381 = vsub.f32 1.5, %v380
    %v382 = vmul.f32 %v377, %v381
    %vm383 = vweird.f32 %v307
    %vm384 = vweird.f32 %v377
    %vm385 = vmor %vm383, %vm384
    %v386 = vsel %vm385, %v377, %v382
    %v387 = vrsqrt.pop %v308
    %v388 = vmul.f32 %v387, %v308
    %v389 = vmul.f32 %v388, %v387
    %v390 = vmul.f32 0.5, %v389
    %v391 = vsub.f32 1.5, %v390
    %v392 = vmul.f32 %v387, %v391
    %vm393 = vweird.f32 %v308
    %vm394 = vweird.f32 %v387
    %vm395 = vmor %vm393, %vm394
    %v396 = vsel %vm395, %v387, %v392
    %v397 = vrsqrt.pop %v309
    %v398 = vmul.f32 %v397, %v309
    %v399 = vmul.f32 %v398, %v397
    %v400 = vmul.f32 0.5, %v399
    %v401 = vsub.f32 1.5, %v400
    %v402 = vmul.f32 %v397, %v401
    %vm403 = vweird.f32 %v309
    %vm404 = vweird.f32 %v397
    %vm405 = vmor %vm403, %vm404
    %v406 = vsel %vm405, %v397, %v402
    %v407 = vrsqrt.pop %v310
    %v408 = vmul.f32 %v407, %v310
    %v409 = vmul.f32 %v408, %v407
    %v410 = vmul.f32 0.5, %v409
    %v411 = vsub.f32 1.5, %v410
    %v412 = vmul.f32 %v407, %v411
    %vm413 = vweird.f32 %v310
    %vm414 = vweird.f32 %v407
    %vm415 = vmor %vm413, %vm414
    %v416 = vsel %vm415, %v407, %v412
    %v417 = vrsqrt.pop %v311
    %v418 = vmul.f32 %v417, %v311
    %v419 = vmul.f32 %v418, %v417
    %v420 = vmul.f32 0.5, %v419
    %v421 = vsub.f32 1.5, %v420
    %v422 = vmul.f32 %v417, %v421
    %vm423 = vweird.f32 %v311
    %vm424 = vweird.f32 %v417
    %vm425 = vmor %vm423, %vm424
    %v426 = vsel %vm425, %v417, %v422
    %v427 = vrsqrt.pop %v312
    %v428 = vmul.f32 %v427, %v312
    %v429 = vmul.f32 %v428, %v427
    %v430 = vmul.f32 0.5, %v429
    %v431 = vsub.f32 1.5, %v430
    %v432 = vmul.f32 %v427, %v431
    %vm433 = vweird.f32 %v312
    %vm434 = vweird.f32 %v427
    %vm435 = vmor %vm433, %vm434
    %v436 = vsel %vm435, %v427, %v432
    %v437 = vrsqrt.pop %v313
    %v438 = vmul.f32 %v437, %v313
    %v439 = vmul.f32 %v438, %v437
    %v440 = vmul.f32 0.5, %v439
    %v441 = vsub.f32 1.5, %v440
    %v442 = vmul.f32 %v437, %v441
    %vm443 = vweird.f32 %v313
    %vm444 = vweird.f32 %v437
    %vm445 = vmor %vm443, %vm444
    %v446 = vsel %vm445, %v437, %v442
    %v447 = vrsqrt.pop %v314
    %v448 = vmul.f32 %v447, %v314
    %v449 = vmul.f32 %v448, %v447
    %v450 = vmul.f32 0.5, %v449
    %v451 = vsub.f32 1.5, %v450
    %v452 = vmul.f32 %v447, %v451
    %vm453 = vweird.f32 %v314
    %vm454 = vweird.f32 %v447
    %vm455 = vmor %vm453, %vm454
    %v456 = vsel %vm455, %v447, %v452
    %v457 = vrsqrt.pop %v315
    %v458 = vmul.f32 %v457, %v315
    %v459 = vmul.f32 %v458, %v457
    %v460 = vmul.f32 0.5, %v459
    %v461 = vsub.f32 1.5, %v460
    %v462 = vmul.f32 %v457, %v461
    %vm463 = vweird.f32 %v315
    %vm464 = vweird.f32 %v457
    %vm465 = vmor %vm463, %vm464
    %v466 = vsel %vm465, %v457, %v462
    %v467 = vrsqrt.pop %v316
    %v468 = vmul.f32 %v467, %v316
    %v469 = vmul.f32 %v468, %v467
    %v470 = vmul.f32 0.5, %v469
    %v471 = vsub.f32 1.5, %v470
    %v472 = vmul.f32 %v467, %v471
    %vm473 = vweird.f32 %v316
    %vm474 = vweird.f32 %v467
    %vm475 = vmor %vm473, %vm474
    %v476 = vsel %vm475, %v467, %v472
    %v477 = vmul.f32 %v221, %v326
    %v478 = vmul.f32 %v222, %v336
    %v479 = vmul.f32 %v223, %v346
    %v480 = vmul.f32 %v224, %v356
    %v481 = vmul.f32 %v225, %v366
    %v482 = vmul.f32 %v226, %v376
    %v483 = vmul.f32 %v227, %v386
    %v484 = vmul.f32 %v228, %v396
    %v485 = vmul.f32 %v229, %v406
    %v486 = vmul.f32 %v230, %v416
    %v487 = vmul.f32 %v231, %v426
    %v488 = vmul.f32 %v232, %v436
    %v489 = vmul.f32 %v233, %v446
    %v490 = vmul.f32 %v234, %v456
    %v491 = vmul.f32 %v235, %v466
    %v492 = vmul.f32 %v236, %v476
    %v494 = vperm.slane %v164, 0
    %v496 = vmul.f32 %v477, %v494
    %v497 = vmul.f32 %v478, %v494
    %v498 = vmul.f32 %v479, %v494
    %v499 = vmul.f32 %v480, %v494
    %v500 = vmul.f32 %v481, %v494
    %v501 = vmul.f32 %v482, %v494
    %v502 = vmul.f32 %v483, %v494
    %v503 = vmul.f32 %v484, %v494
    %v504 = vmul.f32 %v485, %v494
    %v505 = vmul.f32 %v486, %v494
    %v506 = vmul.f32 %v487, %v494
    %v507 = vmul.f32 %v488, %v494
    %v508 = vmul.f32 %v489, %v494
    %v509 = vmul.f32 %v490, %v494
    %v510 = vmul.f32 %v491, %v494
    %v511 = vmul.f32 %v492, %v494
    %v513 = vperm.slane %v165, 0
    %v515 = vadd.f32 %v496, %v513
    %v516 = vadd.f32 %v497, %v513
    %v517 = vadd.f32 %v498, %v513
    %v518 = vadd.f32 %v499, %v513
    %v519 = vadd.f32 %v500, %v513
    %v520 = vadd.f32 %v501, %v513
    %v521 = vadd.f32 %v502, %v513
    %v522 = vadd.f32 %v503, %v513
    %v523 = vadd.f32 %v504, %v513
    %v524 = vadd.f32 %v505, %v513
    %v525 = vadd.f32 %v506, %v513
    %v526 = vadd.f32 %v507, %v513
    %v527 = vadd.f32 %v508, %v513
    %v528 = vadd.f32 %v509, %v513
    %v529 = vadd.f32 %v510, %v513
    %v530 = vadd.f32 %v511, %v513
    %v531 = vpack.c.bf16 %v516, %v515
    %v532 = vpack.c.bf16 %v518, %v517
    %v533 = vpack.c.bf16 %v520, %v519
    %v534 = vpack.c.bf16 %v522, %v521
    %v535 = vpack.c.bf16 %v524, %v523
    %v536 = vpack.c.bf16 %v526, %v525
    %v537 = vpack.c.bf16 %v528, %v527
    %v538 = vpack.c.bf16 %v530, %v529
    %v539 = vld [vmem:[#allocation7] sm:$0xff]
    %v540 = vld [vmem:[#allocation7 + $0x8] sm:$0xf]
    %v541 = vld [vmem:[#allocation7 + $0xc] sm:$0xff]
    %v542 = vld [vmem:[#allocation7 + $0x14] sm:$0xf]
    %v543 = vld [vmem:[#allocation7 + $0x18] sm:$0xff]
    %v544 = vld [vmem:[#allocation7 + $0x20] sm:$0xf]
    %v545 = vld [vmem:[#allocation7 + $0x24] sm:$0xff]
    %v546 = vld [vmem:[#allocation7 + $0x2c] sm:$0xf]
    %v547 = vld [vmem:[#allocation7 + $0x30] sm:$0xff]
    %v548 = vld [vmem:[#allocation7 + $0x38] sm:$0xf]
    %v549 = vld [vmem:[#allocation7 + $0x3c] sm:$0xff]
    %v550 = vld [vmem:[#allocation7 + $0x44] sm:$0xf]
    %v551 = vld [vmem:[#allocation7 + $0x48] sm:$0xff]
    %v552 = vld [vmem:[#allocation7 + $0x50] sm:$0xf]
    %v553 = vld [vmem:[#allocation7 + $0x54] sm:$0xff]
    %v554 = vld [vmem:[#allocation7 + $0x5c] sm:$0xf]
    %v555 = vld [vmem:[#allocation7 + $0x60] sm:$0xff]
    %v556 = vld [vmem:[#allocation7 + $0x68] sm:$0xf]
    %v557 = vld [vmem:[#allocation7 + $0x6c] sm:$0xff]
    %v558 = vld [vmem:[#allocation7 + $0x74] sm:$0xf]
    %v559 = vld [vmem:[#allocation7 + $0x78] sm:$0xff]
    %v560 = vld [vmem:[#allocation7 + $0x80] sm:$0xf]
    %v561 = vld [vmem:[#allocation7 + $0x84] sm:$0xff]
    %v562 = vld [vmem:[#allocation7 + $0x8c] sm:$0xf]
    %v563 = vld [vmem:[#allocation7 + $0x90] sm:$0xff]
    %v564 = vld [vmem:[#allocation7 + $0x98] sm:$0xf]
    %v565 = vld [vmem:[#allocation7 + $0x9c] sm:$0xff]
    %v566 = vld [vmem:[#allocation7 + $0xa4] sm:$0xf]
    %v567 = vld [vmem:[#allocation7 + $0xa8] sm:$0xff]
    %v568 = vld [vmem:[#allocation7 + $0xb0] sm:$0xf]
    %v569 = vld [vmem:[#allocation7 + $0xb4] sm:$0xff]
    %v570 = vld [vmem:[#allocation7 + $0xbc] sm:$0xf]
    %v603 = vunpack.c.l.b16 %v539
    %v604 = vunpack.c.h.b16 %v539
    %v605 = vunpack.c.l.b16 %v540
    %v606 = vunpack.c.l.b16 %v541
    %v607 = vunpack.c.h.b16 %v541
    %v608 = vunpack.c.l.b16 %v542
    %v609 = vunpack.c.l.b16 %v543
    %v610 = vunpack.c.h.b16 %v543
    %v611 = vunpack.c.l.b16 %v544
    %v612 = vunpack.c.l.b16 %v545
    %v613 = vunpack.c.h.b16 %v545
    %v614 = vunpack.c.l.b16 %v546
    %v615 = vunpack.c.l.b16 %v547
    %v616 = vunpack.c.h.b16 %v547
    %v617 = vunpack.c.l.b16 %v548
    %v618 = vunpack.c.l.b16 %v549
    %v619 = vunpack.c.h.b16 %v549
    %v620 = vunpack.c.l.b16 %v550
    %v621 = vunpack.c.l.b16 %v551
    %v622 = vunpack.c.h.b16 %v551
    %v623 = vunpack.c.l.b16 %v552
    %v624 = vunpack.c.l.b16 %v553
    %v625 = vunpack.c.h.b16 %v553
    %v626 = vunpack.c.l.b16 %v554
    %v627 = vunpack.c.l.b16 %v555
    %v628 = vunpack.c.h.b16 %v555
    %v629 = vunpack.c.l.b16 %v556
    %v630 = vunpack.c.l.b16 %v557
    %v631 = vunpack.c.h.b16 %v557
    %v632 = vunpack.c.l.b16 %v558
    %v633 = vunpack.c.l.b16 %v559
    %v634 = vunpack.c.h.b16 %v559
    %v635 = vunpack.c.l.b16 %v560
    %v636 = vunpack.c.l.b16 %v561
    %v637 = vunpack.c.h.b16 %v561
    %v638 = vunpack.c.l.b16 %v562
    %v639 = vunpack.c.l.b16 %v563
    %v640 = vunpack.c.h.b16 %v563
    %v641 = vunpack.c.l.b16 %v564
    %v642 = vunpack.c.l.b16 %v565
    %v643 = vunpack.c.h.b16 %v565
    %v644 = vunpack.c.l.b16 %v566
    %v645 = vunpack.c.l.b16 %v567
    %v646 = vunpack.c.h.b16 %v567
    %v647 = vunpack.c.l.b16 %v568
    %v648 = vunpack.c.l.b16 %v569
    %v649 = vunpack.c.h.b16 %v569
    %v650 = vunpack.c.l.b16 %v570
    %v651 = vpack.c.b16 %v606, %v603
    %v652 = vpack.c.b16 %v607, %v604
    %v653 = vpack.c.b16 %v608, %v605
    %v654 = vpack.c.b16 %v612, %v609
    %v655 = vpack.c.b16 %v613, %v610
    %v656 = vpack.c.b16 %v614, %v611
    %v657 = vpack.c.b16 %v618, %v615
    %v658 = vpack.c.b16 %v619, %v616
    %v659 = vpack.c.b16 %v620, %v617
    %v660 = vpack.c.b16 %v624, %v621
    %v661 = vpack.c.b16 %v625, %v622
    %v662 = vpack.c.b16 %v626, %v623
    %v663 = vpack.c.b16 %v630, %v627
    %v664 = vpack.c.b16 %v631, %v628
    %v665 = vpack.c.b16 %v632, %v629
    %v666 = vpack.c.b16 %v636, %v633
    %v667 = vpack.c.b16 %v637, %v634
    %v668 = vpack.c.b16 %v638, %v635
    %v669 = vpack.c.b16 %v642, %v639
    %v670 = vpack.c.b16 %v643, %v640
    %v671 = vpack.c.b16 %v644, %v641
    %v672 = vpack.c.b16 %v648, %v645
    %v673 = vpack.c.b16 %v649, %v646
    %v674 = vpack.c.b16 %v650, %v647
    %699 = vmatpush.bf16.msra.mxu0 %v672
    %700 = vmatpush.bf16.msra.mxu0 %v669
    %701 = vmatpush.bf16.msra.mxu0 %v666
    %702 = vmatpush.bf16.msra.mxu0 %v663
    %703 = vmatpush.bf16.msra.mxu0 %v660
    %704 = vmatpush.bf16.msra.mxu0 %v657
    %705 = vmatpush.bf16.msra.mxu0 %v654
    %706 = vmatpush.bf16.msra.mxu0 %v651
    %707 = vmatmul.bf16.gmra.mxu0 %v531
    %v708 = vpop.f32.mrf.mxu0
    %v709 = vadd.f32 0.0, %v708
    %v710 = vpop.f32.mrf.mxu0
    %v711 = vadd.f32 0.0, %v710
    %712 = vmatmul.bf16.gmra.mxu0 %v532
    %v713 = vpop.f32.mrf.mxu0
    %v714 = vadd.f32 0.0, %v713
    %v715 = vpop.f32.mrf.mxu0
    %v716 = vadd.f32 0.0, %v715
    %717 = vmatmul.bf16.gmra.mxu0 %v533
    %v718 = vpop.f32.mrf.mxu0
    %v719 = vadd.f32 0.0, %v718
    %v720 = vpop.f32.mrf.mxu0
    %v721 = vadd.f32 0.0, %v720
    %722 = vmatmul.bf16.gmra.mxu0 %v534
    %v723 = vpop.f32.mrf.mxu0
    %v724 = vadd.f32 0.0, %v723
    %v725 = vpop.f32.mrf.mxu0
    %v726 = vadd.f32 0.0, %v725
    %727 = vmatmul.bf16.gmra.mxu0 %v535
    %v728 = vpop.f32.mrf.mxu0
    %v729 = vadd.f32 0.0, %v728
    %v730 = vpop.f32.mrf.mxu0
    %v731 = vadd.f32 0.0, %v730
    %732 = vmatmul.bf16.gmra.mxu0 %v536
    %v733 = vpop.f32.mrf.mxu0
    %v734 = vadd.f32 0.0, %v733
    %v735 = vpop.f32.mrf.mxu0
    %v736 = vadd.f32 0.0, %v735
    %737 = vmatmul.bf16.gmra.mxu0 %v537
    %v738 = vpop.f32.mrf.mxu0
    %v739 = vadd.f32 0.0, %v738
    %v740 = vpop.f32.mrf.mxu0
    %v741 = vadd.f32 0.0, %v740
    %742 = vmatmul.bf16.gmra.mxu0 %v538
    %v743 = vpop.f32.mrf.mxu0
    %v744 = vadd.f32 0.0, %v743
    %v745 = vpop.f32.mrf.mxu0
    %v746 = vadd.f32 0.0, %v745
    %747 = vdwg.mxu0
    %748 = vmatpush.bf16.msra.mxu0 %v673
    %749 = vmatpush.bf16.msra.mxu0 %v670
    %750 = vmatpush.bf16.msra.mxu0 %v667
    %751 = vmatpush.bf16.msra.mxu0 %v664
    %752 = vmatpush.bf16.msra.mxu0 %v661
    %753 = vmatpush.bf16.msra.mxu0 %v658
    %754 = vmatpush.bf16.msra.mxu0 %v655
    %755 = vmatpush.bf16.msra.mxu0 %v652
    %756 = vmatmul.bf16.gmra.mxu0 %v531
    %v757 = vpop.f32.mrf.mxu0
    %v758 = vadd.f32 0.0, %v757
    %v759 = vpop.f32.mrf.mxu0
    %v760 = vadd.f32 0.0, %v759
    %761 = vmatmul.bf16.gmra.mxu0 %v532
    %v762 = vpop.f32.mrf.mxu0
    %v763 = vadd.f32 0.0, %v762
    %v764 = vpop.f32.mrf.mxu0
    %v765 = vadd.f32 0.0, %v764
    %766 = vmatmul.bf16.gmra.mxu0 %v533
    %v767 = vpop.f32.mrf.mxu0
    %v768 = vadd.f32 0.0, %v767
    %v769 = vpop.f32.mrf.mxu0
    %v770 = vadd.f32 0.0, %v769
    %771 = vmatmul.bf16.gmra.mxu0 %v534
    %v772 = vpop.f32.mrf.mxu0
    %v773 = vadd.f32 0.0, %v772
    %v774 = vpop.f32.mrf.mxu0
    %v775 = vadd.f32 0.0, %v774
    %776 = vmatmul.bf16.gmra.mxu0 %v535
    %v777 = vpop.f32.mrf.mxu0
    %v778 = vadd.f32 0.0, %v777
    %v779 = vpop.f32.mrf.mxu0
    %v780 = vadd.f32 0.0, %v779
    %781 = vmatmul.bf16.gmra.mxu0 %v536
    %v782 = vpop.f32.mrf.mxu0
    %v783 = vadd.f32 0.0, %v782
    %v784 = vpop.f32.mrf.mxu0
    %v785 = vadd.f32 0.0, %v784
    %786 = vmatmul.bf16.gmra.mxu0 %v537
    %v787 = vpop.f32.mrf.mxu0
    %v788 = vadd.f32 0.0, %v787
    %v789 = vpop.f32.mrf.mxu0
    %v790 = vadd.f32 0.0, %v789
    %791 = vmatmul.bf16.gmra.mxu0 %v538
    %v792 = vpop.f32.mrf.mxu0
    %v793 = vadd.f32 0.0, %v792
    %v794 = vpop.f32.mrf.mxu0
    %v795 = vadd.f32 0.0, %v794
    %796 = vdwg.mxu0
    %797 = vmatpush.bf16.msra.mxu0 %v674
    %798 = vmatpush.bf16.msra.mxu0 %v671
    %799 = vmatpush.bf16.msra.mxu0 %v668
    %800 = vmatpush.bf16.msra.mxu0 %v665
    %801 = vmatpush.bf16.msra.mxu0 %v662
    %802 = vmatpush.bf16.msra.mxu0 %v659
    %803 = vmatpush.bf16.msra.mxu0 %v656
    %804 = vmatpush.bf16.msra.mxu0 %v653
    %805 = vmatmul.bf16.gmra.mxu0 %v531
    %v806 = vpop.f32.mrf.mxu0
    %v807 = vadd.f32 0.0, %v806
    %v808 = vpop.f32.mrf.mxu0
    %v809 = vadd.f32 0.0, %v808
    %810 = vmatmul.bf16.gmra.mxu0 %v532
    %v811 = vpop.f32.mrf.mxu0
    %v812 = vadd.f32 0.0, %v811
    %v813 = vpop.f32.mrf.mxu0
    %v814 = vadd.f32 0.0, %v813
    %815 = vmatmul.bf16.gmra.mxu0 %v533
    %v816 = vpop.f32.mrf.mxu0
    %v817 = vadd.f32 0.0, %v816
    %v818 = vpop.f32.mrf.mxu0
    %v819 = vadd.f32 0.0, %v818
    %820 = vmatmul.bf16.gmra.mxu0 %v534
    %v821 = vpop.f32.mrf.mxu0
    %v822 = vadd.f32 0.0, %v821
    %v823 = vpop.f32.mrf.mxu0
    %v824 = vadd.f32 0.0, %v823
    %825 = vmatmul.bf16.gmra.mxu0 %v535
    %v826 = vpop.f32.mrf.mxu0
    %v827 = vadd.f32 0.0, %v826
    %v828 = vpop.f32.mrf.mxu0
    %v829 = vadd.f32 0.0, %v828
    %830 = vmatmul.bf16.gmra.mxu0 %v536
    %v831 = vpop.f32.mrf.mxu0
    %v832 = vadd.f32 0.0, %v831
    %v833 = vpop.f32.mrf.mxu0
    %v834 = vadd.f32 0.0, %v833
    %835 = vmatmul.bf16.gmra.mxu0 %v537
    %v836 = vpop.f32.mrf.mxu0
    %v837 = vadd.f32 0.0, %v836
    %v838 = vpop.f32.mrf.mxu0
    %v839 = vadd.f32 0.0, %v838
    %840 = vmatmul.bf16.gmra.mxu0 %v538
    %v841 = vpop.f32.mrf.mxu0
    %v842 = vadd.f32 0.0, %v841
    %v843 = vpop.f32.mrf.mxu0
    %v844 = vadd.f32 0.0, %v843
    %845 = vdwg.mxu0
    %v846 = vpack.c.bf16 %v709, %v709
    %v847 = vpack.c.bf16 %v711, %v711
    %v848 = vpack.c.bf16 %v714, %v714
    %v849 = vpack.c.bf16 %v716, %v716
    %v850 = vpack.c.bf16 %v719, %v719
    %v851 = vpack.c.bf16 %v721, %v721
    %v852 = vpack.c.bf16 %v724, %v724
    %v853 = vpack.c.bf16 %v726, %v726
    %v854 = vpack.c.bf16 %v729, %v729
    %v855 = vpack.c.bf16 %v731, %v731
    %v856 = vpack.c.bf16 %v734, %v734
    %v857 = vpack.c.bf16 %v736, %v736
    %v858 = vpack.c.bf16 %v739, %v739
    %v859 = vpack.c.bf16 %v741, %v741
    %v860 = vpack.c.bf16 %v744, %v744
    %v861 = vpack.c.bf16 %v746, %v746
    %v862 = vpack.c.bf16 %v758, %v758
    %v863 = vpack.c.bf16 %v760, %v760
    %v864 = vpack.c.bf16 %v763, %v763
    %v865 = vpack.c.bf16 %v765, %v765
    %v866 = vpack.c.bf16 %v768, %v768
    %v867 = vpack.c.bf16 %v770, %v770
    %v868 = vpack.c.bf16 %v773, %v773
    %v869 = vpack.c.bf16 %v775, %v775
    %v870 = vpack.c.bf16 %v778, %v778
    %v871 = vpack.c.bf16 %v780, %v780
    %v872 = vpack.c.bf16 %v783, %v783
    %v873 = vpack.c.bf16 %v785, %v785
    %v874 = vpack.c.bf16 %v788, %v788
    %v875 = vpack.c.bf16 %v790, %v790
    %v876 = vpack.c.bf16 %v793, %v793
    %v877 = vpack.c.bf16 %v795, %v795
    %v878 = vpack.c.bf16 %v807, %v807
    %v879 = vpack.c.bf16 %v809, %v809
    %v880 = vpack.c.bf16 %v812, %v812
    %v881 = vpack.c.bf16 %v814, %v814
    %v882 = vpack.c.bf16 %v817, %v817
    %v883 = vpack.c.bf16 %v819, %v819
    %v884 = vpack.c.bf16 %v822, %v822
    %v885 = vpack.c.bf16 %v824, %v824
    %v886 = vpack.c.bf16 %v827, %v827
    %v887 = vpack.c.bf16 %v829, %v829
    %v888 = vpack.c.bf16 %v832, %v832
    %v889 = vpack.c.bf16 %v834, %v834
    %v890 = vpack.c.bf16 %v837, %v837
    %v891 = vpack.c.bf16 %v839, %v839
    %v892 = vpack.c.bf16 %v842, %v842
    %v893 = vpack.c.bf16 %v844, %v844
    %910 = vrot.lane.b32.xlu0 %v846, 96
    %v911 = vpop.permute.xlu0 %910
    %912 = vrot.lane.b32.xlu0 %v847, 96
    %v913 = vpop.permute.xlu0 %912
    %914 = vrot.lane.b32.xlu0 %v848, 96
    %v915 = vpop.permute.xlu0 %914
    %916 = vrot.lane.b32.xlu0 %v849, 96
    %v917 = vpop.permute.xlu0 %916
    %918 = vrot.lane.b32.xlu0 %v850, 96
    %v919 = vpop.permute.xlu0 %918
    %920 = vrot.lane.b32.xlu0 %v851, 96
    %v921 = vpop.permute.xlu0 %920
    %922 = vrot.lane.b32.xlu0 %v852, 96
    %v923 = vpop.permute.xlu0 %922
    %924 = vrot.lane.b32.xlu0 %v853, 96
    %v925 = vpop.permute.xlu0 %924
    %926 = vrot.lane.b32.xlu0 %v854, 96
    %v927 = vpop.permute.xlu0 %926
    %928 = vrot.lane.b32.xlu0 %v855, 96
    %v929 = vpop.permute.xlu0 %928
    %930 = vrot.lane.b32.xlu0 %v856, 96
    %v931 = vpop.permute.xlu0 %930
    %932 = vrot.lane.b32.xlu0 %v857, 96
    %v933 = vpop.permute.xlu0 %932
    %934 = vrot.lane.b32.xlu0 %v858, 96
    %v935 = vpop.permute.xlu0 %934
    %936 = vrot.lane.b32.xlu0 %v859, 96
    %v937 = vpop.permute.xlu0 %936
    %938 = vrot.lane.b32.xlu0 %v860, 96
    %v939 = vpop.permute.xlu0 %938
    %940 = vrot.lane.b32.xlu0 %v861, 96
    %v941 = vpop.permute.xlu0 %940
    %942 = vrot.lane.b32.xlu0 %v846, 64
    %v943 = vpop.permute.xlu0 %942
    %944 = vrot.lane.b32.xlu0 %v847, 64
    %v945 = vpop.permute.xlu0 %944
    %946 = vrot.lane.b32.xlu0 %v848, 64
    %v947 = vpop.permute.xlu0 %946
    %948 = vrot.lane.b32.xlu0 %v849, 64
    %v949 = vpop.permute.xlu0 %948
    %950 = vrot.lane.b32.xlu0 %v850, 64
    %v951 = vpop.permute.xlu0 %950
    %952 = vrot.lane.b32.xlu0 %v851, 64
    %v953 = vpop.permute.xlu0 %952
    %954 = vrot.lane.b32.xlu0 %v852, 64
    %v955 = vpop.permute.xlu0 %954
    %956 = vrot.lane.b32.xlu0 %v853, 64
    %v957 = vpop.permute.xlu0 %956
    %958 = vrot.lane.b32.xlu0 %v854, 64
    %v959 = vpop.permute.xlu0 %958
    %960 = vrot.lane.b32.xlu0 %v855, 64
    %v961 = vpop.permute.xlu0 %960
    %962 = vrot.lane.b32.xlu0 %v856, 64
    %v963 = vpop.permute.xlu0 %962
    %964 = vrot.lane.b32.xlu0 %v857, 64
    %v965 = vpop.permute.xlu0 %964
    %966 = vrot.lane.b32.xlu0 %v858, 64
    %v967 = vpop.permute.xlu0 %966
    %968 = vrot.lane.b32.xlu0 %v859, 64
    %v969 = vpop.permute.xlu0 %968
    %970 = vrot.lane.b32.xlu0 %v860, 64
    %v971 = vpop.permute.xlu0 %970
    %972 = vrot.lane.b32.xlu0 %v861, 64
    %v973 = vpop.permute.xlu0 %972
    %974 = vrot.lane.b32.xlu0 %v846, 32
    %v975 = vpop.permute.xlu0 %974
    %976 = vrot.lane.b32.xlu0 %v847, 32
    %v977 = vpop.permute.xlu0 %976
    %978 = vrot.lane.b32.xlu0 %v848, 32
    %v979 = vpop.permute.xlu0 %978
    %980 = vrot.lane.b32.xlu0 %v849, 32
    %v981 = vpop.permute.xlu0 %980
    %982 = vrot.lane.b32.xlu0 %v850, 32
    %v983 = vpop.permute.xlu0 %982
    %984 = vrot.lane.b32.xlu0 %v851, 32
    %v985 = vpop.permute.xlu0 %984
    %986 = vrot.lane.b32.xlu0 %v852, 32
    %v987 = vpop.permute.xlu0 %986
    %988 = vrot.lane.b32.xlu0 %v853, 32
    %v989 = vpop.permute.xlu0 %988
    %990 = vrot.lane.b32.xlu0 %v854, 32
    %v991 = vpop.permute.xlu0 %990
    %992 = vrot.lane.b32.xlu0 %v855, 32
    %v993 = vpop.permute.xlu0 %992
    %994 = vrot.lane.b32.xlu0 %v856, 32
    %v995 = vpop.permute.xlu0 %994
    %996 = vrot.lane.b32.xlu0 %v857, 32
    %v997 = vpop.permute.xlu0 %996
    %998 = vrot.lane.b32.xlu0 %v858, 32
    %v999 = vpop.permute.xlu0 %998
    %1000 = vrot.lane.b32.xlu0 %v859, 32
    %v1001 = vpop.permute.xlu0 %1000
    %1002 = vrot.lane.b32.xlu0 %v860, 32
    %v1003 = vpop.permute.xlu0 %1002
    %1004 = vrot.lane.b32.xlu0 %v861, 32
    %v1005 = vpop.permute.xlu0 %1004
    %1022 = vrot.lane.b32.xlu0 %v862, 96
    %v1023 = vpop.permute.xlu0 %1022
    %1024 = vrot.lane.b32.xlu0 %v863, 96
    %v1025 = vpop.permute.xlu0 %1024
    %1026 = vrot.lane.b32.xlu0 %v864, 96
    %v1027 = vpop.permute.xlu0 %1026
    %1028 = vrot.lane.b32.xlu0 %v865, 96
    %v1029 = vpop.permute.xlu0 %1028
    %1030 = vrot.lane.b32.xlu0 %v866, 96
    %v1031 = vpop.permute.xlu0 %1030
    %1032 = vrot.lane.b32.xlu0 %v867, 96
    %v1033 = vpop.permute.xlu0 %1032
    %1034 = vrot.lane.b32.xlu0 %v868, 96
    %v1035 = vpop.permute.xlu0 %1034
    %1036 = vrot.lane.b32.xlu0 %v869, 96
    %v1037 = vpop.permute.xlu0 %1036
    %1038 = vrot.lane.b32.xlu0 %v870, 96
    %v1039 = vpop.permute.xlu0 %1038
    %1040 = vrot.lane.b32.xlu0 %v871, 96
    %v1041 = vpop.permute.xlu0 %1040
    %1042 = vrot.lane.b32.xlu0 %v872, 96
    %v1043 = vpop.permute.xlu0 %1042
    %1044 = vrot.lane.b32.xlu0 %v873, 96
    %v1045 = vpop.permute.xlu0 %1044
    %1046 = vrot.lane.b32.xlu0 %v874, 96
    %v1047 = vpop.permute.xlu0 %1046
    %1048 = vrot.lane.b32.xlu0 %v875, 96
    %v1049 = vpop.permute.xlu0 %1048
    %1050 = vrot.lane.b32.xlu0 %v876, 96
    %v1051 = vpop.permute.xlu0 %1050
    %1052 = vrot.lane.b32.xlu0 %v877, 96
    %v1053 = vpop.permute.xlu0 %1052
    %1054 = vrot.lane.b32.xlu0 %v862, 64
    %v1055 = vpop.permute.xlu0 %1054
    %1056 = vrot.lane.b32.xlu0 %v863, 64
    %v1057 = vpop.permute.xlu0 %1056
    %1058 = vrot.lane.b32.xlu0 %v864, 64
    %v1059 = vpop.permute.xlu0 %1058
    %1060 = vrot.lane.b32.xlu0 %v865, 64
    %v1061 = vpop.permute.xlu0 %1060
    %1062 = vrot.lane.b32.xlu0 %v866, 64
    %v1063 = vpop.permute.xlu0 %1062
    %1064 = vrot.lane.b32.xlu0 %v867, 64
    %v1065 = vpop.permute.xlu0 %1064
    %1066 = vrot.lane.b32.xlu0 %v868, 64
    %v1067 = vpop.permute.xlu0 %1066
    %1068 = vrot.lane.b32.xlu0 %v869, 64
    %v1069 = vpop.permute.xlu0 %1068
    %1070 = vrot.lane.b32.xlu0 %v870, 64
    %v1071 = vpop.permute.xlu0 %1070
    %1072 = vrot.lane.b32.xlu0 %v871, 64
    %v1073 = vpop.permute.xlu0 %1072
    %1074 = vrot.lane.b32.xlu0 %v872, 64
    %v1075 = vpop.permute.xlu0 %1074
    %1076 = vrot.lane.b32.xlu0 %v873, 64
    %v1077 = vpop.permute.xlu0 %1076
    %1078 = vrot.lane.b32.xlu0 %v874, 64
    %v1079 = vpop.permute.xlu0 %1078
    %1080 = vrot.lane.b32.xlu0 %v875, 64
    %v1081 = vpop.permute.xlu0 %1080
    %1082 = vrot.lane.b32.xlu0 %v876, 64
    %v1083 = vpop.permute.xlu0 %1082
    %1084 = vrot.lane.b32.xlu0 %v877, 64
    %v1085 = vpop.permute.xlu0 %1084
    %1086 = vrot.lane.b32.xlu0 %v862, 32
    %v1087 = vpop.permute.xlu0 %1086
    %1088 = vrot.lane.b32.xlu0 %v863, 32
    %v1089 = vpop.permute.xlu0 %1088
    %1090 = vrot.lane.b32.xlu0 %v864, 32
    %v1091 = vpop.permute.xlu0 %1090
    %1092 = vrot.lane.b32.xlu0 %v865, 32
    %v1093 = vpop.permute.xlu0 %1092
    %1094 = vrot.lane.b32.xlu0 %v866, 32
    %v1095 = vpop.permute.xlu0 %1094
    %1096 = vrot.lane.b32.xlu0 %v867, 32
    %v1097 = vpop.permute.xlu0 %1096
    %1098 = vrot.lane.b32.xlu0 %v868, 32
    %v1099 = vpop.permute.xlu0 %1098
    %1100 = vrot.lane.b32.xlu0 %v869, 32
    %v1101 = vpop.permute.xlu0 %1100
    %1102 = vrot.lane.b32.xlu0 %v870, 32
    %v1103 = vpop.permute.xlu0 %1102
    %1104 = vrot.lane.b32.xlu0 %v871, 32
    %v1105 = vpop.permute.xlu0 %1104
    %1106 = vrot.lane.b32.xlu0 %v872, 32
    %v1107 = vpop.permute.xlu0 %1106
    %1108 = vrot.lane.b32.xlu0 %v873, 32
    %v1109 = vpop.permute.xlu0 %1108
    %1110 = vrot.lane.b32.xlu0 %v874, 32
    %v1111 = vpop.permute.xlu0 %1110
    %1112 = vrot.lane.b32.xlu0 %v875, 32
    %v1113 = vpop.permute.xlu0 %1112
    %1114 = vrot.lane.b32.xlu0 %v876, 32
    %v1115 = vpop.permute.xlu0 %1114
    %1116 = vrot.lane.b32.xlu0 %v877, 32
    %v1117 = vpop.permute.xlu0 %1116
    %1134 = vrot.lane.b32.xlu0 %v878, 96
    %v1135 = vpop.permute.xlu0 %1134
    %1136 = vrot.lane.b32.xlu0 %v879, 96
    %v1137 = vpop.permute.xlu0 %1136
    %1138 = vrot.lane.b32.xlu0 %v880, 96
    %v1139 = vpop.permute.xlu0 %1138
    %1140 = vrot.lane.b32.xlu0 %v881, 96
    %v1141 = vpop.permute.xlu0 %1140
    %1142 = vrot.lane.b32.xlu0 %v882, 96
    %v1143 = vpop.permute.xlu0 %1142
    %1144 = vrot.lane.b32.xlu0 %v883, 96
    %v1145 = vpop.permute.xlu0 %1144
    %1146 = vrot.lane.b32.xlu0 %v884, 96
    %v1147 = vpop.permute.xlu0 %1146
    %1148 = vrot.lane.b32.xlu0 %v885, 96
    %v1149 = vpop.permute.xlu0 %1148
    %1150 = vrot.lane.b32.xlu0 %v886, 96
    %v1151 = vpop.permute.xlu0 %1150
    %1152 = vrot.lane.b32.xlu0 %v887, 96
    %v1153 = vpop.permute.xlu0 %1152
    %1154 = vrot.lane.b32.xlu0 %v888, 96
    %v1155 = vpop.permute.xlu0 %1154
    %1156 = vrot.lane.b32.xlu0 %v889, 96
    %v1157 = vpop.permute.xlu0 %1156
    %1158 = vrot.lane.b32.xlu0 %v890, 96
    %v1159 = vpop.permute.xlu0 %1158
    %1160 = vrot.lane.b32.xlu0 %v891, 96
    %v1161 = vpop.permute.xlu0 %1160
    %1162 = vrot.lane.b32.xlu0 %v892, 96
    %v1163 = vpop.permute.xlu0 %1162
    %1164 = vrot.lane.b32.xlu0 %v893, 96
    %v1165 = vpop.permute.xlu0 %1164
    %1166 = vrot.lane.b32.xlu0 %v878, 64
    %v1167 = vpop.permute.xlu0 %1166
    %1168 = vrot.lane.b32.xlu0 %v879, 64
    %v1169 = vpop.permute.xlu0 %1168
    %1170 = vrot.lane.b32.xlu0 %v880, 64
    %v1171 = vpop.permute.xlu0 %1170
    %1172 = vrot.lane.b32.xlu0 %v881, 64
    %v1173 = vpop.permute.xlu0 %1172
    %1174 = vrot.lane.b32.xlu0 %v882, 64
    %v1175 = vpop.permute.xlu0 %1174
    %1176 = vrot.lane.b32.xlu0 %v883, 64
    %v1177 = vpop.permute.xlu0 %1176
    %1178 = vrot.lane.b32.xlu0 %v884, 64
    %v1179 = vpop.permute.xlu0 %1178
    %1180 = vrot.lane.b32.xlu0 %v885, 64
    %v1181 = vpop.permute.xlu0 %1180
    %1182 = vrot.lane.b32.xlu0 %v886, 64
    %v1183 = vpop.permute.xlu0 %1182
    %1184 = vrot.lane.b32.xlu0 %v887, 64
    %v1185 = vpop.permute.xlu0 %1184
    %1186 = vrot.lane.b32.xlu0 %v888, 64
    %v1187 = vpop.permute.xlu0 %1186
    %1188 = vrot.lane.b32.xlu0 %v889, 64
    %v1189 = vpop.permute.xlu0 %1188
    %1190 = vrot.lane.b32.xlu0 %v890, 64
    %v1191 = vpop.permute.xlu0 %1190
    %1192 = vrot.lane.b32.xlu0 %v891, 64
    %v1193 = vpop.permute.xlu0 %1192
    %1194 = vrot.lane.b32.xlu0 %v892, 64
    %v1195 = vpop.permute.xlu0 %1194
    %1196 = vrot.lane.b32.xlu0 %v893, 64
    %v1197 = vpop.permute.xlu0 %1196
    %1198 = vrot.lane.b32.xlu0 %v878, 32
    %v1199 = vpop.permute.xlu0 %1198
    %1200 = vrot.lane.b32.xlu0 %v879, 32
    %v1201 = vpop.permute.xlu0 %1200
    %1202 = vrot.lane.b32.xlu0 %v880, 32
    %v1203 = vpop.permute.xlu0 %1202
    %1204 = vrot.lane.b32.xlu0 %v881, 32
    %v1205 = vpop.permute.xlu0 %1204
    %1206 = vrot.lane.b32.xlu0 %v882, 32
    %v1207 = vpop.permute.xlu0 %1206
    %1208 = vrot.lane.b32.xlu0 %v883, 32
    %v1209 = vpop.permute.xlu0 %1208
    %1210 = vrot.lane.b32.xlu0 %v884, 32
    %v1211 = vpop.permute.xlu0 %1210
    %1212 = vrot.lane.b32.xlu0 %v885, 32
    %v1213 = vpop.permute.xlu0 %1212
    %1214 = vrot.lane.b32.xlu0 %v886, 32
    %v1215 = vpop.permute.xlu0 %1214
    %1216 = vrot.lane.b32.xlu0 %v887, 32
    %v1217 = vpop.permute.xlu0 %1216
    %1218 = vrot.lane.b32.xlu0 %v888, 32
    %v1219 = vpop.permute.xlu0 %1218
    %1220 = vrot.lane.b32.xlu0 %v889, 32
    %v1221 = vpop.permute.xlu0 %1220
    %1222 = vrot.lane.b32.xlu0 %v890, 32
    %v1223 = vpop.permute.xlu0 %1222
    %1224 = vrot.lane.b32.xlu0 %v891, 32
    %v1225 = vpop.permute.xlu0 %1224
    %1226 = vrot.lane.b32.xlu0 %v892, 32
    %v1227 = vpop.permute.xlu0 %1226
    %1228 = vrot.lane.b32.xlu0 %v893, 32
    %v1229 = vpop.permute.xlu0 %1228
    %v1230 = vlaneseq
    %v1231 = vshrl.u32 %v1230, 7
    %v1232 = vadd.s32 %v1231, 8
    %v1233 = vadd.s32 %v1231, 16
    %v1234 = vadd.s32 %v1231, 24
    %v1235 = vadd.s32 %v1231, 32
    %v1236 = vadd.s32 %v1231, 40
    %v1237 = vadd.s32 %v1231, 48
    %v1238 = vadd.s32 %v1231, 56
    %v1239 = vlaneseq
    %v1240 = vand.u32 %v1239, 127
    %vm1241 = vcmp.le.s32.totalorder %v1240, %v1231
    %vm1242 = vcmp.le.s32.totalorder %v1240, %v1232
    %vm1243 = vcmp.le.s32.totalorder %v1240, %v1233
    %vm1244 = vcmp.le.s32.totalorder %v1240, %v1234
    %vm1245 = vcmp.le.s32.totalorder %v1240, %v1235
    %vm1246 = vcmp.le.s32.totalorder %v1240, %v1236
    %vm1247 = vcmp.le.s32.totalorder %v1240, %v1237
    %vm1248 = vcmp.le.s32.totalorder %v1240, %v1238
    %v1249 = vunpack.c.l.b16 %v846
    %v1250 = vunpack.c.l.b16 %v847
    %v1251 = vunpack.c.l.b16 %v848
    %v1252 = vunpack.c.l.b16 %v849
    %v1253 = vunpack.c.l.b16 %v850
    %v1254 = vunpack.c.l.b16 %v851
    %v1255 = vunpack.c.l.b16 %v852
    %v1256 = vunpack.c.l.b16 %v853
    %v1257 = vpack.c.b16 %v1250, %v1249
    %v1258 = vpack.c.b16 %v1252, %v1251
    %v1259 = vpack.c.b16 %v1254, %v1253
    %v1260 = vpack.c.b16 %v1256, %v1255
    %v1261 = vunpack.c.l.b16 %v862
    %v1262 = vunpack.c.l.b16 %v863
    %v1263 = vunpack.c.l.b16 %v864
    %v1264 = vunpack.c.l.b16 %v865
    %v1265 = vunpack.c.l.b16 %v866
    %v1266 = vunpack.c.l.b16 %v867
    %v1267 = vunpack.c.l.b16 %v868
    %v1268 = vunpack.c.l.b16 %v869
    %v1269 = vpack.c.b16 %v1262, %v1261
    %v1270 = vpack.c.b16 %v1264, %v1263
    %v1271 = vpack.c.b16 %v1266, %v1265
    %v1272 = vpack.c.b16 %v1268, %v1267
    %vm1273 = vcmask 261120
    %v1275 = vsel %vm1273, %v1257, 0
    %v1278 = vsel %vm1273, %v1258, 0
    %v1281 = vsel %vm1273, %v1259, 0
    %v1284 = vsel %vm1273, %v1260, 0
    %v1287 = vsel %vm1273, %v1269, 0
    %v1290 = vsel %vm1273, %v1270, 0
    %v1293 = vsel %vm1273, %v1271, 0
    %v1296 = vsel %vm1273, %v1272, 0
    %1298 = vmatpush.bf16.xpose.msra.mxu0 0
    %1299 = vmatpush.bf16.xpose.msra.mxu0 0
    %1300 = vmatpush.bf16.xpose.msra.mxu0 0
    %1301 = vmatpush.bf16.xpose.msra.mxu0 0
    %1302 = vmatpush.bf16.xpose.msra.mxu0 %v1296
    %1303 = vmatpush.bf16.xpose.msra.mxu0 %v1293
    %1304 = vmatpush.bf16.xpose.msra.mxu0 %v1290
    %1305 = vmatpush.bf16.xpose.msra.mxu0 %v1287
    %1306 = vmatmul.bf16.gmra.mxu0 %v1275
    %v1307 = vpop.f32.mrf.mxu0
    %v1308 = vadd.f32 0.0, %v1307
    %v1309 = vpop.f32.mrf.mxu0
    %v1310 = vadd.f32 0.0, %v1309
    %1311 = vmatmul.bf16.gmra.mxu0 %v1278
    %v1312 = vpop.f32.mrf.mxu0
    %v1313 = vadd.f32 0.0, %v1312
    %v1314 = vpop.f32.mrf.mxu0
    %v1315 = vadd.f32 0.0, %v1314
    %1316 = vmatmul.bf16.gmra.mxu0 %v1281
    %v1317 = vpop.f32.mrf.mxu0
    %v1318 = vadd.f32 0.0, %v1317
    %v1319 = vpop.f32.mrf.mxu0
    %v1320 = vadd.f32 0.0, %v1319
    %1321 = vmatmul.bf16.gmra.mxu0 %v1284
    %v1322 = vpop.f32.mrf.mxu0
    %v1323 = vadd.f32 0.0, %v1322
    %v1324 = vpop.f32.mrf.mxu0
    %v1325 = vadd.f32 0.0, %v1324
    %1326 = vdwg.mxu0
    %v1327 = vunpack.c.l.b16 %v854
    %v1328 = vunpack.c.l.b16 %v855
    %v1329 = vunpack.c.l.b16 %v856
    %v1330 = vunpack.c.l.b16 %v857
    %v1331 = vunpack.c.l.b16 %v858
    %v1332 = vunpack.c.l.b16 %v859
    %v1333 = vunpack.c.l.b16 %v860
    %v1334 = vunpack.c.l.b16 %v861
    %v1335 = vpack.c.b16 %v1328, %v1327
    %v1336 = vpack.c.b16 %v1330, %v1329
    %v1337 = vpack.c.b16 %v1332, %v1331
    %v1338 = vpack.c.b16 %v1334, %v1333
    %v1339 = vunpack.c.l.b16 %v870
    %v1340 = vunpack.c.l.b16 %v871
    %v1341 = vunpack.c.l.b16 %v872
    %v1342 = vunpack.c.l.b16 %v873
    %v1343 = vunpack.c.l.b16 %v874
    %v1344 = vunpack.c.l.b16 %v875
    %v1345 = vunpack.c.l.b16 %v876
    %v1346 = vunpack.c.l.b16 %v877
    %v1347 = vpack.c.b16 %v1340, %v1339
    %v1348 = vpack.c.b16 %v1342, %v1341
    %v1349 = vpack.c.b16 %v1344, %v1343
    %v1350 = vpack.c.b16 %v1346, %v1345
    %v1352 = vsel %vm1273, %v1335, 0
    %v1355 = vsel %vm1273, %v1336, 0
    %v1358 = vsel %vm1273, %v1337, 0
    %v1361 = vsel %vm1273, %v1338, 0
    %v1364 = vsel %vm1273, %v1347, 0
    %v1367 = vsel %vm1273, %v1348, 0
    %v1370 = vsel %vm1273, %v1349, 0
    %v1373 = vsel %vm1273, %v1350, 0
    %1375 = vmatpush.bf16.xpose.msra.mxu0 0
    %1376 = vmatpush.bf16.xpose.msra.mxu0 0
    %1377 = vmatpush.bf16.xpose.msra.mxu0 0
    %1378 = vmatpush.bf16.xpose.msra.mxu0 0
    %1379 = vmatpush.bf16.xpose.msra.mxu0 %v1373
    %1380 = vmatpush.bf16.xpose.msra.mxu0 %v1370
    %1381 = vmatpush.bf16.xpose.msra.mxu0 %v1367
    %1382 = vmatpush.bf16.xpose.msra.mxu0 %v1364
    %1383 = vmatmul.bf16.gmra.mxu0 %v1352
    %v1384 = vpop.f32.mrf.mxu0
    %v1385 = vadd.f32 0.0, %v1384
    %v1386 = vpop.f32.mrf.mxu0
    %v1387 = vadd.f32 0.0, %v1386
    %1388 = vmatmul.bf16.gmra.mxu0 %v1355
    %v1389 = vpop.f32.mrf.mxu0
    %v1390 = vadd.f32 0.0, %v1389
    %v1391 = vpop.f32.mrf.mxu0
    %v1392 = vadd.f32 0.0, %v1391
    %1393 = vmatmul.bf16.gmra.mxu0 %v1358
    %v1394 = vpop.f32.mrf.mxu0
    %v1395 = vadd.f32 0.0, %v1394
    %v1396 = vpop.f32.mrf.mxu0
    %v1397 = vadd.f32 0.0, %v1396
    %1398 = vmatmul.bf16.gmra.mxu0 %v1361
    %v1399 = vpop.f32.mrf.mxu0
    %v1400 = vadd.f32 0.0, %v1399
    %v1401 = vpop.f32.mrf.mxu0
    %v1402 = vadd.f32 0.0, %v1401
    %1403 = vdwg.mxu0
    %v1404 = vunpack.c.l.b16 %v911
    %v1405 = vunpack.c.l.b16 %v913
    %v1406 = vunpack.c.l.b16 %v915
    %v1407 = vunpack.c.l.b16 %v917
    %v1408 = vunpack.c.l.b16 %v919
    %v1409 = vunpack.c.l.b16 %v921
    %v1410 = vunpack.c.l.b16 %v923
    %v1411 = vunpack.c.l.b16 %v925
    %v1412 = vpack.c.b16 %v1405, %v1404
    %v1413 = vpack.c.b16 %v1407, %v1406
    %v1414 = vpack.c.b16 %v1409, %v1408
    %v1415 = vpack.c.b16 %v1411, %v1410
    %v1416 = vunpack.c.l.b16 %v1023
    %v1417 = vunpack.c.l.b16 %v1025
    %v1418 = vunpack.c.l.b16 %v1027
    %v1419 = vunpack.c.l.b16 %v1029
    %v1420 = vunpack.c.l.b16 %v1031
    %v1421 = vunpack.c.l.b16 %v1033
    %v1422 = vunpack.c.l.b16 %v1035
    %v1423 = vunpack.c.l.b16 %v1037
    %v1424 = vpack.c.b16 %v1417, %v1416
    %v1425 = vpack.c.b16 %v1419, %v1418
    %v1426 = vpack.c.b16 %v1421, %v1420
    %v1427 = vpack.c.b16 %v1423, %v1422
    %v1429 = vsel %vm1273, %v1412, 0
    %v1432 = vsel %vm1273, %v1413, 0
    %v1435 = vsel %vm1273, %v1414, 0
    %v1438 = vsel %vm1273, %v1415, 0
    %v1441 = vsel %vm1273, %v1424, 0
    %v1444 = vsel %vm1273, %v1425, 0
    %v1447 = vsel %vm1273, %v1426, 0
    %v1450 = vsel %vm1273, %v1427, 0
    %1452 = vmatpush.bf16.xpose.msra.mxu0 0
    %1453 = vmatpush.bf16.xpose.msra.mxu0 0
    %1454 = vmatpush.bf16.xpose.msra.mxu0 0
    %1455 = vmatpush.bf16.xpose.msra.mxu0 0
    %1456 = vmatpush.bf16.xpose.msra.mxu0 %v1450
    %1457 = vmatpush.bf16.xpose.msra.mxu0 %v1447
    %1458 = vmatpush.bf16.xpose.msra.mxu0 %v1444
    %1459 = vmatpush.bf16.xpose.msra.mxu0 %v1441
    %1460 = vmatmul.bf16.gmra.mxu0 %v1429
    %v1461 = vpop.f32.mrf.mxu0
    %v1462 = vadd.f32 0.0, %v1461
    %v1463 = vpop.f32.mrf.mxu0
    %v1464 = vadd.f32 0.0, %v1463
    %1465 = vmatmul.bf16.gmra.mxu0 %v1432
    %v1466 = vpop.f32.mrf.mxu0
    %v1467 = vadd.f32 0.0, %v1466
    %v1468 = vpop.f32.mrf.mxu0
    %v1469 = vadd.f32 0.0, %v1468
    %1470 = vmatmul.bf16.gmra.mxu0 %v1435
    %v1471 = vpop.f32.mrf.mxu0
    %v1472 = vadd.f32 0.0, %v1471
    %v1473 = vpop.f32.mrf.mxu0
    %v1474 = vadd.f32 0.0, %v1473
    %1475 = vmatmul.bf16.gmra.mxu0 %v1438
    %v1476 = vpop.f32.mrf.mxu0
    %v1477 = vadd.f32 0.0, %v1476
    %v1478 = vpop.f32.mrf.mxu0
    %v1479 = vadd.f32 0.0, %v1478
    %1480 = vdwg.mxu0
    %v1481 = vunpack.c.l.b16 %v927
    %v1482 = vunpack.c.l.b16 %v929
    %v1483 = vunpack.c.l.b16 %v931
    %v1484 = vunpack.c.l.b16 %v933
    %v1485 = vunpack.c.l.b16 %v935
    %v1486 = vunpack.c.l.b16 %v937
    %v1487 = vunpack.c.l.b16 %v939
    %v1488 = vunpack.c.l.b16 %v941
    %v1489 = vpack.c.b16 %v1482, %v1481
    %v1490 = vpack.c.b16 %v1484, %v1483
    %v1491 = vpack.c.b16 %v1486, %v1485
    %v1492 = vpack.c.b16 %v1488, %v1487
    %v1493 = vunpack.c.l.b16 %v1039
    %v1494 = vunpack.c.l.b16 %v1041
    %v1495 = vunpack.c.l.b16 %v1043
    %v1496 = vunpack.c.l.b16 %v1045
    %v1497 = vunpack.c.l.b16 %v1047
    %v1498 = vunpack.c.l.b16 %v1049
    %v1499 = vunpack.c.l.b16 %v1051
    %v1500 = vunpack.c.l.b16 %v1053
    %v1501 = vpack.c.b16 %v1494, %v1493
    %v1502 = vpack.c.b16 %v1496, %v1495
    %v1503 = vpack.c.b16 %v1498, %v1497
    %v1504 = vpack.c.b16 %v1500, %v1499
    %v1506 = vsel %vm1273, %v1489, 0
    %v1509 = vsel %vm1273, %v1490, 0
    %v1512 = vsel %vm1273, %v1491, 0
    %v1515 = vsel %vm1273, %v1492, 0
    %v1518 = vsel %vm1273, %v1501, 0
    %v1521 = vsel %vm1273, %v1502, 0
    %v1524 = vsel %vm1273, %v1503, 0
    %v1527 = vsel %vm1273, %v1504, 0
    %1529 = vmatpush.bf16.xpose.msra.mxu0 0
    %1530 = vmatpush.bf16.xpose.msra.mxu0 0
    %1531 = vmatpush.bf16.xpose.msra.mxu0 0
    %1532 = vmatpush.bf16.xpose.msra.mxu0 0
    %1533 = vmatpush.bf16.xpose.msra.mxu0 %v1527
    %1534 = vmatpush.bf16.xpose.msra.mxu0 %v1524
    %1535 = vmatpush.bf16.xpose.msra.mxu0 %v1521
    %1536 = vmatpush.bf16.xpose.msra.mxu0 %v1518
    %1537 = vmatmul.bf16.gmra.mxu0 %v1506
    %v1538 = vpop.f32.mrf.mxu0
    %v1539 = vadd.f32 0.0, %v1538
    %v1540 = vpop.f32.mrf.mxu0
    %v1541 = vadd.f32 0.0, %v1540
    %1542 = vmatmul.bf16.gmra.mxu0 %v1509
    %v1543 = vpop.f32.mrf.mxu0
    %v1544 = vadd.f32 0.0, %v1543
    %v1545 = vpop.f32.mrf.mxu0
    %v1546 = vadd.f32 0.0, %v1545
    %1547 = vmatmul.bf16.gmra.mxu0 %v1512
    %v1548 = vpop.f32.mrf.mxu0
    %v1549 = vadd.f32 0.0, %v1548
    %v1550 = vpop.f32.mrf.mxu0
    %v1551 = vadd.f32 0.0, %v1550
    %1552 = vmatmul.bf16.gmra.mxu0 %v1515
    %v1553 = vpop.f32.mrf.mxu0
    %v1554 = vadd.f32 0.0, %v1553
    %v1555 = vpop.f32.mrf.mxu0
    %v1556 = vadd.f32 0.0, %v1555
    %1557 = vdwg.mxu0
    %v1558 = vunpack.c.l.b16 %v943
    %v1559 = vunpack.c.l.b16 %v945
    %v1560 = vunpack.c.l.b16 %v947
    %v1561 = vunpack.c.l.b16 %v949
    %v1562 = vunpack.c.l.b16 %v951
    %v1563 = vunpack.c.l.b16 %v953
    %v1564 = vunpack.c.l.b16 %v955
    %v1565 = vunpack.c.l.b16 %v957
    %v1566 = vpack.c.b16 %v1559, %v1558
    %v1567 = vpack.c.b16 %v1561, %v1560
    %v1568 = vpack.c.b16 %v1563, %v1562
    %v1569 = vpack.c.b16 %v1565, %v1564
    %v1570 = vunpack.c.l.b16 %v1055
    %v1571 = vunpack.c.l.b16 %v1057
    %v1572 = vunpack.c.l.b16 %v1059
    %v1573 = vunpack.c.l.b16 %v1061
    %v1574 = vunpack.c.l.b16 %v1063
    %v1575 = vunpack.c.l.b16 %v1065
    %v1576 = vunpack.c.l.b16 %v1067
    %v1577 = vunpack.c.l.b16 %v1069
    %v1578 = vpack.c.b16 %v1571, %v1570
    %v1579 = vpack.c.b16 %v1573, %v1572
    %v1580 = vpack.c.b16 %v1575, %v1574
    %v1581 = vpack.c.b16 %v1577, %v1576
    %v1583 = vsel %vm1273, %v1566, 0
    %v1586 = vsel %vm1273, %v1567, 0
    %v1589 = vsel %vm1273, %v1568, 0
    %v1592 = vsel %vm1273, %v1569, 0
    %v1595 = vsel %vm1273, %v1578, 0
    %v1598 = vsel %vm1273, %v1579, 0
    %v1601 = vsel %vm1273, %v1580, 0
    %v1604 = vsel %vm1273, %v1581, 0
    %1606 = vmatpush.bf16.xpose.msra.mxu0 0
    %1607 = vmatpush.bf16.xpose.msra.mxu0 0
    %1608 = vmatpush.bf16.xpose.msra.mxu0 0
    %1609 = vmatpush.bf16.xpose.msra.mxu0 0
    %1610 = vmatpush.bf16.xpose.msra.mxu0 %v1604
    %1611 = vmatpush.bf16.xpose.msra.mxu0 %v1601
    %1612 = vmatpush.bf16.xpose.msra.mxu0 %v1598
    %1613 = vmatpush.bf16.xpose.msra.mxu0 %v1595
    %1614 = vmatmul.bf16.gmra.mxu0 %v1583
    %v1615 = vpop.f32.mrf.mxu0
    %v1616 = vadd.f32 0.0, %v1615
    %v1617 = vpop.f32.mrf.mxu0
    %v1618 = vadd.f32 0.0, %v1617
    %1619 = vmatmul.bf16.gmra.mxu0 %v1586
    %v1620 = vpop.f32.mrf.mxu0
    %v1621 = vadd.f32 0.0, %v1620
    %v1622 = vpop.f32.mrf.mxu0
    %v1623 = vadd.f32 0.0, %v1622
    %1624 = vmatmul.bf16.gmra.mxu0 %v1589
    %v1625 = vpop.f32.mrf.mxu0
    %v1626 = vadd.f32 0.0, %v1625
    %v1627 = vpop.f32.mrf.mxu0
    %v1628 = vadd.f32 0.0, %v1627
    %1629 = vmatmul.bf16.gmra.mxu0 %v1592
    %v1630 = vpop.f32.mrf.mxu0
    %v1631 = vadd.f32 0.0, %v1630
    %v1632 = vpop.f32.mrf.mxu0
    %v1633 = vadd.f32 0.0, %v1632
    %1634 = vdwg.mxu0
    %v1635 = vunpack.c.l.b16 %v959
    %v1636 = vunpack.c.l.b16 %v961
    %v1637 = vunpack.c.l.b16 %v963
    %v1638 = vunpack.c.l.b16 %v965
    %v1639 = vunpack.c.l.b16 %v967
    %v1640 = vunpack.c.l.b16 %v969
    %v1641 = vunpack.c.l.b16 %v971
    %v1642 = vunpack.c.l.b16 %v973
    %v1643 = vpack.c.b16 %v1636, %v1635
    %v1644 = vpack.c.b16 %v1638, %v1637
    %v1645 = vpack.c.b16 %v1640, %v1639
    %v1646 = vpack.c.b16 %v1642, %v1641
    %v1647 = vunpack.c.l.b16 %v1071
    %v1648 = vunpack.c.l.b16 %v1073
    %v1649 = vunpack.c.l.b16 %v1075
    %v1650 = vunpack.c.l.b16 %v1077
    %v1651 = vunpack.c.l.b16 %v1079
    %v1652 = vunpack.c.l.b16 %v1081
    %v1653 = vunpack.c.l.b16 %v1083
    %v1654 = vunpack.c.l.b16 %v1085
    %v1655 = vpack.c.b16 %v1648, %v1647
    %v1656 = vpack.c.b16 %v1650, %v1649
    %v1657 = vpack.c.b16 %v1652, %v1651
    %v1658 = vpack.c.b16 %v1654, %v1653
    %v1660 = vsel %vm1273, %v1643, 0
    %v1663 = vsel %vm1273, %v1644, 0
    %v1666 = vsel %vm1273, %v1645, 0
    %v1669 = vsel %vm1273, %v1646, 0
    %v1672 = vsel %vm1273, %v1655, 0
    %v1675 = vsel %vm1273, %v1656, 0
    %v1678 = vsel %vm1273, %v1657, 0
    %v1681 = vsel %vm1273, %v1658, 0
    %1683 = vmatpush.bf16.xpose.msra.mxu0 0
    %1684 = vmatpush.bf16.xpose.msra.mxu0 0
    %1685 = vmatpush.bf16.xpose.msra.mxu0 0
    %1686 = vmatpush.bf16.xpose.msra.mxu0 0
    %1687 = vmatpush.bf16.xpose.msra.mxu0 %v1681
    %1688 = vmatpush.bf16.xpose.msra.mxu0 %v1678
    %1689 = vmatpush.bf16.xpose.msra.mxu0 %v1675
    %1690 = vmatpush.bf16.xpose.msra.mxu0 %v1672
    %1691 = vmatmul.bf16.gmra.mxu0 %v1660
    %v1692 = vpop.f32.mrf.mxu0
    %v1693 = vadd.f32 0.0, %v1692
    %v1694 = vpop.f32.mrf.mxu0
    %v1695 = vadd.f32 0.0, %v1694
    %1696 = vmatmul.bf16.gmra.mxu0 %v1663
    %v1697 = vpop.f32.mrf.mxu0
    %v1698 = vadd.f32 0.0, %v1697
    %v1699 = vpop.f32.mrf.mxu0
    %v1700 = vadd.f32 0.0, %v1699
    %1701 = vmatmul.bf16.gmra.mxu0 %v1666
    %v1702 = vpop.f32.mrf.mxu0
    %v1703 = vadd.f32 0.0, %v1702
    %v1704 = vpop.f32.mrf.mxu0
    %v1705 = vadd.f32 0.0, %v1704
    %1706 = vmatmul.bf16.gmra.mxu0 %v1669
    %v1707 = vpop.f32.mrf.mxu0
    %v1708 = vadd.f32 0.0, %v1707
    %v1709 = vpop.f32.mrf.mxu0
    %v1710 = vadd.f32 0.0, %v1709
    %1711 = vdwg.mxu0
    %v1712 = vunpack.c.l.b16 %v975
    %v1713 = vunpack.c.l.b16 %v977
    %v1714 = vunpack.c.l.b16 %v979
    %v1715 = vunpack.c.l.b16 %v981
    %v1716 = vunpack.c.l.b16 %v983
    %v1717 = vunpack.c.l.b16 %v985
    %v1718 = vunpack.c.l.b16 %v987
    %v1719 = vunpack.c.l.b16 %v989
    %v1720 = vpack.c.b16 %v1713, %v1712
    %v1721 = vpack.c.b16 %v1715, %v1714
    %v1722 = vpack.c.b16 %v1717, %v1716
    %v1723 = vpack.c.b16 %v1719, %v1718
    %v1724 = vunpack.c.l.b16 %v1087
    %v1725 = vunpack.c.l.b16 %v1089
    %v1726 = vunpack.c.l.b16 %v1091
    %v1727 = vunpack.c.l.b16 %v1093
    %v1728 = vunpack.c.l.b16 %v1095
    %v1729 = vunpack.c.l.b16 %v1097
    %v1730 = vunpack.c.l.b16 %v1099
    %v1731 = vunpack.c.l.b16 %v1101
    %v1732 = vpack.c.b16 %v1725, %v1724
    %v1733 = vpack.c.b16 %v1727, %v1726
    %v1734 = vpack.c.b16 %v1729, %v1728
    %v1735 = vpack.c.b16 %v1731, %v1730
    %v1737 = vsel %vm1273, %v1720, 0
    %v1740 = vsel %vm1273, %v1721, 0
    %v1743 = vsel %vm1273, %v1722, 0
    %v1746 = vsel %vm1273, %v1723, 0
    %v1749 = vsel %vm1273, %v1732, 0
    %v1752 = vsel %vm1273, %v1733, 0
    %v1755 = vsel %vm1273, %v1734, 0
    %v1758 = vsel %vm1273, %v1735, 0
    %1760 = vmatpush.bf16.xpose.msra.mxu0 0
    %1761 = vmatpush.bf16.xpose.msra.mxu0 0
    %1762 = vmatpush.bf16.xpose.msra.mxu0 0
    %1763 = vmatpush.bf16.xpose.msra.mxu0 0
    %1764 = vmatpush.bf16.xpose.msra.mxu0 %v1758
    %1765 = vmatpush.bf16.xpose.msra.mxu0 %v1755
    %1766 = vmatpush.bf16.xpose.msra.mxu0 %v1752
    %1767 = vmatpush.bf16.xpose.msra.mxu0 %v1749
    %1768 = vmatmul.bf16.gmra.mxu0 %v1737
    %v1769 = vpop.f32.mrf.mxu0
    %v1770 = vadd.f32 0.0, %v1769
    %v1771 = vpop.f32.mrf.mxu0
    %v1772 = vadd.f32 0.0, %v1771
    %1773 = vmatmul.bf16.gmra.mxu0 %v1740
    %v1774 = vpop.f32.mrf.mxu0
    %v1775 = vadd.f32 0.0, %v1774
    %v1776 = vpop.f32.mrf.mxu0
    %v1777 = vadd.f32 0.0, %v1776
    %1778 = vmatmul.bf16.gmra.mxu0 %v1743
    %v1779 = vpop.f32.mrf.mxu0
    %v1780 = vadd.f32 0.0, %v1779
    %v1781 = vpop.f32.mrf.mxu0
    %v1782 = vadd.f32 0.0, %v1781
    %1783 = vmatmul.bf16.gmra.mxu0 %v1746
    %v1784 = vpop.f32.mrf.mxu0
    %v1785 = vadd.f32 0.0, %v1784
    %v1786 = vpop.f32.mrf.mxu0
    %v1787 = vadd.f32 0.0, %v1786
    %1788 = vdwg.mxu0
    %v1789 = vunpack.c.l.b16 %v991
    %v1790 = vunpack.c.l.b16 %v993
    %v1791 = vunpack.c.l.b16 %v995
    %v1792 = vunpack.c.l.b16 %v997
    %v1793 = vunpack.c.l.b16 %v999
    %v1794 = vunpack.c.l.b16 %v1001
    %v1795 = vunpack.c.l.b16 %v1003
    %v1796 = vunpack.c.l.b16 %v1005
    %v1797 = vpack.c.b16 %v1790, %v1789
    %v1798 = vpack.c.b16 %v1792, %v1791
    %v1799 = vpack.c.b16 %v1794, %v1793
    %v1800 = vpack.c.b16 %v1796, %v1795
    %v1801 = vunpack.c.l.b16 %v1103
    %v1802 = vunpack.c.l.b16 %v1105
    %v1803 = vunpack.c.l.b16 %v1107
    %v1804 = vunpack.c.l.b16 %v1109
    %v1805 = vunpack.c.l.b16 %v1111
    %v1806 = vunpack.c.l.b16 %v1113
    %v1807 = vunpack.c.l.b16 %v1115
    %v1808 = vunpack.c.l.b16 %v1117
    %v1809 = vpack.c.b16 %v1802, %v1801
    %v1810 = vpack.c.b16 %v1804, %v1803
    %v1811 = vpack.c.b16 %v1806, %v1805
    %v1812 = vpack.c.b16 %v1808, %v1807
    %v1814 = vsel %vm1273, %v1797, 0
    %v1817 = vsel %vm1273, %v1798, 0
    %v1820 = vsel %vm1273, %v1799, 0
    %v1823 = vsel %vm1273, %v1800, 0
    %v1826 = vsel %vm1273, %v1809, 0
    %v1829 = vsel %vm1273, %v1810, 0
    %v1832 = vsel %vm1273, %v1811, 0
    %v1835 = vsel %vm1273, %v1812, 0
    %1837 = vmatpush.bf16.xpose.msra.mxu0 0
    %1838 = vmatpush.bf16.xpose.msra.mxu0 0
    %1839 = vmatpush.bf16.xpose.msra.mxu0 0
    %1840 = vmatpush.bf16.xpose.msra.mxu0 0
    %1841 = vmatpush.bf16.xpose.msra.mxu0 %v1835
    %1842 = vmatpush.bf16.xpose.msra.mxu0 %v1832
    %1843 = vmatpush.bf16.xpose.msra.mxu0 %v1829
    %1844 = vmatpush.bf16.xpose.msra.mxu0 %v1826
    %1845 = vmatmul.bf16.gmra.mxu0 %v1814
    %v1846 = vpop.f32.mrf.mxu0
    %v1847 = vadd.f32 0.0, %v1846
    %v1848 = vpop.f32.mrf.mxu0
    %v1849 = vadd.f32 0.0, %v1848
    %1850 = vmatmul.bf16.gmra.mxu0 %v1817
    %v1851 = vpop.f32.mrf.mxu0
    %v1852 = vadd.f32 0.0, %v1851
    %v1853 = vpop.f32.mrf.mxu0
    %v1854 = vadd.f32 0.0, %v1853
    %1855 = vmatmul.bf16.gmra.mxu0 %v1820
    %v1856 = vpop.f32.mrf.mxu0
    %v1857 = vadd.f32 0.0, %v1856
    %v1858 = vpop.f32.mrf.mxu0
    %v1859 = vadd.f32 0.0, %v1858
    %1860 = vmatmul.bf16.gmra.mxu0 %v1823
    %v1861 = vpop.f32.mrf.mxu0
    %v1862 = vadd.f32 0.0, %v1861
    %v1863 = vpop.f32.mrf.mxu0
    %v1864 = vadd.f32 0.0, %v1863
    %1865 = vdwg.mxu0
    %v1866 = vsel %vm1241, 1, 0
    %v1867 = vsel %vm1242, 1, 0
    %v1868 = vsel %vm1243, 1, 0
    %v1869 = vsel %vm1244, 1, 0
    %v1870 = vsel %vm1245, 1, 0
    %v1871 = vsel %vm1246, 1, 0
    %v1872 = vsel %vm1247, 1, 0
    %v1873 = vsel %vm1248, 1, 0
    %vm1874 = vcmp.eq.s32.totalorder %v1866, 1
    %vm1875 = vcmp.eq.s32.totalorder %v1867, 1
    %vm1876 = vcmp.eq.s32.totalorder %v1868, 1
    %vm1877 = vcmp.eq.s32.totalorder %v1869, 1
    %vm1878 = vcmp.eq.s32.totalorder %v1870, 1
    %vm1879 = vcmp.eq.s32.totalorder %v1871, 1
    %vm1880 = vcmp.eq.s32.totalorder %v1872, 1
    %vm1881 = vcmp.eq.s32.totalorder %v1873, 1
    %v1882 = vsel %vm1874, %v1308, -1e+30
    %v1883 = vsel %vm1875, %v1310, -1e+30
    %v1884 = vsel %vm1876, %v1313, -1e+30
    %v1885 = vsel %vm1877, %v1315, -1e+30
    %v1886 = vsel %vm1878, %v1318, -1e+30
    %v1887 = vsel %vm1879, %v1320, -1e+30
    %v1888 = vsel %vm1880, %v1323, -1e+30
    %v1889 = vsel %vm1881, %v1325, -1e+30
    %v1890 = vsel %vm1874, %v1385, -1e+30
    %v1891 = vsel %vm1875, %v1387, -1e+30
    %v1892 = vsel %vm1876, %v1390, -1e+30
    %v1893 = vsel %vm1877, %v1392, -1e+30
    %v1894 = vsel %vm1878, %v1395, -1e+30
    %v1895 = vsel %vm1879, %v1397, -1e+30
    %v1896 = vsel %vm1880, %v1400, -1e+30
    %v1897 = vsel %vm1881, %v1402, -1e+30
    %v1898 = vsel %vm1874, %v1462, -1e+30
    %v1899 = vsel %vm1875, %v1464, -1e+30
    %v1900 = vsel %vm1876, %v1467, -1e+30
    %v1901 = vsel %vm1877, %v1469, -1e+30
    %v1902 = vsel %vm1878, %v1472, -1e+30
    %v1903 = vsel %vm1879, %v1474, -1e+30
    %v1904 = vsel %vm1880, %v1477, -1e+30
    %v1905 = vsel %vm1881, %v1479, -1e+30
    %v1906 = vsel %vm1874, %v1539, -1e+30
    %v1907 = vsel %vm1875, %v1541, -1e+30
    %v1908 = vsel %vm1876, %v1544, -1e+30
    %v1909 = vsel %vm1877, %v1546, -1e+30
    %v1910 = vsel %vm1878, %v1549, -1e+30
    %v1911 = vsel %vm1879, %v1551, -1e+30
    %v1912 = vsel %vm1880, %v1554, -1e+30
    %v1913 = vsel %vm1881, %v1556, -1e+30
    %v1914 = vsel %vm1874, %v1616, -1e+30
    %v1915 = vsel %vm1875, %v1618, -1e+30
    %v1916 = vsel %vm1876, %v1621, -1e+30
    %v1917 = vsel %vm1877, %v1623, -1e+30
    %v1918 = vsel %vm1878, %v1626, -1e+30
    %v1919 = vsel %vm1879, %v1628, -1e+30
    %v1920 = vsel %vm1880, %v1631, -1e+30
    %v1921 = vsel %vm1881, %v1633, -1e+30
    %v1922 = vsel %vm1874, %v1693, -1e+30
    %v1923 = vsel %vm1875, %v1695, -1e+30
    %v1924 = vsel %vm1876, %v1698, -1e+30
    %v1925 = vsel %vm1877, %v1700, -1e+30
    %v1926 = vsel %vm1878, %v1703, -1e+30
    %v1927 = vsel %vm1879, %v1705, -1e+30
    %v1928 = vsel %vm1880, %v1708, -1e+30
    %v1929 = vsel %vm1881, %v1710, -1e+30
    %v1930 = vsel %vm1874, %v1770, -1e+30
    %v1931 = vsel %vm1875, %v1772, -1e+30
    %v1932 = vsel %vm1876, %v1775, -1e+30
    %v1933 = vsel %vm1877, %v1777, -1e+30
    %v1934 = vsel %vm1878, %v1780, -1e+30
    %v1935 = vsel %vm1879, %v1782, -1e+30
    %v1936 = vsel %vm1880, %v1785, -1e+30
    %v1937 = vsel %vm1881, %v1787, -1e+30
    %v1938 = vsel %vm1874, %v1847, -1e+30
    %v1939 = vsel %vm1875, %v1849, -1e+30
    %v1940 = vsel %vm1876, %v1852, -1e+30
    %v1941 = vsel %vm1877, %v1854, -1e+30
    %v1942 = vsel %vm1878, %v1857, -1e+30
    %v1943 = vsel %vm1879, %v1859, -1e+30
    %v1944 = vsel %vm1880, %v1862, -1e+30
    %v1945 = vsel %vm1881, %v1864, -1e+30
    %vm1946 = vcmask 523264
    %v1947 = vsel %vm1946, %v1882, -inf
    %1948 = vmax.xlane.f32.xlu0 %v1947
    %v1949 = vpop.xlane.xlu0 %1948
    %v1950 = vsel %vm1946, %v1883, -inf
    %1951 = vmax.xlane.f32.xlu0 %v1950
    %v1952 = vpop.xlane.xlu0 %1951
    %v1953 = vsel %vm1946, %v1884, -inf
    %1954 = vmax.xlane.f32.xlu0 %v1953
    %v1955 = vpop.xlane.xlu0 %1954
    %v1956 = vsel %vm1946, %v1885, -inf
    %1957 = vmax.xlane.f32.xlu0 %v1956
    %v1958 = vpop.xlane.xlu0 %1957
    %v1959 = vsel %vm1946, %v1886, -inf
    %1960 = vmax.xlane.f32.xlu0 %v1959
    %v1961 = vpop.xlane.xlu0 %1960
    %v1962 = vsel %vm1946, %v1887, -inf
    %1963 = vmax.xlane.f32.xlu0 %v1962
    %v1964 = vpop.xlane.xlu0 %1963
    %v1965 = vsel %vm1946, %v1888, -inf
    %1966 = vmax.xlane.f32.xlu0 %v1965
    %v1967 = vpop.xlane.xlu0 %1966
    %v1968 = vsel %vm1946, %v1889, -inf
    %1969 = vmax.xlane.f32.xlu0 %v1968
    %v1970 = vpop.xlane.xlu0 %1969
    %v1971 = vsel %vm1946, %v1890, -inf
    %1972 = vmax.xlane.f32.xlu0 %v1971
    %v1973 = vpop.xlane.xlu0 %1972
    %v1974 = vsel %vm1946, %v1891, -inf
    %1975 = vmax.xlane.f32.xlu0 %v1974
    %v1976 = vpop.xlane.xlu0 %1975
    %v1977 = vsel %vm1946, %v1892, -inf
    %1978 = vmax.xlane.f32.xlu0 %v1977
    %v1979 = vpop.xlane.xlu0 %1978
    %v1980 = vsel %vm1946, %v1893, -inf
    %1981 = vmax.xlane.f32.xlu0 %v1980
    %v1982 = vpop.xlane.xlu0 %1981
    %v1983 = vsel %vm1946, %v1894, -inf
    %1984 = vmax.xlane.f32.xlu0 %v1983
    %v1985 = vpop.xlane.xlu0 %1984
    %v1986 = vsel %vm1946, %v1895, -inf
    %1987 = vmax.xlane.f32.xlu0 %v1986
    %v1988 = vpop.xlane.xlu0 %1987
    %v1989 = vsel %vm1946, %v1896, -inf
    %1990 = vmax.xlane.f32.xlu0 %v1989
    %v1991 = vpop.xlane.xlu0 %1990
    %v1992 = vsel %vm1946, %v1897, -inf
    %1993 = vmax.xlane.f32.xlu0 %v1992
    %v1994 = vpop.xlane.xlu0 %1993
    %v1995 = vsel %vm1946, %v1898, -inf
    %1996 = vmax.xlane.f32.xlu0 %v1995
    %v1997 = vpop.xlane.xlu0 %1996
    %v1998 = vsel %vm1946, %v1899, -inf
    %1999 = vmax.xlane.f32.xlu0 %v1998
    %v2000 = vpop.xlane.xlu0 %1999
    %v2001 = vsel %vm1946, %v1900, -inf
    %2002 = vmax.xlane.f32.xlu0 %v2001
    %v2003 = vpop.xlane.xlu0 %2002
    %v2004 = vsel %vm1946, %v1901, -inf
    %2005 = vmax.xlane.f32.xlu0 %v2004
    %v2006 = vpop.xlane.xlu0 %2005
    %v2007 = vsel %vm1946, %v1902, -inf
    %2008 = vmax.xlane.f32.xlu0 %v2007
    %v2009 = vpop.xlane.xlu0 %2008
    %v2010 = vsel %vm1946, %v1903, -inf
    %2011 = vmax.xlane.f32.xlu0 %v2010
    %v2012 = vpop.xlane.xlu0 %2011
    %v2013 = vsel %vm1946, %v1904, -inf
    %2014 = vmax.xlane.f32.xlu0 %v2013
    %v2015 = vpop.xlane.xlu0 %2014
    %v2016 = vsel %vm1946, %v1905, -inf
    %2017 = vmax.xlane.f32.xlu0 %v2016
    %v2018 = vpop.xlane.xlu0 %2017
    %v2019 = vsel %vm1946, %v1906, -inf
    %2020 = vmax.xlane.f32.xlu0 %v2019
    %v2021 = vpop.xlane.xlu0 %2020
    %v2022 = vsel %vm1946, %v1907, -inf
    %2023 = vmax.xlane.f32.xlu0 %v2022
    %v2024 = vpop.xlane.xlu0 %2023
    %v2025 = vsel %vm1946, %v1908, -inf
    %2026 = vmax.xlane.f32.xlu0 %v2025
    %v2027 = vpop.xlane.xlu0 %2026
    %v2028 = vsel %vm1946, %v1909, -inf
    %2029 = vmax.xlane.f32.xlu0 %v2028
    %v2030 = vpop.xlane.xlu0 %2029
    %v2031 = vsel %vm1946, %v1910, -inf
    %2032 = vmax.xlane.f32.xlu0 %v2031
    %v2033 = vpop.xlane.xlu0 %2032
    %v2034 = vsel %vm1946, %v1911, -inf
    %2035 = vmax.xlane.f32.xlu0 %v2034
    %v2036 = vpop.xlane.xlu0 %2035
    %v2037 = vsel %vm1946, %v1912, -inf
    %2038 = vmax.xlane.f32.xlu0 %v2037
    %v2039 = vpop.xlane.xlu0 %2038
    %v2040 = vsel %vm1946, %v1913, -inf
    %2041 = vmax.xlane.f32.xlu0 %v2040
    %v2042 = vpop.xlane.xlu0 %2041
    %v2043 = vsel %vm1946, %v1914, -inf
    %2044 = vmax.xlane.f32.xlu0 %v2043
    %v2045 = vpop.xlane.xlu0 %2044
    %v2046 = vsel %vm1946, %v1915, -inf
    %2047 = vmax.xlane.f32.xlu0 %v2046
    %v2048 = vpop.xlane.xlu0 %2047
    %v2049 = vsel %vm1946, %v1916, -inf
    %2050 = vmax.xlane.f32.xlu0 %v2049
    %v2051 = vpop.xlane.xlu0 %2050
    %v2052 = vsel %vm1946, %v1917, -inf
    %2053 = vmax.xlane.f32.xlu0 %v2052
    %v2054 = vpop.xlane.xlu0 %2053
    %v2055 = vsel %vm1946, %v1918, -inf
    %2056 = vmax.xlane.f32.xlu0 %v2055
    %v2057 = vpop.xlane.xlu0 %2056
    %v2058 = vsel %vm1946, %v1919, -inf
    %2059 = vmax.xlane.f32.xlu0 %v2058
    %v2060 = vpop.xlane.xlu0 %2059
    %v2061 = vsel %vm1946, %v1920, -inf
    %2062 = vmax.xlane.f32.xlu0 %v2061
    %v2063 = vpop.xlane.xlu0 %2062
    %v2064 = vsel %vm1946, %v1921, -inf
    %2065 = vmax.xlane.f32.xlu0 %v2064
    %v2066 = vpop.xlane.xlu0 %2065
    %v2067 = vsel %vm1946, %v1922, -inf
    %2068 = vmax.xlane.f32.xlu0 %v2067
    %v2069 = vpop.xlane.xlu0 %2068
    %v2070 = vsel %vm1946, %v1923, -inf
    %2071 = vmax.xlane.f32.xlu0 %v2070
    %v2072 = vpop.xlane.xlu0 %2071
    %v2073 = vsel %vm1946, %v1924, -inf
    %2074 = vmax.xlane.f32.xlu0 %v2073
    %v2075 = vpop.xlane.xlu0 %2074
    %v2076 = vsel %vm1946, %v1925, -inf
    %2077 = vmax.xlane.f32.xlu0 %v2076
    %v2078 = vpop.xlane.xlu0 %2077
    %v2079 = vsel %vm1946, %v1926, -inf
    %2080 = vmax.xlane.f32.xlu0 %v2079
    %v2081 = vpop.xlane.xlu0 %2080
    %v2082 = vsel %vm1946, %v1927, -inf
    %2083 = vmax.xlane.f32.xlu0 %v2082
    %v2084 = vpop.xlane.xlu0 %2083
    %v2085 = vsel %vm1946, %v1928, -inf
    %2086 = vmax.xlane.f32.xlu0 %v2085
    %v2087 = vpop.xlane.xlu0 %2086
    %v2088 = vsel %vm1946, %v1929, -inf
    %2089 = vmax.xlane.f32.xlu0 %v2088
    %v2090 = vpop.xlane.xlu0 %2089
    %v2091 = vsel %vm1946, %v1930, -inf
    %2092 = vmax.xlane.f32.xlu0 %v2091
    %v2093 = vpop.xlane.xlu0 %2092
    %v2094 = vsel %vm1946, %v1931, -inf
    %2095 = vmax.xlane.f32.xlu0 %v2094
    %v2096 = vpop.xlane.xlu0 %2095
    %v2097 = vsel %vm1946, %v1932, -inf
    %2098 = vmax.xlane.f32.xlu0 %v2097
    %v2099 = vpop.xlane.xlu0 %2098
    %v2100 = vsel %vm1946, %v1933, -inf
    %2101 = vmax.xlane.f32.xlu0 %v2100
    %v2102 = vpop.xlane.xlu0 %2101
    %v2103 = vsel %vm1946, %v1934, -inf
    %2104 = vmax.xlane.f32.xlu0 %v2103
    %v2105 = vpop.xlane.xlu0 %2104
    %v2106 = vsel %vm1946, %v1935, -inf
    %2107 = vmax.xlane.f32.xlu0 %v2106
    %v2108 = vpop.xlane.xlu0 %2107
    %v2109 = vsel %vm1946, %v1936, -inf
    %2110 = vmax.xlane.f32.xlu0 %v2109
    %v2111 = vpop.xlane.xlu0 %2110
    %v2112 = vsel %vm1946, %v1937, -inf
    %2113 = vmax.xlane.f32.xlu0 %v2112
    %v2114 = vpop.xlane.xlu0 %2113
    %v2115 = vsel %vm1946, %v1938, -inf
    %2116 = vmax.xlane.f32.xlu0 %v2115
    %v2117 = vpop.xlane.xlu0 %2116
    %v2118 = vsel %vm1946, %v1939, -inf
    %2119 = vmax.xlane.f32.xlu0 %v2118
    %v2120 = vpop.xlane.xlu0 %2119
    %v2121 = vsel %vm1946, %v1940, -inf
    %2122 = vmax.xlane.f32.xlu0 %v2121
    %v2123 = vpop.xlane.xlu0 %2122
    %v2124 = vsel %vm1946, %v1941, -inf
    %2125 = vmax.xlane.f32.xlu0 %v2124
    %v2126 = vpop.xlane.xlu0 %2125
    %v2127 = vsel %vm1946, %v1942, -inf
    %2128 = vmax.xlane.f32.xlu0 %v2127
    %v2129 = vpop.xlane.xlu0 %2128
    %v2130 = vsel %vm1946, %v1943, -inf
    %2131 = vmax.xlane.f32.xlu0 %v2130
    %v2132 = vpop.xlane.xlu0 %2131
    %v2133 = vsel %vm1946, %v1944, -inf
    %2134 = vmax.xlane.f32.xlu0 %v2133
    %v2135 = vpop.xlane.xlu0 %2134
    %v2136 = vsel %vm1946, %v1945, -inf
    %2137 = vmax.xlane.f32.xlu0 %v2136
    %v2138 = vpop.xlane.xlu0 %2137
    %v2139 = vsub.f32 %v1882, %v1949
    %v2140 = vsub.f32 %v1883, %v1952
    %v2141 = vsub.f32 %v1884, %v1955
    %v2142 = vsub.f32 %v1885, %v1958
    %v2143 = vsub.f32 %v1886, %v1961
    %v2144 = vsub.f32 %v1887, %v1964
    %v2145 = vsub.f32 %v1888, %v1967
    %v2146 = vsub.f32 %v1889, %v1970
    %v2147 = vsub.f32 %v1890, %v1973
    %v2148 = vsub.f32 %v1891, %v1976
    %v2149 = vsub.f32 %v1892, %v1979
    %v2150 = vsub.f32 %v1893, %v1982
    %v2151 = vsub.f32 %v1894, %v1985
    %v2152 = vsub.f32 %v1895, %v1988
    %v2153 = vsub.f32 %v1896, %v1991
    %v2154 = vsub.f32 %v1897, %v1994
    %v2155 = vsub.f32 %v1898, %v1997
    %v2156 = vsub.f32 %v1899, %v2000
    %v2157 = vsub.f32 %v1900, %v2003
    %v2158 = vsub.f32 %v1901, %v2006
    %v2159 = vsub.f32 %v1902, %v2009
    %v2160 = vsub.f32 %v1903, %v2012
    %v2161 = vsub.f32 %v1904, %v2015
    %v2162 = vsub.f32 %v1905, %v2018
    %v2163 = vsub.f32 %v1906, %v2021
    %v2164 = vsub.f32 %v1907, %v2024
    %v2165 = vsub.f32 %v1908, %v2027
    %v2166 = vsub.f32 %v1909, %v2030
    %v2167 = vsub.f32 %v1910, %v2033
    %v2168 = vsub.f32 %v1911, %v2036
    %v2169 = vsub.f32 %v1912, %v2039
    %v2170 = vsub.f32 %v1913, %v2042
    %v2171 = vsub.f32 %v1914, %v2045
    %v2172 = vsub.f32 %v1915, %v2048
    %v2173 = vsub.f32 %v1916, %v2051
    %v2174 = vsub.f32 %v1917, %v2054
    %v2175 = vsub.f32 %v1918, %v2057
    %v2176 = vsub.f32 %v1919, %v2060
    %v2177 = vsub.f32 %v1920, %v2063
    %v2178 = vsub.f32 %v1921, %v2066
    %v2179 = vsub.f32 %v1922, %v2069
    %v2180 = vsub.f32 %v1923, %v2072
    %v2181 = vsub.f32 %v1924, %v2075
    %v2182 = vsub.f32 %v1925, %v2078
    %v2183 = vsub.f32 %v1926, %v2081
    %v2184 = vsub.f32 %v1927, %v2084
    %v2185 = vsub.f32 %v1928, %v2087
    %v2186 = vsub.f32 %v1929, %v2090
    %v2187 = vsub.f32 %v1930, %v2093
    %v2188 = vsub.f32 %v1931, %v2096
    %v2189 = vsub.f32 %v1932, %v2099
    %v2190 = vsub.f32 %v1933, %v2102
    %v2191 = vsub.f32 %v1934, %v2105
    %v2192 = vsub.f32 %v1935, %v2108
    %v2193 = vsub.f32 %v1936, %v2111
    %v2194 = vsub.f32 %v1937, %v2114
    %v2195 = vsub.f32 %v1938, %v2117
    %v2196 = vsub.f32 %v1939, %v2120
    %v2197 = vsub.f32 %v1940, %v2123
    %v2198 = vsub.f32 %v1941, %v2126
    %v2199 = vsub.f32 %v1942, %v2129
    %v2200 = vsub.f32 %v1943, %v2132
    %v2201 = vsub.f32 %v1944, %v2135
    %v2202 = vsub.f32 %v1945, %v2138
    %v2203 = vmul.f32 %v2139, 1.442695
    %v2204 = vpow.pop %v2203
    %v2205 = vmul.f32 %v2140, 1.442695
    %v2206 = vpow.pop %v2205
    %v2207 = vmul.f32 %v2141, 1.442695
    %v2208 = vpow.pop %v2207
    %v2209 = vmul.f32 %v2142, 1.442695
    %v2210 = vpow.pop %v2209
    %v2211 = vmul.f32 %v2143, 1.442695
    %v2212 = vpow.pop %v2211
    %v2213 = vmul.f32 %v2144, 1.442695
    %v2214 = vpow.pop %v2213
    %v2215 = vmul.f32 %v2145, 1.442695
    %v2216 = vpow.pop %v2215
    %v2217 = vmul.f32 %v2146, 1.442695
    %v2218 = vpow.pop %v2217
    %v2219 = vmul.f32 %v2147, 1.442695
    %v2220 = vpow.pop %v2219
    %v2221 = vmul.f32 %v2148, 1.442695
    %v2222 = vpow.pop %v2221
    %v2223 = vmul.f32 %v2149, 1.442695
    %v2224 = vpow.pop %v2223
    %v2225 = vmul.f32 %v2150, 1.442695
    %v2226 = vpow.pop %v2225
    %v2227 = vmul.f32 %v2151, 1.442695
    %v2228 = vpow.pop %v2227
    %v2229 = vmul.f32 %v2152, 1.442695
    %v2230 = vpow.pop %v2229
    %v2231 = vmul.f32 %v2153, 1.442695
    %v2232 = vpow.pop %v2231
    %v2233 = vmul.f32 %v2154, 1.442695
    %v2234 = vpow.pop %v2233
    %v2235 = vmul.f32 %v2155, 1.442695
    %v2236 = vpow.pop %v2235
    %v2237 = vmul.f32 %v2156, 1.442695
    %v2238 = vpow.pop %v2237
    %v2239 = vmul.f32 %v2157, 1.442695
    %v2240 = vpow.pop %v2239
    %v2241 = vmul.f32 %v2158, 1.442695
    %v2242 = vpow.pop %v2241
    %v2243 = vmul.f32 %v2159, 1.442695
    %v2244 = vpow.pop %v2243
    %v2245 = vmul.f32 %v2160, 1.442695
    %v2246 = vpow.pop %v2245
    %v2247 = vmul.f32 %v2161, 1.442695
    %v2248 = vpow.pop %v2247
    %v2249 = vmul.f32 %v2162, 1.442695
    %v2250 = vpow.pop %v2249
    %v2251 = vmul.f32 %v2163, 1.442695
    %v2252 = vpow.pop %v2251
    %v2253 = vmul.f32 %v2164, 1.442695
    %v2254 = vpow.pop %v2253
    %v2255 = vmul.f32 %v2165, 1.442695
    %v2256 = vpow.pop %v2255
    %v2257 = vmul.f32 %v2166, 1.442695
    %v2258 = vpow.pop %v2257
    %v2259 = vmul.f32 %v2167, 1.442695
    %v2260 = vpow.pop %v2259
    %v2261 = vmul.f32 %v2168, 1.442695
    %v2262 = vpow.pop %v2261
    %v2263 = vmul.f32 %v2169, 1.442695
    %v2264 = vpow.pop %v2263
    %v2265 = vmul.f32 %v2170, 1.442695
    %v2266 = vpow.pop %v2265
    %v2267 = vmul.f32 %v2171, 1.442695
    %v2268 = vpow.pop %v2267
    %v2269 = vmul.f32 %v2172, 1.442695
    %v2270 = vpow.pop %v2269
    %v2271 = vmul.f32 %v2173, 1.442695
    %v2272 = vpow.pop %v2271
    %v2273 = vmul.f32 %v2174, 1.442695
    %v2274 = vpow.pop %v2273
    %v2275 = vmul.f32 %v2175, 1.442695
    %v2276 = vpow.pop %v2275
    %v2277 = vmul.f32 %v2176, 1.442695
    %v2278 = vpow.pop %v2277
    %v2279 = vmul.f32 %v2177, 1.442695
    %v2280 = vpow.pop %v2279
    %v2281 = vmul.f32 %v2178, 1.442695
    %v2282 = vpow.pop %v2281
    %v2283 = vmul.f32 %v2179, 1.442695
    %v2284 = vpow.pop %v2283
    %v2285 = vmul.f32 %v2180, 1.442695
    %v2286 = vpow.pop %v2285
    %v2287 = vmul.f32 %v2181, 1.442695
    %v2288 = vpow.pop %v2287
    %v2289 = vmul.f32 %v2182, 1.442695
    %v2290 = vpow.pop %v2289
    %v2291 = vmul.f32 %v2183, 1.442695
    %v2292 = vpow.pop %v2291
    %v2293 = vmul.f32 %v2184, 1.442695
    %v2294 = vpow.pop %v2293
    %v2295 = vmul.f32 %v2185, 1.442695
    %v2296 = vpow.pop %v2295
    %v2297 = vmul.f32 %v2186, 1.442695
    %v2298 = vpow.pop %v2297
    %v2299 = vmul.f32 %v2187, 1.442695
    %v2300 = vpow.pop %v2299
    %v2301 = vmul.f32 %v2188, 1.442695
    %v2302 = vpow.pop %v2301
    %v2303 = vmul.f32 %v2189, 1.442695
    %v2304 = vpow.pop %v2303
    %v2305 = vmul.f32 %v2190, 1.442695
    %v2306 = vpow.pop %v2305
    %v2307 = vmul.f32 %v2191, 1.442695
    %v2308 = vpow.pop %v2307
    %v2309 = vmul.f32 %v2192, 1.442695
    %v2310 = vpow.pop %v2309
    %v2311 = vmul.f32 %v2193, 1.442695
    %v2312 = vpow.pop %v2311
    %v2313 = vmul.f32 %v2194, 1.442695
    %v2314 = vpow.pop %v2313
    %v2315 = vmul.f32 %v2195, 1.442695
    %v2316 = vpow.pop %v2315
    %v2317 = vmul.f32 %v2196, 1.442695
    %v2318 = vpow.pop %v2317
    %v2319 = vmul.f32 %v2197, 1.442695
    %v2320 = vpow.pop %v2319
    %v2321 = vmul.f32 %v2198, 1.442695
    %v2322 = vpow.pop %v2321
    %v2323 = vmul.f32 %v2199, 1.442695
    %v2324 = vpow.pop %v2323
    %v2325 = vmul.f32 %v2200, 1.442695
    %v2326 = vpow.pop %v2325
    %v2327 = vmul.f32 %v2201, 1.442695
    %v2328 = vpow.pop %v2327
    %v2329 = vmul.f32 %v2202, 1.442695
    %v2330 = vpow.pop %v2329
    %v2331 = vsel %vm1946, %v2204, 0.0
    %2332 = vadd.xlane.f32.xlu0 %v2331
    %v2333 = vpop.xlane.xlu0 %2332
    %v2334 = vsel %vm1946, %v2206, 0.0
    %2335 = vadd.xlane.f32.xlu0 %v2334
    %v2336 = vpop.xlane.xlu0 %2335
    %v2337 = vsel %vm1946, %v2208, 0.0
    %2338 = vadd.xlane.f32.xlu0 %v2337
    %v2339 = vpop.xlane.xlu0 %2338
    %v2340 = vsel %vm1946, %v2210, 0.0
    %2341 = vadd.xlane.f32.xlu0 %v2340
    %v2342 = vpop.xlane.xlu0 %2341
    %v2343 = vsel %vm1946, %v2212, 0.0
    %2344 = vadd.xlane.f32.xlu0 %v2343
    %v2345 = vpop.xlane.xlu0 %2344
    %v2346 = vsel %vm1946, %v2214, 0.0
    %2347 = vadd.xlane.f32.xlu0 %v2346
    %v2348 = vpop.xlane.xlu0 %2347
    %v2349 = vsel %vm1946, %v2216, 0.0
    %2350 = vadd.xlane.f32.xlu0 %v2349
    %v2351 = vpop.xlane.xlu0 %2350
    %v2352 = vsel %vm1946, %v2218, 0.0
    %2353 = vadd.xlane.f32.xlu0 %v2352
    %v2354 = vpop.xlane.xlu0 %2353
    %v2355 = vsel %vm1946, %v2220, 0.0
    %2356 = vadd.xlane.f32.xlu0 %v2355
    %v2357 = vpop.xlane.xlu0 %2356
    %v2358 = vsel %vm1946, %v2222, 0.0
    %2359 = vadd.xlane.f32.xlu0 %v2358
    %v2360 = vpop.xlane.xlu0 %2359
    %v2361 = vsel %vm1946, %v2224, 0.0
    %2362 = vadd.xlane.f32.xlu0 %v2361
    %v2363 = vpop.xlane.xlu0 %2362
    %v2364 = vsel %vm1946, %v2226, 0.0
    %2365 = vadd.xlane.f32.xlu0 %v2364
    %v2366 = vpop.xlane.xlu0 %2365
    %v2367 = vsel %vm1946, %v2228, 0.0
    %2368 = vadd.xlane.f32.xlu0 %v2367
    %v2369 = vpop.xlane.xlu0 %2368
    %v2370 = vsel %vm1946, %v2230, 0.0
    %2371 = vadd.xlane.f32.xlu0 %v2370
    %v2372 = vpop.xlane.xlu0 %2371
    %v2373 = vsel %vm1946, %v2232, 0.0
    %2374 = vadd.xlane.f32.xlu0 %v2373
    %v2375 = vpop.xlane.xlu0 %2374
    %v2376 = vsel %vm1946, %v2234, 0.0
    %2377 = vadd.xlane.f32.xlu0 %v2376
    %v2378 = vpop.xlane.xlu0 %2377
    %v2379 = vsel %vm1946, %v2236, 0.0
    %2380 = vadd.xlane.f32.xlu0 %v2379
    %v2381 = vpop.xlane.xlu0 %2380
    %v2382 = vsel %vm1946, %v2238, 0.0
    %2383 = vadd.xlane.f32.xlu0 %v2382
    %v2384 = vpop.xlane.xlu0 %2383
    %v2385 = vsel %vm1946, %v2240, 0.0
    %2386 = vadd.xlane.f32.xlu0 %v2385
    %v2387 = vpop.xlane.xlu0 %2386
    %v2388 = vsel %vm1946, %v2242, 0.0
    %2389 = vadd.xlane.f32.xlu0 %v2388
    %v2390 = vpop.xlane.xlu0 %2389
    %v2391 = vsel %vm1946, %v2244, 0.0
    %2392 = vadd.xlane.f32.xlu0 %v2391
    %v2393 = vpop.xlane.xlu0 %2392
    %v2394 = vsel %vm1946, %v2246, 0.0
    %2395 = vadd.xlane.f32.xlu0 %v2394
    %v2396 = vpop.xlane.xlu0 %2395
    %v2397 = vsel %vm1946, %v2248, 0.0
    %2398 = vadd.xlane.f32.xlu0 %v2397
    %v2399 = vpop.xlane.xlu0 %2398
    %v2400 = vsel %vm1946, %v2250, 0.0
    %2401 = vadd.xlane.f32.xlu0 %v2400
    %v2402 = vpop.xlane.xlu0 %2401
    %v2403 = vsel %vm1946, %v2252, 0.0
    %2404 = vadd.xlane.f32.xlu0 %v2403
    %v2405 = vpop.xlane.xlu0 %2404
    %v2406 = vsel %vm1946, %v2254, 0.0
    %2407 = vadd.xlane.f32.xlu0 %v2406
    %v2408 = vpop.xlane.xlu0 %2407
    %v2409 = vsel %vm1946, %v2256, 0.0
    %2410 = vadd.xlane.f32.xlu0 %v2409
    %v2411 = vpop.xlane.xlu0 %2410
    %v2412 = vsel %vm1946, %v2258, 0.0
    %2413 = vadd.xlane.f32.xlu0 %v2412
    %v2414 = vpop.xlane.xlu0 %2413
    %v2415 = vsel %vm1946, %v2260, 0.0
    %2416 = vadd.xlane.f32.xlu0 %v2415
    %v2417 = vpop.xlane.xlu0 %2416
    %v2418 = vsel %vm1946, %v2262, 0.0
    %2419 = vadd.xlane.f32.xlu0 %v2418
    %v2420 = vpop.xlane.xlu0 %2419
    %v2421 = vsel %vm1946, %v2264, 0.0
    %2422 = vadd.xlane.f32.xlu0 %v2421
    %v2423 = vpop.xlane.xlu0 %2422
    %v2424 = vsel %vm1946, %v2266, 0.0
    %2425 = vadd.xlane.f32.xlu0 %v2424
    %v2426 = vpop.xlane.xlu0 %2425
    %v2427 = vsel %vm1946, %v2268, 0.0
    %2428 = vadd.xlane.f32.xlu0 %v2427
    %v2429 = vpop.xlane.xlu0 %2428
    %v2430 = vsel %vm1946, %v2270, 0.0
    %2431 = vadd.xlane.f32.xlu0 %v2430
    %v2432 = vpop.xlane.xlu0 %2431
    %v2433 = vsel %vm1946, %v2272, 0.0
    %2434 = vadd.xlane.f32.xlu0 %v2433
    %v2435 = vpop.xlane.xlu0 %2434
    %v2436 = vsel %vm1946, %v2274, 0.0
    %2437 = vadd.xlane.f32.xlu0 %v2436
    %v2438 = vpop.xlane.xlu0 %2437
    %v2439 = vsel %vm1946, %v2276, 0.0
    %2440 = vadd.xlane.f32.xlu0 %v2439
    %v2441 = vpop.xlane.xlu0 %2440
    %v2442 = vsel %vm1946, %v2278, 0.0
    %2443 = vadd.xlane.f32.xlu0 %v2442
    %v2444 = vpop.xlane.xlu0 %2443
    %v2445 = vsel %vm1946, %v2280, 0.0
    %2446 = vadd.xlane.f32.xlu0 %v2445
    %v2447 = vpop.xlane.xlu0 %2446
    %v2448 = vsel %vm1946, %v2282, 0.0
    %2449 = vadd.xlane.f32.xlu0 %v2448
    %v2450 = vpop.xlane.xlu0 %2449
    %v2451 = vsel %vm1946, %v2284, 0.0
    %2452 = vadd.xlane.f32.xlu0 %v2451
    %v2453 = vpop.xlane.xlu0 %2452
    %v2454 = vsel %vm1946, %v2286, 0.0
    %2455 = vadd.xlane.f32.xlu0 %v2454
    %v2456 = vpop.xlane.xlu0 %2455
    %v2457 = vsel %vm1946, %v2288, 0.0
    %2458 = vadd.xlane.f32.xlu0 %v2457
    %v2459 = vpop.xlane.xlu0 %2458
    %v2460 = vsel %vm1946, %v2290, 0.0
    %2461 = vadd.xlane.f32.xlu0 %v2460
    %v2462 = vpop.xlane.xlu0 %2461
    %v2463 = vsel %vm1946, %v2292, 0.0
    %2464 = vadd.xlane.f32.xlu0 %v2463
    %v2465 = vpop.xlane.xlu0 %2464
    %v2466 = vsel %vm1946, %v2294, 0.0
    %2467 = vadd.xlane.f32.xlu0 %v2466
    %v2468 = vpop.xlane.xlu0 %2467
    %v2469 = vsel %vm1946, %v2296, 0.0
    %2470 = vadd.xlane.f32.xlu0 %v2469
    %v2471 = vpop.xlane.xlu0 %2470
    %v2472 = vsel %vm1946, %v2298, 0.0
    %2473 = vadd.xlane.f32.xlu0 %v2472
    %v2474 = vpop.xlane.xlu0 %2473
    %v2475 = vsel %vm1946, %v2300, 0.0
    %2476 = vadd.xlane.f32.xlu0 %v2475
    %v2477 = vpop.xlane.xlu0 %2476
    %v2478 = vsel %vm1946, %v2302, 0.0
    %2479 = vadd.xlane.f32.xlu0 %v2478
    %v2480 = vpop.xlane.xlu0 %2479
    %v2481 = vsel %vm1946, %v2304, 0.0
    %2482 = vadd.xlane.f32.xlu0 %v2481
    %v2483 = vpop.xlane.xlu0 %2482
    %v2484 = vsel %vm1946, %v2306, 0.0
    %2485 = vadd.xlane.f32.xlu0 %v2484
    %v2486 = vpop.xlane.xlu0 %2485
    %v2487 = vsel %vm1946, %v2308, 0.0
    %2488 = vadd.xlane.f32.xlu0 %v2487
    %v2489 = vpop.xlane.xlu0 %2488
    %v2490 = vsel %vm1946, %v2310, 0.0
    %2491 = vadd.xlane.f32.xlu0 %v2490
    %v2492 = vpop.xlane.xlu0 %2491
    %v2493 = vsel %vm1946, %v2312, 0.0
    %2494 = vadd.xlane.f32.xlu0 %v2493
    %v2495 = vpop.xlane.xlu0 %2494
    %v2496 = vsel %vm1946, %v2314, 0.0
    %2497 = vadd.xlane.f32.xlu0 %v2496
    %v2498 = vpop.xlane.xlu0 %2497
    %v2499 = vsel %vm1946, %v2316, 0.0
    %2500 = vadd.xlane.f32.xlu0 %v2499
    %v2501 = vpop.xlane.xlu0 %2500
    %v2502 = vsel %vm1946, %v2318, 0.0
    %2503 = vadd.xlane.f32.xlu0 %v2502
    %v2504 = vpop.xlane.xlu0 %2503
    %v2505 = vsel %vm1946, %v2320, 0.0
    %2506 = vadd.xlane.f32.xlu0 %v2505
    %v2507 = vpop.xlane.xlu0 %2506
    %v2508 = vsel %vm1946, %v2322, 0.0
    %2509 = vadd.xlane.f32.xlu0 %v2508
    %v2510 = vpop.xlane.xlu0 %2509
    %v2511 = vsel %vm1946, %v2324, 0.0
    %2512 = vadd.xlane.f32.xlu0 %v2511
    %v2513 = vpop.xlane.xlu0 %2512
    %v2514 = vsel %vm1946, %v2326, 0.0
    %2515 = vadd.xlane.f32.xlu0 %v2514
    %v2516 = vpop.xlane.xlu0 %2515
    %v2517 = vsel %vm1946, %v2328, 0.0
    %2518 = vadd.xlane.f32.xlu0 %v2517
    %v2519 = vpop.xlane.xlu0 %2518
    %v2520 = vsel %vm1946, %v2330, 0.0
    %2521 = vadd.xlane.f32.xlu0 %v2520
    %v2522 = vpop.xlane.xlu0 %2521
    %v2523 = vrcp.pop %v2333
    %v2524 = vrcp.pop %v2336
    %v2525 = vrcp.pop %v2339
    %v2526 = vrcp.pop %v2342
    %v2527 = vrcp.pop %v2345
    %v2528 = vrcp.pop %v2348
    %v2529 = vrcp.pop %v2351
    %v2530 = vrcp.pop %v2354
    %v2531 = vrcp.pop %v2357
    %v2532 = vrcp.pop %v2360
    %v2533 = vrcp.pop %v2363
    %v2534 = vrcp.pop %v2366
    %v2535 = vrcp.pop %v2369
    %v2536 = vrcp.pop %v2372
    %v2537 = vrcp.pop %v2375
    %v2538 = vrcp.pop %v2378
    %v2539 = vrcp.pop %v2381
    %v2540 = vrcp.pop %v2384
    %v2541 = vrcp.pop %v2387
    %v2542 = vrcp.pop %v2390
    %v2543 = vrcp.pop %v2393
    %v2544 = vrcp.pop %v2396
    %v2545 = vrcp.pop %v2399
    %v2546 = vrcp.pop %v2402
    %v2547 = vrcp.pop %v2405
    %v2548 = vrcp.pop %v2408
    %v2549 = vrcp.pop %v2411
    %v2550 = vrcp.pop %v2414
    %v2551 = vrcp.pop %v2417
    %v2552 = vrcp.pop %v2420
    %v2553 = vrcp.pop %v2423
    %v2554 = vrcp.pop %v2426
    %v2555 = vrcp.pop %v2429
    %v2556 = vrcp.pop %v2432
    %v2557 = vrcp.pop %v2435
    %v2558 = vrcp.pop %v2438
    %v2559 = vrcp.pop %v2441
    %v2560 = vrcp.pop %v2444
    %v2561 = vrcp.pop %v2447
    %v2562 = vrcp.pop %v2450
    %v2563 = vrcp.pop %v2453
    %v2564 = vrcp.pop %v2456
    %v2565 = vrcp.pop %v2459
    %v2566 = vrcp.pop %v2462
    %v2567 = vrcp.pop %v2465
    %v2568 = vrcp.pop %v2468
    %v2569 = vrcp.pop %v2471
    %v2570 = vrcp.pop %v2474
    %v2571 = vrcp.pop %v2477
    %v2572 = vrcp.pop %v2480
    %v2573 = vrcp.pop %v2483
    %v2574 = vrcp.pop %v2486
    %v2575 = vrcp.pop %v2489
    %v2576 = vrcp.pop %v2492
    %v2577 = vrcp.pop %v2495
    %v2578 = vrcp.pop %v2498
    %v2579 = vrcp.pop %v2501
    %v2580 = vrcp.pop %v2504
    %v2581 = vrcp.pop %v2507
    %v2582 = vrcp.pop %v2510
    %v2583 = vrcp.pop %v2513
    %v2584 = vrcp.pop %v2516
    %v2585 = vrcp.pop %v2519
    %v2586 = vrcp.pop %v2522
    %v2587 = vmul.f32 %v2204, %v2523
    %v2588 = vmul.f32 %v2206, %v2524
    %v2589 = vmul.f32 %v2208, %v2525
    %v2590 = vmul.f32 %v2210, %v2526
    %v2591 = vmul.f32 %v2212, %v2527
    %v2592 = vmul.f32 %v2214, %v2528
    %v2593 = vmul.f32 %v2216, %v2529
    %v2594 = vmul.f32 %v2218, %v2530
    %v2595 = vmul.f32 %v2220, %v2531
    %v2596 = vmul.f32 %v2222, %v2532
    %v2597 = vmul.f32 %v2224, %v2533
    %v2598 = vmul.f32 %v2226, %v2534
    %v2599 = vmul.f32 %v2228, %v2535
    %v2600 = vmul.f32 %v2230, %v2536
    %v2601 = vmul.f32 %v2232, %v2537
    %v2602 = vmul.f32 %v2234, %v2538
    %v2603 = vmul.f32 %v2236, %v2539
    %v2604 = vmul.f32 %v2238, %v2540
    %v2605 = vmul.f32 %v2240, %v2541
    %v2606 = vmul.f32 %v2242, %v2542
    %v2607 = vmul.f32 %v2244, %v2543
    %v2608 = vmul.f32 %v2246, %v2544
    %v2609 = vmul.f32 %v2248, %v2545
    %v2610 = vmul.f32 %v2250, %v2546
    %v2611 = vmul.f32 %v2252, %v2547
    %v2612 = vmul.f32 %v2254, %v2548
    %v2613 = vmul.f32 %v2256, %v2549
    %v2614 = vmul.f32 %v2258, %v2550
    %v2615 = vmul.f32 %v2260, %v2551
    %v2616 = vmul.f32 %v2262, %v2552
    %v2617 = vmul.f32 %v2264, %v2553
    %v2618 = vmul.f32 %v2266, %v2554
    %v2619 = vmul.f32 %v2268, %v2555
    %v2620 = vmul.f32 %v2270, %v2556
    %v2621 = vmul.f32 %v2272, %v2557
    %v2622 = vmul.f32 %v2274, %v2558
    %v2623 = vmul.f32 %v2276, %v2559
    %v2624 = vmul.f32 %v2278, %v2560
    %v2625 = vmul.f32 %v2280, %v2561
    %v2626 = vmul.f32 %v2282, %v2562
    %v2627 = vmul.f32 %v2284, %v2563
    %v2628 = vmul.f32 %v2286, %v2564
    %v2629 = vmul.f32 %v2288, %v2565
    %v2630 = vmul.f32 %v2290, %v2566
    %v2631 = vmul.f32 %v2292, %v2567
    %v2632 = vmul.f32 %v2294, %v2568
    %v2633 = vmul.f32 %v2296, %v2569
    %v2634 = vmul.f32 %v2298, %v2570
    %v2635 = vmul.f32 %v2300, %v2571
    %v2636 = vmul.f32 %v2302, %v2572
    %v2637 = vmul.f32 %v2304, %v2573
    %v2638 = vmul.f32 %v2306, %v2574
    %v2639 = vmul.f32 %v2308, %v2575
    %v2640 = vmul.f32 %v2310, %v2576
    %v2641 = vmul.f32 %v2312, %v2577
    %v2642 = vmul.f32 %v2314, %v2578
    %v2643 = vmul.f32 %v2316, %v2579
    %v2644 = vmul.f32 %v2318, %v2580
    %v2645 = vmul.f32 %v2320, %v2581
    %v2646 = vmul.f32 %v2322, %v2582
    %v2647 = vmul.f32 %v2324, %v2583
    %v2648 = vmul.f32 %v2326, %v2584
    %v2649 = vmul.f32 %v2328, %v2585
    %v2650 = vmul.f32 %v2330, %v2586
    %v2651 = vpack.c.bf16 %v2587, %v2587
    %v2652 = vpack.c.bf16 %v2588, %v2588
    %v2653 = vpack.c.bf16 %v2589, %v2589
    %v2654 = vpack.c.bf16 %v2590, %v2590
    %v2655 = vpack.c.bf16 %v2591, %v2591
    %v2656 = vpack.c.bf16 %v2592, %v2592
    %v2657 = vpack.c.bf16 %v2593, %v2593
    %v2658 = vpack.c.bf16 %v2594, %v2594
    %v2659 = vpack.c.bf16 %v2595, %v2595
    %v2660 = vpack.c.bf16 %v2596, %v2596
    %v2661 = vpack.c.bf16 %v2597, %v2597
    %v2662 = vpack.c.bf16 %v2598, %v2598
    %v2663 = vpack.c.bf16 %v2599, %v2599
    %v2664 = vpack.c.bf16 %v2600, %v2600
    %v2665 = vpack.c.bf16 %v2601, %v2601
    %v2666 = vpack.c.bf16 %v2602, %v2602
    %v2667 = vpack.c.bf16 %v2603, %v2603
    %v2668 = vpack.c.bf16 %v2604, %v2604
    %v2669 = vpack.c.bf16 %v2605, %v2605
    %v2670 = vpack.c.bf16 %v2606, %v2606
    %v2671 = vpack.c.bf16 %v2607, %v2607
    %v2672 = vpack.c.bf16 %v2608, %v2608
    %v2673 = vpack.c.bf16 %v2609, %v2609
    %v2674 = vpack.c.bf16 %v2610, %v2610
    %v2675 = vpack.c.bf16 %v2611, %v2611
    %v2676 = vpack.c.bf16 %v2612, %v2612
    %v2677 = vpack.c.bf16 %v2613, %v2613
    %v2678 = vpack.c.bf16 %v2614, %v2614
    %v2679 = vpack.c.bf16 %v2615, %v2615
    %v2680 = vpack.c.bf16 %v2616, %v2616
    %v2681 = vpack.c.bf16 %v2617, %v2617
    %v2682 = vpack.c.bf16 %v2618, %v2618
    %v2683 = vpack.c.bf16 %v2619, %v2619
    %v2684 = vpack.c.bf16 %v2620, %v2620
    %v2685 = vpack.c.bf16 %v2621, %v2621
    %v2686 = vpack.c.bf16 %v2622, %v2622
    %v2687 = vpack.c.bf16 %v2623, %v2623
    %v2688 = vpack.c.bf16 %v2624, %v2624
    %v2689 = vpack.c.bf16 %v2625, %v2625
    %v2690 = vpack.c.bf16 %v2626, %v2626
    %v2691 = vpack.c.bf16 %v2627, %v2627
    %v2692 = vpack.c.bf16 %v2628, %v2628
    %v2693 = vpack.c.bf16 %v2629, %v2629
    %v2694 = vpack.c.bf16 %v2630, %v2630
    %v2695 = vpack.c.bf16 %v2631, %v2631
    %v2696 = vpack.c.bf16 %v2632, %v2632
    %v2697 = vpack.c.bf16 %v2633, %v2633
    %v2698 = vpack.c.bf16 %v2634, %v2634
    %v2699 = vpack.c.bf16 %v2635, %v2635
    %v2700 = vpack.c.bf16 %v2636, %v2636
    %v2701 = vpack.c.bf16 %v2637, %v2637
    %v2702 = vpack.c.bf16 %v2638, %v2638
    %v2703 = vpack.c.bf16 %v2639, %v2639
    %v2704 = vpack.c.bf16 %v2640, %v2640
    %v2705 = vpack.c.bf16 %v2641, %v2641
    %v2706 = vpack.c.bf16 %v2642, %v2642
    %v2707 = vpack.c.bf16 %v2643, %v2643
    %v2708 = vpack.c.bf16 %v2644, %v2644
    %v2709 = vpack.c.bf16 %v2645, %v2645
    %v2710 = vpack.c.bf16 %v2646, %v2646
    %v2711 = vpack.c.bf16 %v2647, %v2647
    %v2712 = vpack.c.bf16 %v2648, %v2648
    %v2713 = vpack.c.bf16 %v2649, %v2649
    %v2714 = vpack.c.bf16 %v2650, %v2650
    %v2723 = vunpack.c.l.b16 %v2651
    %v2724 = vunpack.c.l.b16 %v2652
    %v2725 = vunpack.c.l.b16 %v2653
    %v2726 = vunpack.c.l.b16 %v2654
    %v2727 = vunpack.c.l.b16 %v2655
    %v2728 = vunpack.c.l.b16 %v2656
    %v2729 = vunpack.c.l.b16 %v2657
    %v2730 = vunpack.c.l.b16 %v2658
    %v2731 = vpack.c.b16 %v2724, %v2723
    %v2732 = vpack.c.b16 %v2726, %v2725
    %v2733 = vpack.c.b16 %v2728, %v2727
    %v2734 = vpack.c.b16 %v2730, %v2729
    %v2735 = vunpack.c.l.b16 %v878
    %v2736 = vunpack.c.l.b16 %v879
    %v2737 = vunpack.c.l.b16 %v880
    %v2738 = vunpack.c.l.b16 %v881
    %v2739 = vunpack.c.l.b16 %v882
    %v2740 = vunpack.c.l.b16 %v883
    %v2741 = vunpack.c.l.b16 %v884
    %v2742 = vunpack.c.l.b16 %v885
    %v2743 = vpack.c.b16 %v2736, %v2735
    %v2744 = vpack.c.b16 %v2738, %v2737
    %v2745 = vpack.c.b16 %v2740, %v2739
    %v2746 = vpack.c.b16 %v2742, %v2741
    %v2752 = vsel %vm1946, %v2731, 0
    %v2755 = vsel %vm1946, %v2732, 0
    %v2758 = vsel %vm1946, %v2733, 0
    %v2761 = vsel %vm1946, %v2734, 0
    %2763 = vmatpush.bf16.msra.mxu0 0
    %2764 = vmatpush.bf16.msra.mxu0 0
    %2765 = vmatpush.bf16.msra.mxu0 0
    %2766 = vmatpush.bf16.msra.mxu0 0
    %2767 = vmatpush.bf16.msra.mxu0 %v2746
    %2768 = vmatpush.bf16.msra.mxu0 %v2745
    %2769 = vmatpush.bf16.msra.mxu0 %v2744
    %2770 = vmatpush.bf16.msra.mxu0 %v2743
    %2771 = vmatmul.bf16.gmra.mxu0 %v2752
    %v2772 = vpop.f32.mrf.mxu0
    %v2773 = vadd.f32 0.0, %v2772
    %v2774 = vpop.f32.mrf.mxu0
    %v2775 = vadd.f32 0.0, %v2774
    %2776 = vmatmul.bf16.gmra.mxu0 %v2755
    %v2777 = vpop.f32.mrf.mxu0
    %v2778 = vadd.f32 0.0, %v2777
    %v2779 = vpop.f32.mrf.mxu0
    %v2780 = vadd.f32 0.0, %v2779
    %2781 = vmatmul.bf16.gmra.mxu0 %v2758
    %v2782 = vpop.f32.mrf.mxu0
    %v2783 = vadd.f32 0.0, %v2782
    %v2784 = vpop.f32.mrf.mxu0
    %v2785 = vadd.f32 0.0, %v2784
    %2786 = vmatmul.bf16.gmra.mxu0 %v2761
    %v2787 = vpop.f32.mrf.mxu0
    %v2788 = vadd.f32 0.0, %v2787
    %v2789 = vpop.f32.mrf.mxu0
    %v2790 = vadd.f32 0.0, %v2789
    %2791 = vdwg.mxu0
    %v2800 = vunpack.c.l.b16 %v2659
    %v2801 = vunpack.c.l.b16 %v2660
    %v2802 = vunpack.c.l.b16 %v2661
    %v2803 = vunpack.c.l.b16 %v2662
    %v2804 = vunpack.c.l.b16 %v2663
    %v2805 = vunpack.c.l.b16 %v2664
    %v2806 = vunpack.c.l.b16 %v2665
    %v2807 = vunpack.c.l.b16 %v2666
    %v2808 = vpack.c.b16 %v2801, %v2800
    %v2809 = vpack.c.b16 %v2803, %v2802
    %v2810 = vpack.c.b16 %v2805, %v2804
    %v2811 = vpack.c.b16 %v2807, %v2806
    %v2812 = vunpack.c.l.b16 %v886
    %v2813 = vunpack.c.l.b16 %v887
    %v2814 = vunpack.c.l.b16 %v888
    %v2815 = vunpack.c.l.b16 %v889
    %v2816 = vunpack.c.l.b16 %v890
    %v2817 = vunpack.c.l.b16 %v891
    %v2818 = vunpack.c.l.b16 %v892
    %v2819 = vunpack.c.l.b16 %v893
    %v2820 = vpack.c.b16 %v2813, %v2812
    %v2821 = vpack.c.b16 %v2815, %v2814
    %v2822 = vpack.c.b16 %v2817, %v2816
    %v2823 = vpack.c.b16 %v2819, %v2818
    %v2829 = vsel %vm1946, %v2808, 0
    %v2832 = vsel %vm1946, %v2809, 0
    %v2835 = vsel %vm1946, %v2810, 0
    %v2838 = vsel %vm1946, %v2811, 0
    %2840 = vmatpush.bf16.msra.mxu0 0
    %2841 = vmatpush.bf16.msra.mxu0 0
    %2842 = vmatpush.bf16.msra.mxu0 0
    %2843 = vmatpush.bf16.msra.mxu0 0
    %2844 = vmatpush.bf16.msra.mxu0 %v2823
    %2845 = vmatpush.bf16.msra.mxu0 %v2822
    %2846 = vmatpush.bf16.msra.mxu0 %v2821
    %2847 = vmatpush.bf16.msra.mxu0 %v2820
    %2848 = vmatmul.bf16.gmra.mxu0 %v2829
    %v2849 = vpop.f32.mrf.mxu0
    %v2850 = vadd.f32 0.0, %v2849
    %v2851 = vpop.f32.mrf.mxu0
    %v2852 = vadd.f32 0.0, %v2851
    %2853 = vmatmul.bf16.gmra.mxu0 %v2832
    %v2854 = vpop.f32.mrf.mxu0
    %v2855 = vadd.f32 0.0, %v2854
    %v2856 = vpop.f32.mrf.mxu0
    %v2857 = vadd.f32 0.0, %v2856
    %2858 = vmatmul.bf16.gmra.mxu0 %v2835
    %v2859 = vpop.f32.mrf.mxu0
    %v2860 = vadd.f32 0.0, %v2859
    %v2861 = vpop.f32.mrf.mxu0
    %v2862 = vadd.f32 0.0, %v2861
    %2863 = vmatmul.bf16.gmra.mxu0 %v2838
    %v2864 = vpop.f32.mrf.mxu0
    %v2865 = vadd.f32 0.0, %v2864
    %v2866 = vpop.f32.mrf.mxu0
    %v2867 = vadd.f32 0.0, %v2866
    %2868 = vdwg.mxu0
    %v2877 = vunpack.c.l.b16 %v2667
    %v2878 = vunpack.c.l.b16 %v2668
    %v2879 = vunpack.c.l.b16 %v2669
    %v2880 = vunpack.c.l.b16 %v2670
    %v2881 = vunpack.c.l.b16 %v2671
    %v2882 = vunpack.c.l.b16 %v2672
    %v2883 = vunpack.c.l.b16 %v2673
    %v2884 = vunpack.c.l.b16 %v2674
    %v2885 = vpack.c.b16 %v2878, %v2877
    %v2886 = vpack.c.b16 %v2880, %v2879
    %v2887 = vpack.c.b16 %v2882, %v2881
    %v2888 = vpack.c.b16 %v2884, %v2883
    %v2889 = vunpack.c.l.b16 %v1135
    %v2890 = vunpack.c.l.b16 %v1137
    %v2891 = vunpack.c.l.b16 %v1139
    %v2892 = vunpack.c.l.b16 %v1141
    %v2893 = vunpack.c.l.b16 %v1143
    %v2894 = vunpack.c.l.b16 %v1145
    %v2895 = vunpack.c.l.b16 %v1147
    %v2896 = vunpack.c.l.b16 %v1149
    %v2897 = vpack.c.b16 %v2890, %v2889
    %v2898 = vpack.c.b16 %v2892, %v2891
    %v2899 = vpack.c.b16 %v2894, %v2893
    %v2900 = vpack.c.b16 %v2896, %v2895
    %v2906 = vsel %vm1946, %v2885, 0
    %v2909 = vsel %vm1946, %v2886, 0
    %v2912 = vsel %vm1946, %v2887, 0
    %v2915 = vsel %vm1946, %v2888, 0
    %2917 = vmatpush.bf16.msra.mxu0 0
    %2918 = vmatpush.bf16.msra.mxu0 0
    %2919 = vmatpush.bf16.msra.mxu0 0
    %2920 = vmatpush.bf16.msra.mxu0 0
    %2921 = vmatpush.bf16.msra.mxu0 %v2900
    %2922 = vmatpush.bf16.msra.mxu0 %v2899
    %2923 = vmatpush.bf16.msra.mxu0 %v2898
    %2924 = vmatpush.bf16.msra.mxu0 %v2897
    %2925 = vmatmul.bf16.gmra.mxu0 %v2906
    %v2926 = vpop.f32.mrf.mxu0
    %v2927 = vadd.f32 0.0, %v2926
    %v2928 = vpop.f32.mrf.mxu0
    %v2929 = vadd.f32 0.0, %v2928
    %2930 = vmatmul.bf16.gmra.mxu0 %v2909
    %v2931 = vpop.f32.mrf.mxu0
    %v2932 = vadd.f32 0.0, %v2931
    %v2933 = vpop.f32.mrf.mxu0
    %v2934 = vadd.f32 0.0, %v2933
    %2935 = vmatmul.bf16.gmra.mxu0 %v2912
    %v2936 = vpop.f32.mrf.mxu0
    %v2937 = vadd.f32 0.0, %v2936
    %v2938 = vpop.f32.mrf.mxu0
    %v2939 = vadd.f32 0.0, %v2938
    %2940 = vmatmul.bf16.gmra.mxu0 %v2915
    %v2941 = vpop.f32.mrf.mxu0
    %v2942 = vadd.f32 0.0, %v2941
    %v2943 = vpop.f32.mrf.mxu0
    %v2944 = vadd.f32 0.0, %v2943
    %2945 = vdwg.mxu0
    %v2954 = vunpack.c.l.b16 %v2675
    %v2955 = vunpack.c.l.b16 %v2676
    %v2956 = vunpack.c.l.b16 %v2677
    %v2957 = vunpack.c.l.b16 %v2678
    %v2958 = vunpack.c.l.b16 %v2679
    %v2959 = vunpack.c.l.b16 %v2680
    %v2960 = vunpack.c.l.b16 %v2681
    %v2961 = vunpack.c.l.b16 %v2682
    %v2962 = vpack.c.b16 %v2955, %v2954
    %v2963 = vpack.c.b16 %v2957, %v2956
    %v2964 = vpack.c.b16 %v2959, %v2958
    %v2965 = vpack.c.b16 %v2961, %v2960
    %v2966 = vunpack.c.l.b16 %v1151
    %v2967 = vunpack.c.l.b16 %v1153
    %v2968 = vunpack.c.l.b16 %v1155
    %v2969 = vunpack.c.l.b16 %v1157
    %v2970 = vunpack.c.l.b16 %v1159
    %v2971 = vunpack.c.l.b16 %v1161
    %v2972 = vunpack.c.l.b16 %v1163
    %v2973 = vunpack.c.l.b16 %v1165
    %v2974 = vpack.c.b16 %v2967, %v2966
    %v2975 = vpack.c.b16 %v2969, %v2968
    %v2976 = vpack.c.b16 %v2971, %v2970
    %v2977 = vpack.c.b16 %v2973, %v2972
    %v2983 = vsel %vm1946, %v2962, 0
    %v2986 = vsel %vm1946, %v2963, 0
    %v2989 = vsel %vm1946, %v2964, 0
    %v2992 = vsel %vm1946, %v2965, 0
    %2994 = vmatpush.bf16.msra.mxu0 0
    %2995 = vmatpush.bf16.msra.mxu0 0
    %2996 = vmatpush.bf16.msra.mxu0 0
    %2997 = vmatpush.bf16.msra.mxu0 0
    %2998 = vmatpush.bf16.msra.mxu0 %v2977
    %2999 = vmatpush.bf16.msra.mxu0 %v2976
    %3000 = vmatpush.bf16.msra.mxu0 %v2975
    %3001 = vmatpush.bf16.msra.mxu0 %v2974
    %3002 = vmatmul.bf16.gmra.mxu0 %v2983
    %v3003 = vpop.f32.mrf.mxu0
    %v3004 = vadd.f32 0.0, %v3003
    %v3005 = vpop.f32.mrf.mxu0
    %v3006 = vadd.f32 0.0, %v3005
    %3007 = vmatmul.bf16.gmra.mxu0 %v2986
    %v3008 = vpop.f32.mrf.mxu0
    %v3009 = vadd.f32 0.0, %v3008
    %v3010 = vpop.f32.mrf.mxu0
    %v3011 = vadd.f32 0.0, %v3010
    %3012 = vmatmul.bf16.gmra.mxu0 %v2989
    %v3013 = vpop.f32.mrf.mxu0
    %v3014 = vadd.f32 0.0, %v3013
    %v3015 = vpop.f32.mrf.mxu0
    %v3016 = vadd.f32 0.0, %v3015
    %3017 = vmatmul.bf16.gmra.mxu0 %v2992
    %v3018 = vpop.f32.mrf.mxu0
    %v3019 = vadd.f32 0.0, %v3018
    %v3020 = vpop.f32.mrf.mxu0
    %v3021 = vadd.f32 0.0, %v3020
    %3022 = vdwg.mxu0
    %v3031 = vunpack.c.l.b16 %v2683
    %v3032 = vunpack.c.l.b16 %v2684
    %v3033 = vunpack.c.l.b16 %v2685
    %v3034 = vunpack.c.l.b16 %v2686
    %v3035 = vunpack.c.l.b16 %v2687
    %v3036 = vunpack.c.l.b16 %v2688
    %v3037 = vunpack.c.l.b16 %v2689
    %v3038 = vunpack.c.l.b16 %v2690
    %v3039 = vpack.c.b16 %v3032, %v3031
    %v3040 = vpack.c.b16 %v3034, %v3033
    %v3041 = vpack.c.b16 %v3036, %v3035
    %v3042 = vpack.c.b16 %v3038, %v3037
    %v3043 = vunpack.c.l.b16 %v1167
    %v3044 = vunpack.c.l.b16 %v1169
    %v3045 = vunpack.c.l.b16 %v1171
    %v3046 = vunpack.c.l.b16 %v1173
    %v3047 = vunpack.c.l.b16 %v1175
    %v3048 = vunpack.c.l.b16 %v1177
    %v3049 = vunpack.c.l.b16 %v1179
    %v3050 = vunpack.c.l.b16 %v1181
    %v3051 = vpack.c.b16 %v3044, %v3043
    %v3052 = vpack.c.b16 %v3046, %v3045
    %v3053 = vpack.c.b16 %v3048, %v3047
    %v3054 = vpack.c.b16 %v3050, %v3049
    %v3060 = vsel %vm1946, %v3039, 0
    %v3063 = vsel %vm1946, %v3040, 0
    %v3066 = vsel %vm1946, %v3041, 0
    %v3069 = vsel %vm1946, %v3042, 0
    %3071 = vmatpush.bf16.msra.mxu0 0
    %3072 = vmatpush.bf16.msra.mxu0 0
    %3073 = vmatpush.bf16.msra.mxu0 0
    %3074 = vmatpush.bf16.msra.mxu0 0
    %3075 = vmatpush.bf16.msra.mxu0 %v3054
    %3076 = vmatpush.bf16.msra.mxu0 %v3053
    %3077 = vmatpush.bf16.msra.mxu0 %v3052
    %3078 = vmatpush.bf16.msra.mxu0 %v3051
    %3079 = vmatmul.bf16.gmra.mxu0 %v3060
    %v3080 = vpop.f32.mrf.mxu0
    %v3081 = vadd.f32 0.0, %v3080
    %v3082 = vpop.f32.mrf.mxu0
    %v3083 = vadd.f32 0.0, %v3082
    %3084 = vmatmul.bf16.gmra.mxu0 %v3063
    %v3085 = vpop.f32.mrf.mxu0
    %v3086 = vadd.f32 0.0, %v3085
    %v3087 = vpop.f32.mrf.mxu0
    %v3088 = vadd.f32 0.0, %v3087
    %3089 = vmatmul.bf16.gmra.mxu0 %v3066
    %v3090 = vpop.f32.mrf.mxu0
    %v3091 = vadd.f32 0.0, %v3090
    %v3092 = vpop.f32.mrf.mxu0
    %v3093 = vadd.f32 0.0, %v3092
    %3094 = vmatmul.bf16.gmra.mxu0 %v3069
    %v3095 = vpop.f32.mrf.mxu0
    %v3096 = vadd.f32 0.0, %v3095
    %v3097 = vpop.f32.mrf.mxu0
    %v3098 = vadd.f32 0.0, %v3097
    %3099 = vdwg.mxu0
    %v3108 = vunpack.c.l.b16 %v2691
    %v3109 = vunpack.c.l.b16 %v2692
    %v3110 = vunpack.c.l.b16 %v2693
    %v3111 = vunpack.c.l.b16 %v2694
    %v3112 = vunpack.c.l.b16 %v2695
    %v3113 = vunpack.c.l.b16 %v2696
    %v3114 = vunpack.c.l.b16 %v2697
    %v3115 = vunpack.c.l.b16 %v2698
    %v3116 = vpack.c.b16 %v3109, %v3108
    %v3117 = vpack.c.b16 %v3111, %v3110
    %v3118 = vpack.c.b16 %v3113, %v3112
    %v3119 = vpack.c.b16 %v3115, %v3114
    %v3120 = vunpack.c.l.b16 %v1183
    %v3121 = vunpack.c.l.b16 %v1185
    %v3122 = vunpack.c.l.b16 %v1187
    %v3123 = vunpack.c.l.b16 %v1189
    %v3124 = vunpack.c.l.b16 %v1191
    %v3125 = vunpack.c.l.b16 %v1193
    %v3126 = vunpack.c.l.b16 %v1195
    %v3127 = vunpack.c.l.b16 %v1197
    %v3128 = vpack.c.b16 %v3121, %v3120
    %v3129 = vpack.c.b16 %v3123, %v3122
    %v3130 = vpack.c.b16 %v3125, %v3124
    %v3131 = vpack.c.b16 %v3127, %v3126
    %v3137 = vsel %vm1946, %v3116, 0
    %v3140 = vsel %vm1946, %v3117, 0
    %v3143 = vsel %vm1946, %v3118, 0
    %v3146 = vsel %vm1946, %v3119, 0
    %3148 = vmatpush.bf16.msra.mxu0 0
    %3149 = vmatpush.bf16.msra.mxu0 0
    %3150 = vmatpush.bf16.msra.mxu0 0
    %3151 = vmatpush.bf16.msra.mxu0 0
    %3152 = vmatpush.bf16.msra.mxu0 %v3131
    %3153 = vmatpush.bf16.msra.mxu0 %v3130
    %3154 = vmatpush.bf16.msra.mxu0 %v3129
    %3155 = vmatpush.bf16.msra.mxu0 %v3128
    %3156 = vmatmul.bf16.gmra.mxu0 %v3137
    %v3157 = vpop.f32.mrf.mxu0
    %v3158 = vadd.f32 0.0, %v3157
    %v3159 = vpop.f32.mrf.mxu0
    %v3160 = vadd.f32 0.0, %v3159
    %3161 = vmatmul.bf16.gmra.mxu0 %v3140
    %v3162 = vpop.f32.mrf.mxu0
    %v3163 = vadd.f32 0.0, %v3162
    %v3164 = vpop.f32.mrf.mxu0
    %v3165 = vadd.f32 0.0, %v3164
    %3166 = vmatmul.bf16.gmra.mxu0 %v3143
    %v3167 = vpop.f32.mrf.mxu0
    %v3168 = vadd.f32 0.0, %v3167
    %v3169 = vpop.f32.mrf.mxu0
    %v3170 = vadd.f32 0.0, %v3169
    %3171 = vmatmul.bf16.gmra.mxu0 %v3146
    %v3172 = vpop.f32.mrf.mxu0
    %v3173 = vadd.f32 0.0, %v3172
    %v3174 = vpop.f32.mrf.mxu0
    %v3175 = vadd.f32 0.0, %v3174
    %3176 = vdwg.mxu0
    %v3185 = vunpack.c.l.b16 %v2699
    %v3186 = vunpack.c.l.b16 %v2700
    %v3187 = vunpack.c.l.b16 %v2701
    %v3188 = vunpack.c.l.b16 %v2702
    %v3189 = vunpack.c.l.b16 %v2703
    %v3190 = vunpack.c.l.b16 %v2704
    %v3191 = vunpack.c.l.b16 %v2705
    %v3192 = vunpack.c.l.b16 %v2706
    %v3193 = vpack.c.b16 %v3186, %v3185
    %v3194 = vpack.c.b16 %v3188, %v3187
    %v3195 = vpack.c.b16 %v3190, %v3189
    %v3196 = vpack.c.b16 %v3192, %v3191
    %v3197 = vunpack.c.l.b16 %v1199
    %v3198 = vunpack.c.l.b16 %v1201
    %v3199 = vunpack.c.l.b16 %v1203
    %v3200 = vunpack.c.l.b16 %v1205
    %v3201 = vunpack.c.l.b16 %v1207
    %v3202 = vunpack.c.l.b16 %v1209
    %v3203 = vunpack.c.l.b16 %v1211
    %v3204 = vunpack.c.l.b16 %v1213
    %v3205 = vpack.c.b16 %v3198, %v3197
    %v3206 = vpack.c.b16 %v3200, %v3199
    %v3207 = vpack.c.b16 %v3202, %v3201
    %v3208 = vpack.c.b16 %v3204, %v3203
    %v3214 = vsel %vm1946, %v3193, 0
    %v3217 = vsel %vm1946, %v3194, 0
    %v3220 = vsel %vm1946, %v3195, 0
    %v3223 = vsel %vm1946, %v3196, 0
    %3225 = vmatpush.bf16.msra.mxu0 0
    %3226 = vmatpush.bf16.msra.mxu0 0
    %3227 = vmatpush.bf16.msra.mxu0 0
    %3228 = vmatpush.bf16.msra.mxu0 0
    %3229 = vmatpush.bf16.msra.mxu0 %v3208
    %3230 = vmatpush.bf16.msra.mxu0 %v3207
    %3231 = vmatpush.bf16.msra.mxu0 %v3206
    %3232 = vmatpush.bf16.msra.mxu0 %v3205
    %3233 = vmatmul.bf16.gmra.mxu0 %v3214
    %v3234 = vpop.f32.mrf.mxu0
    %v3235 = vadd.f32 0.0, %v3234
    %v3236 = vpop.f32.mrf.mxu0
    %v3237 = vadd.f32 0.0, %v3236
    %3238 = vmatmul.bf16.gmra.mxu0 %v3217
    %v3239 = vpop.f32.mrf.mxu0
    %v3240 = vadd.f32 0.0, %v3239
    %v3241 = vpop.f32.mrf.mxu0
    %v3242 = vadd.f32 0.0, %v3241
    %3243 = vmatmul.bf16.gmra.mxu0 %v3220
    %v3244 = vpop.f32.mrf.mxu0
    %v3245 = vadd.f32 0.0, %v3244
    %v3246 = vpop.f32.mrf.mxu0
    %v3247 = vadd.f32 0.0, %v3246
    %3248 = vmatmul.bf16.gmra.mxu0 %v3223
    %v3249 = vpop.f32.mrf.mxu0
    %v3250 = vadd.f32 0.0, %v3249
    %v3251 = vpop.f32.mrf.mxu0
    %v3252 = vadd.f32 0.0, %v3251
    %3253 = vdwg.mxu0
    %v3262 = vunpack.c.l.b16 %v2707
    %v3263 = vunpack.c.l.b16 %v2708
    %v3264 = vunpack.c.l.b16 %v2709
    %v3265 = vunpack.c.l.b16 %v2710
    %v3266 = vunpack.c.l.b16 %v2711
    %v3267 = vunpack.c.l.b16 %v2712
    %v3268 = vunpack.c.l.b16 %v2713
    %v3269 = vunpack.c.l.b16 %v2714
    %v3270 = vpack.c.b16 %v3263, %v3262
    %v3271 = vpack.c.b16 %v3265, %v3264
    %v3272 = vpack.c.b16 %v3267, %v3266
    %v3273 = vpack.c.b16 %v3269, %v3268
    %v3274 = vunpack.c.l.b16 %v1215
    %v3275 = vunpack.c.l.b16 %v1217
    %v3276 = vunpack.c.l.b16 %v1219
    %v3277 = vunpack.c.l.b16 %v1221
    %v3278 = vunpack.c.l.b16 %v1223
    %v3279 = vunpack.c.l.b16 %v1225
    %v3280 = vunpack.c.l.b16 %v1227
    %v3281 = vunpack.c.l.b16 %v1229
    %v3282 = vpack.c.b16 %v3275, %v3274
    %v3283 = vpack.c.b16 %v3277, %v3276
    %v3284 = vpack.c.b16 %v3279, %v3278
    %v3285 = vpack.c.b16 %v3281, %v3280
    %v3291 = vsel %vm1946, %v3270, 0
    %v3294 = vsel %vm1946, %v3271, 0
    %v3297 = vsel %vm1946, %v3272, 0
    %v3300 = vsel %vm1946, %v3273, 0
    %3302 = vmatpush.bf16.msra.mxu0 0
    %3303 = vmatpush.bf16.msra.mxu0 0
    %3304 = vmatpush.bf16.msra.mxu0 0
    %3305 = vmatpush.bf16.msra.mxu0 0
    %3306 = vmatpush.bf16.msra.mxu0 %v3285
    %3307 = vmatpush.bf16.msra.mxu0 %v3284
    %3308 = vmatpush.bf16.msra.mxu0 %v3283
    %3309 = vmatpush.bf16.msra.mxu0 %v3282
    %3310 = vmatmul.bf16.gmra.mxu0 %v3291
    %v3311 = vpop.f32.mrf.mxu0
    %v3312 = vadd.f32 0.0, %v3311
    %v3313 = vpop.f32.mrf.mxu0
    %v3314 = vadd.f32 0.0, %v3313
    %3315 = vmatmul.bf16.gmra.mxu0 %v3294
    %v3316 = vpop.f32.mrf.mxu0
    %v3317 = vadd.f32 0.0, %v3316
    %v3318 = vpop.f32.mrf.mxu0
    %v3319 = vadd.f32 0.0, %v3318
    %3320 = vmatmul.bf16.gmra.mxu0 %v3297
    %v3321 = vpop.f32.mrf.mxu0
    %v3322 = vadd.f32 0.0, %v3321
    %v3323 = vpop.f32.mrf.mxu0
    %v3324 = vadd.f32 0.0, %v3323
    %3325 = vmatmul.bf16.gmra.mxu0 %v3300
    %v3326 = vpop.f32.mrf.mxu0
    %v3327 = vadd.f32 0.0, %v3326
    %v3328 = vpop.f32.mrf.mxu0
    %v3329 = vadd.f32 0.0, %v3328
    %3330 = vdwg.mxu0
    %3347 = vrot.lane.b32.xlu0 %v2927, 32
    %v3348 = vpop.permute.xlu0 %3347
    %3349 = vrot.lane.b32.xlu0 %v2929, 32
    %v3350 = vpop.permute.xlu0 %3349
    %3351 = vrot.lane.b32.xlu0 %v2932, 32
    %v3352 = vpop.permute.xlu0 %3351
    %3353 = vrot.lane.b32.xlu0 %v2934, 32
    %v3354 = vpop.permute.xlu0 %3353
    %3355 = vrot.lane.b32.xlu0 %v2937, 32
    %v3356 = vpop.permute.xlu0 %3355
    %3357 = vrot.lane.b32.xlu0 %v2939, 32
    %v3358 = vpop.permute.xlu0 %3357
    %3359 = vrot.lane.b32.xlu0 %v2942, 32
    %v3360 = vpop.permute.xlu0 %3359
    %3361 = vrot.lane.b32.xlu0 %v2944, 32
    %v3362 = vpop.permute.xlu0 %3361
    %3363 = vrot.lane.b32.xlu0 %v3004, 32
    %v3364 = vpop.permute.xlu0 %3363
    %3365 = vrot.lane.b32.xlu0 %v3006, 32
    %v3366 = vpop.permute.xlu0 %3365
    %3367 = vrot.lane.b32.xlu0 %v3009, 32
    %v3368 = vpop.permute.xlu0 %3367
    %3369 = vrot.lane.b32.xlu0 %v3011, 32
    %v3370 = vpop.permute.xlu0 %3369
    %3371 = vrot.lane.b32.xlu0 %v3014, 32
    %v3372 = vpop.permute.xlu0 %3371
    %3373 = vrot.lane.b32.xlu0 %v3016, 32
    %v3374 = vpop.permute.xlu0 %3373
    %3375 = vrot.lane.b32.xlu0 %v3019, 32
    %v3376 = vpop.permute.xlu0 %3375
    %3377 = vrot.lane.b32.xlu0 %v3021, 32
    %v3378 = vpop.permute.xlu0 %3377
    %3411 = vrot.lane.b32.xlu0 %v3081, 64
    %v3412 = vpop.permute.xlu0 %3411
    %3413 = vrot.lane.b32.xlu0 %v3083, 64
    %v3414 = vpop.permute.xlu0 %3413
    %3415 = vrot.lane.b32.xlu0 %v3086, 64
    %v3416 = vpop.permute.xlu0 %3415
    %3417 = vrot.lane.b32.xlu0 %v3088, 64
    %v3418 = vpop.permute.xlu0 %3417
    %3419 = vrot.lane.b32.xlu0 %v3091, 64
    %v3420 = vpop.permute.xlu0 %3419
    %3421 = vrot.lane.b32.xlu0 %v3093, 64
    %v3422 = vpop.permute.xlu0 %3421
    %3423 = vrot.lane.b32.xlu0 %v3096, 64
    %v3424 = vpop.permute.xlu0 %3423
    %3425 = vrot.lane.b32.xlu0 %v3098, 64
    %v3426 = vpop.permute.xlu0 %3425
    %3427 = vrot.lane.b32.xlu0 %v3158, 64
    %v3428 = vpop.permute.xlu0 %3427
    %3429 = vrot.lane.b32.xlu0 %v3160, 64
    %v3430 = vpop.permute.xlu0 %3429
    %3431 = vrot.lane.b32.xlu0 %v3163, 64
    %v3432 = vpop.permute.xlu0 %3431
    %3433 = vrot.lane.b32.xlu0 %v3165, 64
    %v3434 = vpop.permute.xlu0 %3433
    %3435 = vrot.lane.b32.xlu0 %v3168, 64
    %v3436 = vpop.permute.xlu0 %3435
    %3437 = vrot.lane.b32.xlu0 %v3170, 64
    %v3438 = vpop.permute.xlu0 %3437
    %3439 = vrot.lane.b32.xlu0 %v3173, 64
    %v3440 = vpop.permute.xlu0 %3439
    %3441 = vrot.lane.b32.xlu0 %v3175, 64
    %v3442 = vpop.permute.xlu0 %3441
    %3475 = vrot.lane.b32.xlu0 %v3235, 96
    %v3476 = vpop.permute.xlu0 %3475
    %3477 = vrot.lane.b32.xlu0 %v3237, 96
    %v3478 = vpop.permute.xlu0 %3477
    %3479 = vrot.lane.b32.xlu0 %v3240, 96
    %v3480 = vpop.permute.xlu0 %3479
    %3481 = vrot.lane.b32.xlu0 %v3242, 96
    %v3482 = vpop.permute.xlu0 %3481
    %3483 = vrot.lane.b32.xlu0 %v3245, 96
    %v3484 = vpop.permute.xlu0 %3483
    %3485 = vrot.lane.b32.xlu0 %v3247, 96
    %v3486 = vpop.permute.xlu0 %3485
    %3487 = vrot.lane.b32.xlu0 %v3250, 96
    %v3488 = vpop.permute.xlu0 %3487
    %3489 = vrot.lane.b32.xlu0 %v3252, 96
    %v3490 = vpop.permute.xlu0 %3489
    %3491 = vrot.lane.b32.xlu0 %v3312, 96
    %v3492 = vpop.permute.xlu0 %3491
    %3493 = vrot.lane.b32.xlu0 %v3314, 96
    %v3494 = vpop.permute.xlu0 %3493
    %3495 = vrot.lane.b32.xlu0 %v3317, 96
    %v3496 = vpop.permute.xlu0 %3495
    %3497 = vrot.lane.b32.xlu0 %v3319, 96
    %v3498 = vpop.permute.xlu0 %3497
    %3499 = vrot.lane.b32.xlu0 %v3322, 96
    %v3500 = vpop.permute.xlu0 %3499
    %3501 = vrot.lane.b32.xlu0 %v3324, 96
    %v3502 = vpop.permute.xlu0 %3501
    %3503 = vrot.lane.b32.xlu0 %v3327, 96
    %v3504 = vpop.permute.xlu0 %3503
    %3505 = vrot.lane.b32.xlu0 %v3329, 96
    %v3506 = vpop.permute.xlu0 %3505
    %v3523 = vsel %vm1273, %v2773, %v3348
    %v3524 = vsel %vm1273, %v2775, %v3350
    %v3525 = vsel %vm1273, %v2778, %v3352
    %v3526 = vsel %vm1273, %v2780, %v3354
    %v3527 = vsel %vm1273, %v2783, %v3356
    %v3528 = vsel %vm1273, %v2785, %v3358
    %v3529 = vsel %vm1273, %v2788, %v3360
    %v3530 = vsel %vm1273, %v2790, %v3362
    %v3531 = vsel %vm1273, %v2850, %v3364
    %v3532 = vsel %vm1273, %v2852, %v3366
    %v3533 = vsel %vm1273, %v2855, %v3368
    %v3534 = vsel %vm1273, %v2857, %v3370
    %v3535 = vsel %vm1273, %v2860, %v3372
    %v3536 = vsel %vm1273, %v2862, %v3374
    %v3537 = vsel %vm1273, %v2865, %v3376
    %v3538 = vsel %vm1273, %v2867, %v3378
    %v3539 = vsel %vm1946, %v3523, %v3412
    %v3540 = vsel %vm1946, %v3524, %v3414
    %v3541 = vsel %vm1946, %v3525, %v3416
    %v3542 = vsel %vm1946, %v3526, %v3418
    %v3543 = vsel %vm1946, %v3527, %v3420
    %v3544 = vsel %vm1946, %v3528, %v3422
    %v3545 = vsel %vm1946, %v3529, %v3424
    %v3546 = vsel %vm1946, %v3530, %v3426
    %v3547 = vsel %vm1946, %v3531, %v3428
    %v3548 = vsel %vm1946, %v3532, %v3430
    %v3549 = vsel %vm1946, %v3533, %v3432
    %v3550 = vsel %vm1946, %v3534, %v3434
    %v3551 = vsel %vm1946, %v3535, %v3436
    %v3552 = vsel %vm1946, %v3536, %v3438
    %v3553 = vsel %vm1946, %v3537, %v3440
    %v3554 = vsel %vm1946, %v3538, %v3442
    %vm3555 = vcmask 785408
    %v3556 = vsel %vm3555, %v3539, %v3476
    %v3557 = vsel %vm3555, %v3540, %v3478
    %v3558 = vsel %vm3555, %v3541, %v3480
    %v3559 = vsel %vm3555, %v3542, %v3482
    %v3560 = vsel %vm3555, %v3543, %v3484
    %v3561 = vsel %vm3555, %v3544, %v3486
    %v3562 = vsel %vm3555, %v3545, %v3488
    %v3563 = vsel %vm3555, %v3546, %v3490
    %v3564 = vsel %vm3555, %v3547, %v3492
    %v3565 = vsel %vm3555, %v3548, %v3494
    %v3566 = vsel %vm3555, %v3549, %v3496
    %v3567 = vsel %vm3555, %v3550, %v3498
    %v3568 = vsel %vm3555, %v3551, %v3500
    %v3569 = vsel %vm3555, %v3552, %v3502
    %v3570 = vsel %vm3555, %v3553, %v3504
    %v3571 = vsel %vm3555, %v3554, %v3506
    %v3572 = vpack.c.bf16 %v3557, %v3556
    %v3573 = vpack.c.bf16 %v3559, %v3558
    %v3574 = vpack.c.bf16 %v3561, %v3560
    %v3575 = vpack.c.bf16 %v3563, %v3562
    %v3576 = vpack.c.bf16 %v3565, %v3564
    %v3577 = vpack.c.bf16 %v3567, %v3566
    %v3578 = vpack.c.bf16 %v3569, %v3568
    %v3579 = vpack.c.bf16 %v3571, %v3570
    %v3580 = vld [vmem:[#allocation8] sm:$0xf]
    %v3581 = vld [vmem:[#allocation8 + $0x4] sm:$0xf]
    %v3582 = vld [vmem:[#allocation8 + $0x8] sm:$0xf]
    %v3583 = vld [vmem:[#allocation8 + $0xc] sm:$0xf]
    %v3584 = vld [vmem:[#allocation8 + $0x10] sm:$0xf]
    %v3585 = vld [vmem:[#allocation8 + $0x14] sm:$0xf]
    %v3586 = vld [vmem:[#allocation8 + $0x18] sm:$0xf]
    %v3587 = vld [vmem:[#allocation8 + $0x1c] sm:$0xf]
    %v3588 = vld [vmem:[#allocation8 + $0x20] sm:$0xf]
    %v3589 = vld [vmem:[#allocation8 + $0x24] sm:$0xf]
    %v3590 = vld [vmem:[#allocation8 + $0x28] sm:$0xf]
    %v3591 = vld [vmem:[#allocation8 + $0x2c] sm:$0xf]
    %v3592 = vld [vmem:[#allocation8 + $0x30] sm:$0xf]
    %v3593 = vld [vmem:[#allocation8 + $0x34] sm:$0xf]
    %v3594 = vld [vmem:[#allocation8 + $0x38] sm:$0xf]
    %v3595 = vld [vmem:[#allocation8 + $0x3c] sm:$0xf]
    %v3596 = vld [vmem:[%s5] sm:$0x1]
    %v3598 = vperm.slane %v3596, 0
    %v3616 = vunpack.c.l.b16 %v3580
    %v3617 = vunpack.c.l.b16 %v3581
    %v3618 = vunpack.c.l.b16 %v3582
    %v3619 = vunpack.c.l.b16 %v3583
    %v3620 = vunpack.c.l.b16 %v3584
    %v3621 = vunpack.c.l.b16 %v3585
    %v3622 = vunpack.c.l.b16 %v3586
    %v3623 = vunpack.c.l.b16 %v3587
    %v3624 = vunpack.c.l.b16 %v3588
    %v3625 = vunpack.c.l.b16 %v3589
    %v3626 = vunpack.c.l.b16 %v3590
    %v3627 = vunpack.c.l.b16 %v3591
    %v3628 = vunpack.c.l.b16 %v3592
    %v3629 = vunpack.c.l.b16 %v3593
    %v3630 = vunpack.c.l.b16 %v3594
    %v3631 = vunpack.c.l.b16 %v3595
    %v3632 = vpack.c.b16 %v3617, %v3616
    %v3633 = vpack.c.b16 %v3619, %v3618
    %v3634 = vpack.c.b16 %v3621, %v3620
    %v3635 = vpack.c.b16 %v3623, %v3622
    %v3636 = vpack.c.b16 %v3625, %v3624
    %v3637 = vpack.c.b16 %v3627, %v3626
    %v3638 = vpack.c.b16 %v3629, %v3628
    %v3639 = vpack.c.b16 %v3631, %v3630
    %3648 = vmatpush.bf16.msra.mxu0 %v3639
    %3649 = vmatpush.bf16.msra.mxu0 %v3638
    %3650 = vmatpush.bf16.msra.mxu0 %v3637
    %3651 = vmatpush.bf16.msra.mxu0 %v3636
    %3652 = vmatpush.bf16.msra.mxu0 %v3635
    %3653 = vmatpush.bf16.msra.mxu0 %v3634
    %3654 = vmatpush.bf16.msra.mxu0 %v3633
    %3655 = vmatpush.bf16.msra.mxu0 %v3632
    %3656 = vmatmul.bf16.gmra.mxu0 %v3572
    %v3657 = vpop.f32.mrf.mxu0
    %v3658 = vadd.f32 %v3598, %v3657
    %v3659 = vpop.f32.mrf.mxu0
    %v3660 = vadd.f32 %v3598, %v3659
    %3661 = vmatmul.bf16.gmra.mxu0 %v3573
    %v3662 = vpop.f32.mrf.mxu0
    %v3663 = vadd.f32 %v3598, %v3662
    %v3664 = vpop.f32.mrf.mxu0
    %v3665 = vadd.f32 %v3598, %v3664
    %3666 = vmatmul.bf16.gmra.mxu0 %v3574
    %v3667 = vpop.f32.mrf.mxu0
    %v3668 = vadd.f32 %v3598, %v3667
    %v3669 = vpop.f32.mrf.mxu0
    %v3670 = vadd.f32 %v3598, %v3669
    %3671 = vmatmul.bf16.gmra.mxu0 %v3575
    %v3672 = vpop.f32.mrf.mxu0
    %v3673 = vadd.f32 %v3598, %v3672
    %v3674 = vpop.f32.mrf.mxu0
    %v3675 = vadd.f32 %v3598, %v3674
    %3676 = vmatmul.bf16.gmra.mxu0 %v3576
    %v3677 = vpop.f32.mrf.mxu0
    %v3678 = vadd.f32 %v3598, %v3677
    %v3679 = vpop.f32.mrf.mxu0
    %v3680 = vadd.f32 %v3598, %v3679
    %3681 = vmatmul.bf16.gmra.mxu0 %v3577
    %v3682 = vpop.f32.mrf.mxu0
    %v3683 = vadd.f32 %v3598, %v3682
    %v3684 = vpop.f32.mrf.mxu0
    %v3685 = vadd.f32 %v3598, %v3684
    %3686 = vmatmul.bf16.gmra.mxu0 %v3578
    %v3687 = vpop.f32.mrf.mxu0
    %v3688 = vadd.f32 %v3598, %v3687
    %v3689 = vpop.f32.mrf.mxu0
    %v3690 = vadd.f32 %v3598, %v3689
    %3691 = vmatmul.bf16.gmra.mxu0 %v3579
    %v3692 = vpop.f32.mrf.mxu0
    %v3693 = vadd.f32 %v3598, %v3692
    %v3694 = vpop.f32.mrf.mxu0
    %v3695 = vadd.f32 %v3598, %v3694
    %3696 = vdwg.mxu0
    %v3697 = vadd.f32 %v148, %v3658
    %v3698 = vadd.f32 %v149, %v3660
    %v3699 = vadd.f32 %v150, %v3663
    %v3700 = vadd.f32 %v151, %v3665
    %v3701 = vadd.f32 %v152, %v3668
    %v3702 = vadd.f32 %v153, %v3670
    %v3703 = vadd.f32 %v154, %v3673
    %v3704 = vadd.f32 %v155, %v3675
    %v3705 = vadd.f32 %v156, %v3678
    %v3706 = vadd.f32 %v157, %v3680
    %v3707 = vadd.f32 %v158, %v3683
    %v3708 = vadd.f32 %v159, %v3685
    %v3709 = vadd.f32 %v160, %v3688
    %v3710 = vadd.f32 %v161, %v3690
    %v3711 = vadd.f32 %v162, %v3693
    %v3712 = vadd.f32 %v163, %v3695
    %v3713 = vld [vmem:[%s6] sm:$0x1]
    %v3714 = vld [vmem:[#allocation10] sm:$0x1]
    %3715 = vadd.xlane.f32.xlu0 %v3697
    %v3716 = vpop.xlane.xlu0 %3715
    %3717 = vadd.xlane.f32.xlu0 %v3698
    %v3718 = vpop.xlane.xlu0 %3717
    %3719 = vadd.xlane.f32.xlu0 %v3699
    %v3720 = vpop.xlane.xlu0 %3719
    %3721 = vadd.xlane.f32.xlu0 %v3700
    %v3722 = vpop.xlane.xlu0 %3721
    %3723 = vadd.xlane.f32.xlu0 %v3701
    %v3724 = vpop.xlane.xlu0 %3723
    %3725 = vadd.xlane.f32.xlu0 %v3702
    %v3726 = vpop.xlane.xlu0 %3725
    %3727 = vadd.xlane.f32.xlu0 %v3703
    %v3728 = vpop.xlane.xlu0 %3727
    %3729 = vadd.xlane.f32.xlu0 %v3704
    %v3730 = vpop.xlane.xlu0 %3729
    %3731 = vadd.xlane.f32.xlu0 %v3705
    %v3732 = vpop.xlane.xlu0 %3731
    %3733 = vadd.xlane.f32.xlu0 %v3706
    %v3734 = vpop.xlane.xlu0 %3733
    %3735 = vadd.xlane.f32.xlu0 %v3707
    %v3736 = vpop.xlane.xlu0 %3735
    %3737 = vadd.xlane.f32.xlu0 %v3708
    %v3738 = vpop.xlane.xlu0 %3737
    %3739 = vadd.xlane.f32.xlu0 %v3709
    %v3740 = vpop.xlane.xlu0 %3739
    %3741 = vadd.xlane.f32.xlu0 %v3710
    %v3742 = vpop.xlane.xlu0 %3741
    %3743 = vadd.xlane.f32.xlu0 %v3711
    %v3744 = vpop.xlane.xlu0 %3743
    %3745 = vadd.xlane.f32.xlu0 %v3712
    %v3746 = vpop.xlane.xlu0 %3745
    %v3747 = vmul.f32 %v3716, %v204
    %v3748 = vmul.f32 %v3718, %v204
    %v3749 = vmul.f32 %v3720, %v204
    %v3750 = vmul.f32 %v3722, %v204
    %v3751 = vmul.f32 %v3724, %v204
    %v3752 = vmul.f32 %v3726, %v204
    %v3753 = vmul.f32 %v3728, %v204
    %v3754 = vmul.f32 %v3730, %v204
    %v3755 = vmul.f32 %v3732, %v204
    %v3756 = vmul.f32 %v3734, %v204
    %v3757 = vmul.f32 %v3736, %v204
    %v3758 = vmul.f32 %v3738, %v204
    %v3759 = vmul.f32 %v3740, %v204
    %v3760 = vmul.f32 %v3742, %v204
    %v3761 = vmul.f32 %v3744, %v204
    %v3762 = vmul.f32 %v3746, %v204
    %v3763 = vsub.f32 %v3697, %v3747
    %v3764 = vsub.f32 %v3698, %v3748
    %v3765 = vsub.f32 %v3699, %v3749
    %v3766 = vsub.f32 %v3700, %v3750
    %v3767 = vsub.f32 %v3701, %v3751
    %v3768 = vsub.f32 %v3702, %v3752
    %v3769 = vsub.f32 %v3703, %v3753
    %v3770 = vsub.f32 %v3704, %v3754
    %v3771 = vsub.f32 %v3705, %v3755
    %v3772 = vsub.f32 %v3706, %v3756
    %v3773 = vsub.f32 %v3707, %v3757
    %v3774 = vsub.f32 %v3708, %v3758
    %v3775 = vsub.f32 %v3709, %v3759
    %v3776 = vsub.f32 %v3710, %v3760
    %v3777 = vsub.f32 %v3711, %v3761
    %v3778 = vsub.f32 %v3712, %v3762
    %v3779 = vmul.f32 %v3763, %v3763
    %v3780 = vmul.f32 %v3764, %v3764
    %v3781 = vmul.f32 %v3765, %v3765
    %v3782 = vmul.f32 %v3766, %v3766
    %v3783 = vmul.f32 %v3767, %v3767
    %v3784 = vmul.f32 %v3768, %v3768
    %v3785 = vmul.f32 %v3769, %v3769
    %v3786 = vmul.f32 %v3770, %v3770
    %v3787 = vmul.f32 %v3771, %v3771
    %v3788 = vmul.f32 %v3772, %v3772
    %v3789 = vmul.f32 %v3773, %v3773
    %v3790 = vmul.f32 %v3774, %v3774
    %v3791 = vmul.f32 %v3775, %v3775
    %v3792 = vmul.f32 %v3776, %v3776
    %v3793 = vmul.f32 %v3777, %v3777
    %v3794 = vmul.f32 %v3778, %v3778
    %3795 = vadd.xlane.f32.xlu0 %v3779
    %v3796 = vpop.xlane.xlu0 %3795
    %3797 = vadd.xlane.f32.xlu0 %v3780
    %v3798 = vpop.xlane.xlu0 %3797
    %3799 = vadd.xlane.f32.xlu0 %v3781
    %v3800 = vpop.xlane.xlu0 %3799
    %3801 = vadd.xlane.f32.xlu0 %v3782
    %v3802 = vpop.xlane.xlu0 %3801
    %3803 = vadd.xlane.f32.xlu0 %v3783
    %v3804 = vpop.xlane.xlu0 %3803
    %3805 = vadd.xlane.f32.xlu0 %v3784
    %v3806 = vpop.xlane.xlu0 %3805
    %3807 = vadd.xlane.f32.xlu0 %v3785
    %v3808 = vpop.xlane.xlu0 %3807
    %3809 = vadd.xlane.f32.xlu0 %v3786
    %v3810 = vpop.xlane.xlu0 %3809
    %3811 = vadd.xlane.f32.xlu0 %v3787
    %v3812 = vpop.xlane.xlu0 %3811
    %3813 = vadd.xlane.f32.xlu0 %v3788
    %v3814 = vpop.xlane.xlu0 %3813
    %3815 = vadd.xlane.f32.xlu0 %v3789
    %v3816 = vpop.xlane.xlu0 %3815
    %3817 = vadd.xlane.f32.xlu0 %v3790
    %v3818 = vpop.xlane.xlu0 %3817
    %3819 = vadd.xlane.f32.xlu0 %v3791
    %v3820 = vpop.xlane.xlu0 %3819
    %3821 = vadd.xlane.f32.xlu0 %v3792
    %v3822 = vpop.xlane.xlu0 %3821
    %3823 = vadd.xlane.f32.xlu0 %v3793
    %v3824 = vpop.xlane.xlu0 %3823
    %3825 = vadd.xlane.f32.xlu0 %v3794
    %v3826 = vpop.xlane.xlu0 %3825
    %v3827 = vmul.f32 %v3796, %v204
    %v3828 = vmul.f32 %v3798, %v204
    %v3829 = vmul.f32 %v3800, %v204
    %v3830 = vmul.f32 %v3802, %v204
    %v3831 = vmul.f32 %v3804, %v204
    %v3832 = vmul.f32 %v3806, %v204
    %v3833 = vmul.f32 %v3808, %v204
    %v3834 = vmul.f32 %v3810, %v204
    %v3835 = vmul.f32 %v3812, %v204
    %v3836 = vmul.f32 %v3814, %v204
    %v3837 = vmul.f32 %v3816, %v204
    %v3838 = vmul.f32 %v3818, %v204
    %v3839 = vmul.f32 %v3820, %v204
    %v3840 = vmul.f32 %v3822, %v204
    %v3841 = vmul.f32 %v3824, %v204
    %v3842 = vmul.f32 %v3826, %v204
    %v3843 = vadd.f32 %v3827, 1e-05
    %v3844 = vadd.f32 %v3828, 1e-05
    %v3845 = vadd.f32 %v3829, 1e-05
    %v3846 = vadd.f32 %v3830, 1e-05
    %v3847 = vadd.f32 %v3831, 1e-05
    %v3848 = vadd.f32 %v3832, 1e-05
    %v3849 = vadd.f32 %v3833, 1e-05
    %v3850 = vadd.f32 %v3834, 1e-05
    %v3851 = vadd.f32 %v3835, 1e-05
    %v3852 = vadd.f32 %v3836, 1e-05
    %v3853 = vadd.f32 %v3837, 1e-05
    %v3854 = vadd.f32 %v3838, 1e-05
    %v3855 = vadd.f32 %v3839, 1e-05
    %v3856 = vadd.f32 %v3840, 1e-05
    %v3857 = vadd.f32 %v3841, 1e-05
    %v3858 = vadd.f32 %v3842, 1e-05
    %v3859 = vrsqrt.pop %v3843
    %v3860 = vmul.f32 %v3859, %v3843
    %v3861 = vmul.f32 %v3860, %v3859
    %v3862 = vmul.f32 0.5, %v3861
    %v3863 = vsub.f32 1.5, %v3862
    %v3864 = vmul.f32 %v3859, %v3863
    %vm3865 = vweird.f32 %v3843
    %vm3866 = vweird.f32 %v3859
    %vm3867 = vmor %vm3865, %vm3866
    %v3868 = vsel %vm3867, %v3859, %v3864
    %v3869 = vrsqrt.pop %v3844
    %v3870 = vmul.f32 %v3869, %v3844
    %v3871 = vmul.f32 %v3870, %v3869
    %v3872 = vmul.f32 0.5, %v3871
    %v3873 = vsub.f32 1.5, %v3872
    %v3874 = vmul.f32 %v3869, %v3873
    %vm3875 = vweird.f32 %v3844
    %vm3876 = vweird.f32 %v3869
    %vm3877 = vmor %vm3875, %vm3876
    %v3878 = vsel %vm3877, %v3869, %v3874
    %v3879 = vrsqrt.pop %v3845
    %v3880 = vmul.f32 %v3879, %v3845
    %v3881 = vmul.f32 %v3880, %v3879
    %v3882 = vmul.f32 0.5, %v3881
    %v3883 = vsub.f32 1.5, %v3882
    %v3884 = vmul.f32 %v3879, %v3883
    %vm3885 = vweird.f32 %v3845
    %vm3886 = vweird.f32 %v3879
    %vm3887 = vmor %vm3885, %vm3886
    %v3888 = vsel %vm3887, %v3879, %v3884
    %v3889 = vrsqrt.pop %v3846
    %v3890 = vmul.f32 %v3889, %v3846
    %v3891 = vmul.f32 %v3890, %v3889
    %v3892 = vmul.f32 0.5, %v3891
    %v3893 = vsub.f32 1.5, %v3892
    %v3894 = vmul.f32 %v3889, %v3893
    %vm3895 = vweird.f32 %v3846
    %vm3896 = vweird.f32 %v3889
    %vm3897 = vmor %vm3895, %vm3896
    %v3898 = vsel %vm3897, %v3889, %v3894
    %v3899 = vrsqrt.pop %v3847
    %v3900 = vmul.f32 %v3899, %v3847
    %v3901 = vmul.f32 %v3900, %v3899
    %v3902 = vmul.f32 0.5, %v3901
    %v3903 = vsub.f32 1.5, %v3902
    %v3904 = vmul.f32 %v3899, %v3903
    %vm3905 = vweird.f32 %v3847
    %vm3906 = vweird.f32 %v3899
    %vm3907 = vmor %vm3905, %vm3906
    %v3908 = vsel %vm3907, %v3899, %v3904
    %v3909 = vrsqrt.pop %v3848
    %v3910 = vmul.f32 %v3909, %v3848
    %v3911 = vmul.f32 %v3910, %v3909
    %v3912 = vmul.f32 0.5, %v3911
    %v3913 = vsub.f32 1.5, %v3912
    %v3914 = vmul.f32 %v3909, %v3913
    %vm3915 = vweird.f32 %v3848
    %vm3916 = vweird.f32 %v3909
    %vm3917 = vmor %vm3915, %vm3916
    %v3918 = vsel %vm3917, %v3909, %v3914
    %v3919 = vrsqrt.pop %v3849
    %v3920 = vmul.f32 %v3919, %v3849
    %v3921 = vmul.f32 %v3920, %v3919
    %v3922 = vmul.f32 0.5, %v3921
    %v3923 = vsub.f32 1.5, %v3922
    %v3924 = vmul.f32 %v3919, %v3923
    %vm3925 = vweird.f32 %v3849
    %vm3926 = vweird.f32 %v3919
    %vm3927 = vmor %vm3925, %vm3926
    %v3928 = vsel %vm3927, %v3919, %v3924
    %v3929 = vrsqrt.pop %v3850
    %v3930 = vmul.f32 %v3929, %v3850
    %v3931 = vmul.f32 %v3930, %v3929
    %v3932 = vmul.f32 0.5, %v3931
    %v3933 = vsub.f32 1.5, %v3932
    %v3934 = vmul.f32 %v3929, %v3933
    %vm3935 = vweird.f32 %v3850
    %vm3936 = vweird.f32 %v3929
    %vm3937 = vmor %vm3935, %vm3936
    %v3938 = vsel %vm3937, %v3929, %v3934
    %v3939 = vrsqrt.pop %v3851
    %v3940 = vmul.f32 %v3939, %v3851
    %v3941 = vmul.f32 %v3940, %v3939
    %v3942 = vmul.f32 0.5, %v3941
    %v3943 = vsub.f32 1.5, %v3942
    %v3944 = vmul.f32 %v3939, %v3943
    %vm3945 = vweird.f32 %v3851
    %vm3946 = vweird.f32 %v3939
    %vm3947 = vmor %vm3945, %vm3946
    %v3948 = vsel %vm3947, %v3939, %v3944
    %v3949 = vrsqrt.pop %v3852
    %v3950 = vmul.f32 %v3949, %v3852
    %v3951 = vmul.f32 %v3950, %v3949
    %v3952 = vmul.f32 0.5, %v3951
    %v3953 = vsub.f32 1.5, %v3952
    %v3954 = vmul.f32 %v3949, %v3953
    %vm3955 = vweird.f32 %v3852
    %vm3956 = vweird.f32 %v3949
    %vm3957 = vmor %vm3955, %vm3956
    %v3958 = vsel %vm3957, %v3949, %v3954
    %v3959 = vrsqrt.pop %v3853
    %v3960 = vmul.f32 %v3959, %v3853
    %v3961 = vmul.f32 %v3960, %v3959
    %v3962 = vmul.f32 0.5, %v3961
    %v3963 = vsub.f32 1.5, %v3962
    %v3964 = vmul.f32 %v3959, %v3963
    %vm3965 = vweird.f32 %v3853
    %vm3966 = vweird.f32 %v3959
    %vm3967 = vmor %vm3965, %vm3966
    %v3968 = vsel %vm3967, %v3959, %v3964
    %v3969 = vrsqrt.pop %v3854
    %v3970 = vmul.f32 %v3969, %v3854
    %v3971 = vmul.f32 %v3970, %v3969
    %v3972 = vmul.f32 0.5, %v3971
    %v3973 = vsub.f32 1.5, %v3972
    %v3974 = vmul.f32 %v3969, %v3973
    %vm3975 = vweird.f32 %v3854
    %vm3976 = vweird.f32 %v3969
    %vm3977 = vmor %vm3975, %vm3976
    %v3978 = vsel %vm3977, %v3969, %v3974
    %v3979 = vrsqrt.pop %v3855
    %v3980 = vmul.f32 %v3979, %v3855
    %v3981 = vmul.f32 %v3980, %v3979
    %v3982 = vmul.f32 0.5, %v3981
    %v3983 = vsub.f32 1.5, %v3982
    %v3984 = vmul.f32 %v3979, %v3983
    %vm3985 = vweird.f32 %v3855
    %vm3986 = vweird.f32 %v3979
    %vm3987 = vmor %vm3985, %vm3986
    %v3988 = vsel %vm3987, %v3979, %v3984
    %v3989 = vrsqrt.pop %v3856
    %v3990 = vmul.f32 %v3989, %v3856
    %v3991 = vmul.f32 %v3990, %v3989
    %v3992 = vmul.f32 0.5, %v3991
    %v3993 = vsub.f32 1.5, %v3992
    %v3994 = vmul.f32 %v3989, %v3993
    %vm3995 = vweird.f32 %v3856
    %vm3996 = vweird.f32 %v3989
    %vm3997 = vmor %vm3995, %vm3996
    %v3998 = vsel %vm3997, %v3989, %v3994
    %v3999 = vrsqrt.pop %v3857
    %v4000 = vmul.f32 %v3999, %v3857
    %v4001 = vmul.f32 %v4000, %v3999
    %v4002 = vmul.f32 0.5, %v4001
    %v4003 = vsub.f32 1.5, %v4002
    %v4004 = vmul.f32 %v3999, %v4003
    %vm4005 = vweird.f32 %v3857
    %vm4006 = vweird.f32 %v3999
    %vm4007 = vmor %vm4005, %vm4006
    %v4008 = vsel %vm4007, %v3999, %v4004
    %v4009 = vrsqrt.pop %v3858
    %v4010 = vmul.f32 %v4009, %v3858
    %v4011 = vmul.f32 %v4010, %v4009
    %v4012 = vmul.f32 0.5, %v4011
    %v4013 = vsub.f32 1.5, %v4012
    %v4014 = vmul.f32 %v4009, %v4013
    %vm4015 = vweird.f32 %v3858
    %vm4016 = vweird.f32 %v4009
    %vm4017 = vmor %vm4015, %vm4016
    %v4018 = vsel %vm4017, %v4009, %v4014
    %v4019 = vmul.f32 %v3763, %v3868
    %v4020 = vmul.f32 %v3764, %v3878
    %v4021 = vmul.f32 %v3765, %v3888
    %v4022 = vmul.f32 %v3766, %v3898
    %v4023 = vmul.f32 %v3767, %v3908
    %v4024 = vmul.f32 %v3768, %v3918
    %v4025 = vmul.f32 %v3769, %v3928
    %v4026 = vmul.f32 %v3770, %v3938
    %v4027 = vmul.f32 %v3771, %v3948
    %v4028 = vmul.f32 %v3772, %v3958
    %v4029 = vmul.f32 %v3773, %v3968
    %v4030 = vmul.f32 %v3774, %v3978
    %v4031 = vmul.f32 %v3775, %v3988
    %v4032 = vmul.f32 %v3776, %v3998
    %v4033 = vmul.f32 %v3777, %v4008
    %v4034 = vmul.f32 %v3778, %v4018
    %v4036 = vperm.slane %v3713, 0
    %v4038 = vmul.f32 %v4019, %v4036
    %v4039 = vmul.f32 %v4020, %v4036
    %v4040 = vmul.f32 %v4021, %v4036
    %v4041 = vmul.f32 %v4022, %v4036
    %v4042 = vmul.f32 %v4023, %v4036
    %v4043 = vmul.f32 %v4024, %v4036
    %v4044 = vmul.f32 %v4025, %v4036
    %v4045 = vmul.f32 %v4026, %v4036
    %v4046 = vmul.f32 %v4027, %v4036
    %v4047 = vmul.f32 %v4028, %v4036
    %v4048 = vmul.f32 %v4029, %v4036
    %v4049 = vmul.f32 %v4030, %v4036
    %v4050 = vmul.f32 %v4031, %v4036
    %v4051 = vmul.f32 %v4032, %v4036
    %v4052 = vmul.f32 %v4033, %v4036
    %v4053 = vmul.f32 %v4034, %v4036
    %v4055 = vperm.slane %v3714, 0
    %v4057 = vadd.f32 %v4038, %v4055
    %v4058 = vadd.f32 %v4039, %v4055
    %v4059 = vadd.f32 %v4040, %v4055
    %v4060 = vadd.f32 %v4041, %v4055
    %v4061 = vadd.f32 %v4042, %v4055
    %v4062 = vadd.f32 %v4043, %v4055
    %v4063 = vadd.f32 %v4044, %v4055
    %v4064 = vadd.f32 %v4045, %v4055
    %v4065 = vadd.f32 %v4046, %v4055
    %v4066 = vadd.f32 %v4047, %v4055
    %v4067 = vadd.f32 %v4048, %v4055
    %v4068 = vadd.f32 %v4049, %v4055
    %v4069 = vadd.f32 %v4050, %v4055
    %v4070 = vadd.f32 %v4051, %v4055
    %v4071 = vadd.f32 %v4052, %v4055
    %v4072 = vadd.f32 %v4053, %v4055
    %v4073 = vpack.c.bf16 %v4058, %v4057
    %v4074 = vpack.c.bf16 %v4060, %v4059
    %v4075 = vpack.c.bf16 %v4062, %v4061
    %v4076 = vpack.c.bf16 %v4064, %v4063
    %v4077 = vpack.c.bf16 %v4066, %v4065
    %v4078 = vpack.c.bf16 %v4068, %v4067
    %v4079 = vpack.c.bf16 %v4070, %v4069
    %v4080 = vpack.c.bf16 %v4072, %v4071
    %v4081 = vld [vmem:[#allocation11] sm:$0xff]
    %v4082 = vld [vmem:[#allocation11 + $0x8] sm:$0xff]
    %v4083 = vld [vmem:[#allocation11 + $0x10] sm:$0xff]
    %v4084 = vld [vmem:[#allocation11 + $0x18] sm:$0xff]
    %v4085 = vld [vmem:[#allocation11 + $0x20] sm:$0xff]
    %v4086 = vld [vmem:[#allocation11 + $0x28] sm:$0xff]
    %v4087 = vld [vmem:[#allocation11 + $0x30] sm:$0xff]
    %v4088 = vld [vmem:[#allocation11 + $0x38] sm:$0xff]
    %v4089 = vld [vmem:[#allocation11 + $0x40] sm:$0xff]
    %v4090 = vld [vmem:[#allocation11 + $0x48] sm:$0xff]
    %v4091 = vld [vmem:[#allocation11 + $0x50] sm:$0xff]
    %v4092 = vld [vmem:[#allocation11 + $0x58] sm:$0xff]
    %v4093 = vld [vmem:[#allocation11 + $0x60] sm:$0xff]
    %v4094 = vld [vmem:[#allocation11 + $0x68] sm:$0xff]
    %v4095 = vld [vmem:[#allocation11 + $0x70] sm:$0xff]
    %v4096 = vld [vmem:[#allocation11 + $0x78] sm:$0xff]
    %v4097 = vld [vmem:[#allocation11 + $0x80] sm:$0xff]
    %v4098 = vld [vmem:[#allocation11 + $0x88] sm:$0xff]
    %v4099 = vld [vmem:[#allocation11 + $0x90] sm:$0xff]
    %v4100 = vld [vmem:[#allocation11 + $0x98] sm:$0xff]
    %v4101 = vld [vmem:[#allocation11 + $0xa0] sm:$0xff]
    %v4102 = vld [vmem:[#allocation11 + $0xa8] sm:$0xff]
    %v4103 = vld [vmem:[#allocation11 + $0xb0] sm:$0xff]
    %v4104 = vld [vmem:[#allocation11 + $0xb8] sm:$0xff]
    %v4105 = vld [vmem:[#allocation11 + $0xc0] sm:$0xff]
    %v4106 = vld [vmem:[#allocation11 + $0xc8] sm:$0xff]
    %v4107 = vld [vmem:[#allocation11 + $0xd0] sm:$0xff]
    %v4108 = vld [vmem:[#allocation11 + $0xd8] sm:$0xff]
    %v4109 = vld [vmem:[#allocation11 + $0xe0] sm:$0xff]
    %v4110 = vld [vmem:[#allocation11 + $0xe8] sm:$0xff]
    %v4111 = vld [vmem:[#allocation11 + $0xf0] sm:$0xff]
    %v4112 = vld [vmem:[#allocation11 + $0xf8] sm:$0xff]
    %v4113 = vld [vmem:[%s9] sm:$0xf]
    %v4115 = vperm.slane %v4113, 0
    %v4116 = vperm.slane %v4113, 1
    %v4117 = vperm.slane %v4113, 2
    %v4118 = vperm.slane %v4113, 3
    %v4155 = vunpack.c.l.b16 %v4081
    %v4156 = vunpack.c.h.b16 %v4081
    %v4157 = vunpack.c.l.b16 %v4082
    %v4158 = vunpack.c.h.b16 %v4082
    %v4159 = vunpack.c.l.b16 %v4083
    %v4160 = vunpack.c.h.b16 %v4083
    %v4161 = vunpack.c.l.b16 %v4084
    %v4162 = vunpack.c.h.b16 %v4084
    %v4163 = vunpack.c.l.b16 %v4085
    %v4164 = vunpack.c.h.b16 %v4085
    %v4165 = vunpack.c.l.b16 %v4086
    %v4166 = vunpack.c.h.b16 %v4086
    %v4167 = vunpack.c.l.b16 %v4087
    %v4168 = vunpack.c.h.b16 %v4087
    %v4169 = vunpack.c.l.b16 %v4088
    %v4170 = vunpack.c.h.b16 %v4088
    %v4171 = vunpack.c.l.b16 %v4089
    %v4172 = vunpack.c.h.b16 %v4089
    %v4173 = vunpack.c.l.b16 %v4090
    %v4174 = vunpack.c.h.b16 %v4090
    %v4175 = vunpack.c.l.b16 %v4091
    %v4176 = vunpack.c.h.b16 %v4091
    %v4177 = vunpack.c.l.b16 %v4092
    %v4178 = vunpack.c.h.b16 %v4092
    %v4179 = vunpack.c.l.b16 %v4093
    %v4180 = vunpack.c.h.b16 %v4093
    %v4181 = vunpack.c.l.b16 %v4094
    %v4182 = vunpack.c.h.b16 %v4094
    %v4183 = vunpack.c.l.b16 %v4095
    %v4184 = vunpack.c.h.b16 %v4095
    %v4185 = vunpack.c.l.b16 %v4096
    %v4186 = vunpack.c.h.b16 %v4096
    %v4187 = vunpack.c.l.b16 %v4097
    %v4188 = vunpack.c.h.b16 %v4097
    %v4189 = vunpack.c.l.b16 %v4098
    %v4190 = vunpack.c.h.b16 %v4098
    %v4191 = vunpack.c.l.b16 %v4099
    %v4192 = vunpack.c.h.b16 %v4099
    %v4193 = vunpack.c.l.b16 %v4100
    %v4194 = vunpack.c.h.b16 %v4100
    %v4195 = vunpack.c.l.b16 %v4101
    %v4196 = vunpack.c.h.b16 %v4101
    %v4197 = vunpack.c.l.b16 %v4102
    %v4198 = vunpack.c.h.b16 %v4102
    %v4199 = vunpack.c.l.b16 %v4103
    %v4200 = vunpack.c.h.b16 %v4103
    %v4201 = vunpack.c.l.b16 %v4104
    %v4202 = vunpack.c.h.b16 %v4104
    %v4203 = vunpack.c.l.b16 %v4105
    %v4204 = vunpack.c.h.b16 %v4105
    %v4205 = vunpack.c.l.b16 %v4106
    %v4206 = vunpack.c.h.b16 %v4106
    %v4207 = vunpack.c.l.b16 %v4107
    %v4208 = vunpack.c.h.b16 %v4107
    %v4209 = vunpack.c.l.b16 %v4108
    %v4210 = vunpack.c.h.b16 %v4108
    %v4211 = vunpack.c.l.b16 %v4109
    %v4212 = vunpack.c.h.b16 %v4109
    %v4213 = vunpack.c.l.b16 %v4110
    %v4214 = vunpack.c.h.b16 %v4110
    %v4215 = vunpack.c.l.b16 %v4111
    %v4216 = vunpack.c.h.b16 %v4111
    %v4217 = vunpack.c.l.b16 %v4112
    %v4218 = vunpack.c.h.b16 %v4112
    %v4219 = vpack.c.b16 %v4159, %v4155
    %v4220 = vpack.c.b16 %v4160, %v4156
    %v4221 = vpack.c.b16 %v4161, %v4157
    %v4222 = vpack.c.b16 %v4162, %v4158
    %v4223 = vpack.c.b16 %v4167, %v4163
    %v4224 = vpack.c.b16 %v4168, %v4164
    %v4225 = vpack.c.b16 %v4169, %v4165
    %v4226 = vpack.c.b16 %v4170, %v4166
    %v4227 = vpack.c.b16 %v4175, %v4171
    %v4228 = vpack.c.b16 %v4176, %v4172
    %v4229 = vpack.c.b16 %v4177, %v4173
    %v4230 = vpack.c.b16 %v4178, %v4174
    %v4231 = vpack.c.b16 %v4183, %v4179
    %v4232 = vpack.c.b16 %v4184, %v4180
    %v4233 = vpack.c.b16 %v4185, %v4181
    %v4234 = vpack.c.b16 %v4186, %v4182
    %v4235 = vpack.c.b16 %v4191, %v4187
    %v4236 = vpack.c.b16 %v4192, %v4188
    %v4237 = vpack.c.b16 %v4193, %v4189
    %v4238 = vpack.c.b16 %v4194, %v4190
    %v4239 = vpack.c.b16 %v4199, %v4195
    %v4240 = vpack.c.b16 %v4200, %v4196
    %v4241 = vpack.c.b16 %v4201, %v4197
    %v4242 = vpack.c.b16 %v4202, %v4198
    %v4243 = vpack.c.b16 %v4207, %v4203
    %v4244 = vpack.c.b16 %v4208, %v4204
    %v4245 = vpack.c.b16 %v4209, %v4205
    %v4246 = vpack.c.b16 %v4210, %v4206
    %v4247 = vpack.c.b16 %v4215, %v4211
    %v4248 = vpack.c.b16 %v4216, %v4212
    %v4249 = vpack.c.b16 %v4217, %v4213
    %v4250 = vpack.c.b16 %v4218, %v4214
    %4283 = vmatpush.bf16.msra.mxu0 %v4247
    %4284 = vmatpush.bf16.msra.mxu0 %v4243
    %4285 = vmatpush.bf16.msra.mxu0 %v4239
    %4286 = vmatpush.bf16.msra.mxu0 %v4235
    %4287 = vmatpush.bf16.msra.mxu0 %v4231
    %4288 = vmatpush.bf16.msra.mxu0 %v4227
    %4289 = vmatpush.bf16.msra.mxu0 %v4223
    %4290 = vmatpush.bf16.msra.mxu0 %v4219
    %4291 = vmatmul.bf16.gmra.mxu0 %v4073
    %v4292 = vpop.f32.mrf.mxu0
    %v4293 = vadd.f32 %v4115, %v4292
    %v4294 = vpop.f32.mrf.mxu0
    %v4295 = vadd.f32 %v4115, %v4294
    %4296 = vmatmul.bf16.gmra.mxu0 %v4074
    %v4297 = vpop.f32.mrf.mxu0
    %v4298 = vadd.f32 %v4115, %v4297
    %v4299 = vpop.f32.mrf.mxu0
    %v4300 = vadd.f32 %v4115, %v4299
    %4301 = vmatmul.bf16.gmra.mxu0 %v4075
    %v4302 = vpop.f32.mrf.mxu0
    %v4303 = vadd.f32 %v4115, %v4302
    %v4304 = vpop.f32.mrf.mxu0
    %v4305 = vadd.f32 %v4115, %v4304
    %4306 = vmatmul.bf16.gmra.mxu0 %v4076
    %v4307 = vpop.f32.mrf.mxu0
    %v4308 = vadd.f32 %v4115, %v4307
    %v4309 = vpop.f32.mrf.mxu0
    %v4310 = vadd.f32 %v4115, %v4309
    %4311 = vmatmul.bf16.gmra.mxu0 %v4077
    %v4312 = vpop.f32.mrf.mxu0
    %v4313 = vadd.f32 %v4115, %v4312
    %v4314 = vpop.f32.mrf.mxu0
    %v4315 = vadd.f32 %v4115, %v4314
    %4316 = vmatmul.bf16.gmra.mxu0 %v4078
    %v4317 = vpop.f32.mrf.mxu0
    %v4318 = vadd.f32 %v4115, %v4317
    %v4319 = vpop.f32.mrf.mxu0
    %v4320 = vadd.f32 %v4115, %v4319
    %4321 = vmatmul.bf16.gmra.mxu0 %v4079
    %v4322 = vpop.f32.mrf.mxu0
    %v4323 = vadd.f32 %v4115, %v4322
    %v4324 = vpop.f32.mrf.mxu0
    %v4325 = vadd.f32 %v4115, %v4324
    %4326 = vmatmul.bf16.gmra.mxu0 %v4080
    %v4327 = vpop.f32.mrf.mxu0
    %v4328 = vadd.f32 %v4115, %v4327
    %v4329 = vpop.f32.mrf.mxu0
    %v4330 = vadd.f32 %v4115, %v4329
    %4331 = vdwg.mxu0
    %4332 = vmatpush.bf16.msra.mxu0 %v4248
    %4333 = vmatpush.bf16.msra.mxu0 %v4244
    %4334 = vmatpush.bf16.msra.mxu0 %v4240
    %4335 = vmatpush.bf16.msra.mxu0 %v4236
    %4336 = vmatpush.bf16.msra.mxu0 %v4232
    %4337 = vmatpush.bf16.msra.mxu0 %v4228
    %4338 = vmatpush.bf16.msra.mxu0 %v4224
    %4339 = vmatpush.bf16.msra.mxu0 %v4220
    %4340 = vmatmul.bf16.gmra.mxu0 %v4073
    %v4341 = vpop.f32.mrf.mxu0
    %v4342 = vadd.f32 %v4116, %v4341
    %v4343 = vpop.f32.mrf.mxu0
    %v4344 = vadd.f32 %v4116, %v4343
    %4345 = vmatmul.bf16.gmra.mxu0 %v4074
    %v4346 = vpop.f32.mrf.mxu0
    %v4347 = vadd.f32 %v4116, %v4346
    %v4348 = vpop.f32.mrf.mxu0
    %v4349 = vadd.f32 %v4116, %v4348
    %4350 = vmatmul.bf16.gmra.mxu0 %v4075
    %v4351 = vpop.f32.mrf.mxu0
    %v4352 = vadd.f32 %v4116, %v4351
    %v4353 = vpop.f32.mrf.mxu0
    %v4354 = vadd.f32 %v4116, %v4353
    %4355 = vmatmul.bf16.gmra.mxu0 %v4076
    %v4356 = vpop.f32.mrf.mxu0
    %v4357 = vadd.f32 %v4116, %v4356
    %v4358 = vpop.f32.mrf.mxu0
    %v4359 = vadd.f32 %v4116, %v4358
    %4360 = vmatmul.bf16.gmra.mxu0 %v4077
    %v4361 = vpop.f32.mrf.mxu0
    %v4362 = vadd.f32 %v4116, %v4361
    %v4363 = vpop.f32.mrf.mxu0
    %v4364 = vadd.f32 %v4116, %v4363
    %4365 = vmatmul.bf16.gmra.mxu0 %v4078
    %v4366 = vpop.f32.mrf.mxu0
    %v4367 = vadd.f32 %v4116, %v4366
    %v4368 = vpop.f32.mrf.mxu0
    %v4369 = vadd.f32 %v4116, %v4368
    %4370 = vmatmul.bf16.gmra.mxu0 %v4079
    %v4371 = vpop.f32.mrf.mxu0
    %v4372 = vadd.f32 %v4116, %v4371
    %v4373 = vpop.f32.mrf.mxu0
    %v4374 = vadd.f32 %v4116, %v4373
    %4375 = vmatmul.bf16.gmra.mxu0 %v4080
    %v4376 = vpop.f32.mrf.mxu0
    %v4377 = vadd.f32 %v4116, %v4376
    %v4378 = vpop.f32.mrf.mxu0
    %v4379 = vadd.f32 %v4116, %v4378
    %4380 = vdwg.mxu0
    %4381 = vmatpush.bf16.msra.mxu0 %v4249
    %4382 = vmatpush.bf16.msra.mxu0 %v4245
    %4383 = vmatpush.bf16.msra.mxu0 %v4241
    %4384 = vmatpush.bf16.msra.mxu0 %v4237
    %4385 = vmatpush.bf16.msra.mxu0 %v4233
    %4386 = vmatpush.bf16.msra.mxu0 %v4229
    %4387 = vmatpush.bf16.msra.mxu0 %v4225
    %4388 = vmatpush.bf16.msra.mxu0 %v4221
    %4389 = vmatmul.bf16.gmra.mxu0 %v4073
    %v4390 = vpop.f32.mrf.mxu0
    %v4391 = vadd.f32 %v4117, %v4390
    %v4392 = vpop.f32.mrf.mxu0
    %v4393 = vadd.f32 %v4117, %v4392
    %4394 = vmatmul.bf16.gmra.mxu0 %v4074
    %v4395 = vpop.f32.mrf.mxu0
    %v4396 = vadd.f32 %v4117, %v4395
    %v4397 = vpop.f32.mrf.mxu0
    %v4398 = vadd.f32 %v4117, %v4397
    %4399 = vmatmul.bf16.gmra.mxu0 %v4075
    %v4400 = vpop.f32.mrf.mxu0
    %v4401 = vadd.f32 %v4117, %v4400
    %v4402 = vpop.f32.mrf.mxu0
    %v4403 = vadd.f32 %v4117, %v4402
    %4404 = vmatmul.bf16.gmra.mxu0 %v4076
    %v4405 = vpop.f32.mrf.mxu0
    %v4406 = vadd.f32 %v4117, %v4405
    %v4407 = vpop.f32.mrf.mxu0
    %v4408 = vadd.f32 %v4117, %v4407
    %4409 = vmatmul.bf16.gmra.mxu0 %v4077
    %v4410 = vpop.f32.mrf.mxu0
    %v4411 = vadd.f32 %v4117, %v4410
    %v4412 = vpop.f32.mrf.mxu0
    %v4413 = vadd.f32 %v4117, %v4412
    %4414 = vmatmul.bf16.gmra.mxu0 %v4078
    %v4415 = vpop.f32.mrf.mxu0
    %v4416 = vadd.f32 %v4117, %v4415
    %v4417 = vpop.f32.mrf.mxu0
    %v4418 = vadd.f32 %v4117, %v4417
    %4419 = vmatmul.bf16.gmra.mxu0 %v4079
    %v4420 = vpop.f32.mrf.mxu0
    %v4421 = vadd.f32 %v4117, %v4420
    %v4422 = vpop.f32.mrf.mxu0
    %v4423 = vadd.f32 %v4117, %v4422
    %4424 = vmatmul.bf16.gmra.mxu0 %v4080
    %v4425 = vpop.f32.mrf.mxu0
    %v4426 = vadd.f32 %v4117, %v4425
    %v4427 = vpop.f32.mrf.mxu0
    %v4428 = vadd.f32 %v4117, %v4427
    %4429 = vdwg.mxu0
    %4430 = vmatpush.bf16.msra.mxu0 %v4250
    %4431 = vmatpush.bf16.msra.mxu0 %v4246
    %4432 = vmatpush.bf16.msra.mxu0 %v4242
    %4433 = vmatpush.bf16.msra.mxu0 %v4238
    %4434 = vmatpush.bf16.msra.mxu0 %v4234
    %4435 = vmatpush.bf16.msra.mxu0 %v4230
    %4436 = vmatpush.bf16.msra.mxu0 %v4226
    %4437 = vmatpush.bf16.msra.mxu0 %v4222
    %4438 = vmatmul.bf16.gmra.mxu0 %v4073
    %v4439 = vpop.f32.mrf.mxu0
    %v4440 = vadd.f32 %v4118, %v4439
    %v4441 = vpop.f32.mrf.mxu0
    %v4442 = vadd.f32 %v4118, %v4441
    %4443 = vmatmul.bf16.gmra.mxu0 %v4074
    %v4444 = vpop.f32.mrf.mxu0
    %v4445 = vadd.f32 %v4118, %v4444
    %v4446 = vpop.f32.mrf.mxu0
    %v4447 = vadd.f32 %v4118, %v4446
    %4448 = vmatmul.bf16.gmra.mxu0 %v4075
    %v4449 = vpop.f32.mrf.mxu0
    %v4450 = vadd.f32 %v4118, %v4449
    %v4451 = vpop.f32.mrf.mxu0
    %v4452 = vadd.f32 %v4118, %v4451
    %4453 = vmatmul.bf16.gmra.mxu0 %v4076
    %v4454 = vpop.f32.mrf.mxu0
    %v4455 = vadd.f32 %v4118, %v4454
    %v4456 = vpop.f32.mrf.mxu0
    %v4457 = vadd.f32 %v4118, %v4456
    %4458 = vmatmul.bf16.gmra.mxu0 %v4077
    %v4459 = vpop.f32.mrf.mxu0
    %v4460 = vadd.f32 %v4118, %v4459
    %v4461 = vpop.f32.mrf.mxu0
    %v4462 = vadd.f32 %v4118, %v4461
    %4463 = vmatmul.bf16.gmra.mxu0 %v4078
    %v4464 = vpop.f32.mrf.mxu0
    %v4465 = vadd.f32 %v4118, %v4464
    %v4466 = vpop.f32.mrf.mxu0
    %v4467 = vadd.f32 %v4118, %v4466
    %4468 = vmatmul.bf16.gmra.mxu0 %v4079
    %v4469 = vpop.f32.mrf.mxu0
    %v4470 = vadd.f32 %v4118, %v4469
    %v4471 = vpop.f32.mrf.mxu0
    %v4472 = vadd.f32 %v4118, %v4471
    %4473 = vmatmul.bf16.gmra.mxu0 %v4080
    %v4474 = vpop.f32.mrf.mxu0
    %v4475 = vadd.f32 %v4118, %v4474
    %v4476 = vpop.f32.mrf.mxu0
    %v4477 = vadd.f32 %v4118, %v4476
    %4478 = vdwg.mxu0
    %v4479 = vmax.f32 %v4293, 0.0
    %v4480 = vmax.f32 %v4342, 0.0
    %v4481 = vmax.f32 %v4391, 0.0
    %v4482 = vmax.f32 %v4440, 0.0
    %v4483 = vmax.f32 %v4295, 0.0
    %v4484 = vmax.f32 %v4344, 0.0
    %v4485 = vmax.f32 %v4393, 0.0
    %v4486 = vmax.f32 %v4442, 0.0
    %v4487 = vmax.f32 %v4298, 0.0
    %v4488 = vmax.f32 %v4347, 0.0
    %v4489 = vmax.f32 %v4396, 0.0
    %v4490 = vmax.f32 %v4445, 0.0
    %v4491 = vmax.f32 %v4300, 0.0
    %v4492 = vmax.f32 %v4349, 0.0
    %v4493 = vmax.f32 %v4398, 0.0
    %v4494 = vmax.f32 %v4447, 0.0
    %v4495 = vmax.f32 %v4303, 0.0
    %v4496 = vmax.f32 %v4352, 0.0
    %v4497 = vmax.f32 %v4401, 0.0
    %v4498 = vmax.f32 %v4450, 0.0
    %v4499 = vmax.f32 %v4305, 0.0
    %v4500 = vmax.f32 %v4354, 0.0
    %v4501 = vmax.f32 %v4403, 0.0
    %v4502 = vmax.f32 %v4452, 0.0
    %v4503 = vmax.f32 %v4308, 0.0
    %v4504 = vmax.f32 %v4357, 0.0
    %v4505 = vmax.f32 %v4406, 0.0
    %v4506 = vmax.f32 %v4455, 0.0
    %v4507 = vmax.f32 %v4310, 0.0
    %v4508 = vmax.f32 %v4359, 0.0
    %v4509 = vmax.f32 %v4408, 0.0
    %v4510 = vmax.f32 %v4457, 0.0
    %v4511 = vmax.f32 %v4313, 0.0
    %v4512 = vmax.f32 %v4362, 0.0
    %v4513 = vmax.f32 %v4411, 0.0
    %v4514 = vmax.f32 %v4460, 0.0
    %v4515 = vmax.f32 %v4315, 0.0
    %v4516 = vmax.f32 %v4364, 0.0
    %v4517 = vmax.f32 %v4413, 0.0
    %v4518 = vmax.f32 %v4462, 0.0
    %v4519 = vmax.f32 %v4318, 0.0
    %v4520 = vmax.f32 %v4367, 0.0
    %v4521 = vmax.f32 %v4416, 0.0
    %v4522 = vmax.f32 %v4465, 0.0
    %v4523 = vmax.f32 %v4320, 0.0
    %v4524 = vmax.f32 %v4369, 0.0
    %v4525 = vmax.f32 %v4418, 0.0
    %v4526 = vmax.f32 %v4467, 0.0
    %v4527 = vmax.f32 %v4323, 0.0
    %v4528 = vmax.f32 %v4372, 0.0
    %v4529 = vmax.f32 %v4421, 0.0
    %v4530 = vmax.f32 %v4470, 0.0
    %v4531 = vmax.f32 %v4325, 0.0
    %v4532 = vmax.f32 %v4374, 0.0
    %v4533 = vmax.f32 %v4423, 0.0
    %v4534 = vmax.f32 %v4472, 0.0
    %v4535 = vmax.f32 %v4328, 0.0
    %v4536 = vmax.f32 %v4377, 0.0
    %v4537 = vmax.f32 %v4426, 0.0
    %v4538 = vmax.f32 %v4475, 0.0
    %v4539 = vmax.f32 %v4330, 0.0
    %v4540 = vmax.f32 %v4379, 0.0
    %v4541 = vmax.f32 %v4428, 0.0
    %v4542 = vmax.f32 %v4477, 0.0
    %v4543 = vpack.c.bf16 %v4483, %v4479
    %v4544 = vpack.c.bf16 %v4484, %v4480
    %v4545 = vpack.c.bf16 %v4485, %v4481
    %v4546 = vpack.c.bf16 %v4486, %v4482
    %v4547 = vpack.c.bf16 %v4491, %v4487
    %v4548 = vpack.c.bf16 %v4492, %v4488
    %v4549 = vpack.c.bf16 %v4493, %v4489
    %v4550 = vpack.c.bf16 %v4494, %v4490
    %v4551 = vpack.c.bf16 %v4499, %v4495
    %v4552 = vpack.c.bf16 %v4500, %v4496
    %v4553 = vpack.c.bf16 %v4501, %v4497
    %v4554 = vpack.c.bf16 %v4502, %v4498
    %v4555 = vpack.c.bf16 %v4507, %v4503
    %v4556 = vpack.c.bf16 %v4508, %v4504
    %v4557 = vpack.c.bf16 %v4509, %v4505
    %v4558 = vpack.c.bf16 %v4510, %v4506
    %v4559 = vpack.c.bf16 %v4515, %v4511
    %v4560 = vpack.c.bf16 %v4516, %v4512
    %v4561 = vpack.c.bf16 %v4517, %v4513
    %v4562 = vpack.c.bf16 %v4518, %v4514
    %v4563 = vpack.c.bf16 %v4523, %v4519
    %v4564 = vpack.c.bf16 %v4524, %v4520
    %v4565 = vpack.c.bf16 %v4525, %v4521
    %v4566 = vpack.c.bf16 %v4526, %v4522
    %v4567 = vpack.c.bf16 %v4531, %v4527
    %v4568 = vpack.c.bf16 %v4532, %v4528
    %v4569 = vpack.c.bf16 %v4533, %v4529
    %v4570 = vpack.c.bf16 %v4534, %v4530
    %v4571 = vpack.c.bf16 %v4539, %v4535
    %v4572 = vpack.c.bf16 %v4540, %v4536
    %v4573 = vpack.c.bf16 %v4541, %v4537
    %v4574 = vpack.c.bf16 %v4542, %v4538
    %v4575 = vld [vmem:[#allocation13] sm:$0xf]
    %v4576 = vld [vmem:[#allocation13 + $0x4] sm:$0xf]
    %v4577 = vld [vmem:[#allocation13 + $0x8] sm:$0xf]
    %v4578 = vld [vmem:[#allocation13 + $0xc] sm:$0xf]
    %v4579 = vld [vmem:[#allocation13 + $0x10] sm:$0xf]
    %v4580 = vld [vmem:[#allocation13 + $0x14] sm:$0xf]
    %v4581 = vld [vmem:[#allocation13 + $0x18] sm:$0xf]
    %v4582 = vld [vmem:[#allocation13 + $0x1c] sm:$0xf]
    %v4583 = vld [vmem:[#allocation13 + $0x20] sm:$0xf]
    %v4584 = vld [vmem:[#allocation13 + $0x24] sm:$0xf]
    %v4585 = vld [vmem:[#allocation13 + $0x28] sm:$0xf]
    %v4586 = vld [vmem:[#allocation13 + $0x2c] sm:$0xf]
    %v4587 = vld [vmem:[#allocation13 + $0x30] sm:$0xf]
    %v4588 = vld [vmem:[#allocation13 + $0x34] sm:$0xf]
    %v4589 = vld [vmem:[#allocation13 + $0x38] sm:$0xf]
    %v4590 = vld [vmem:[#allocation13 + $0x3c] sm:$0xf]
    %v4591 = vld [vmem:[#allocation13 + $0x40] sm:$0xf]
    %v4592 = vld [vmem:[#allocation13 + $0x44] sm:$0xf]
    %v4593 = vld [vmem:[#allocation13 + $0x48] sm:$0xf]
    %v4594 = vld [vmem:[#allocation13 + $0x4c] sm:$0xf]
    %v4595 = vld [vmem:[#allocation13 + $0x50] sm:$0xf]
    %v4596 = vld [vmem:[#allocation13 + $0x54] sm:$0xf]
    %v4597 = vld [vmem:[#allocation13 + $0x58] sm:$0xf]
    %v4598 = vld [vmem:[#allocation13 + $0x5c] sm:$0xf]
    %v4599 = vld [vmem:[#allocation13 + $0x60] sm:$0xf]
    %v4600 = vld [vmem:[#allocation13 + $0x64] sm:$0xf]
    %v4601 = vld [vmem:[#allocation13 + $0x68] sm:$0xf]
    %v4602 = vld [vmem:[#allocation13 + $0x6c] sm:$0xf]
    %v4603 = vld [vmem:[#allocation13 + $0x70] sm:$0xf]
    %v4604 = vld [vmem:[#allocation13 + $0x74] sm:$0xf]
    %v4605 = vld [vmem:[#allocation13 + $0x78] sm:$0xf]
    %v4606 = vld [vmem:[#allocation13 + $0x7c] sm:$0xf]
    %v4607 = vld [vmem:[#allocation13 + $0x80] sm:$0xf]
    %v4608 = vld [vmem:[#allocation13 + $0x84] sm:$0xf]
    %v4609 = vld [vmem:[#allocation13 + $0x88] sm:$0xf]
    %v4610 = vld [vmem:[#allocation13 + $0x8c] sm:$0xf]
    %v4611 = vld [vmem:[#allocation13 + $0x90] sm:$0xf]
    %v4612 = vld [vmem:[#allocation13 + $0x94] sm:$0xf]
    %v4613 = vld [vmem:[#allocation13 + $0x98] sm:$0xf]
    %v4614 = vld [vmem:[#allocation13 + $0x9c] sm:$0xf]
    %v4615 = vld [vmem:[#allocation13 + $0xa0] sm:$0xf]
    %v4616 = vld [vmem:[#allocation13 + $0xa4] sm:$0xf]
    %v4617 = vld [vmem:[#allocation13 + $0xa8] sm:$0xf]
    %v4618 = vld [vmem:[#allocation13 + $0xac] sm:$0xf]
    %v4619 = vld [vmem:[#allocation13 + $0xb0] sm:$0xf]
    %v4620 = vld [vmem:[#allocation13 + $0xb4] sm:$0xf]
    %v4621 = vld [vmem:[#allocation13 + $0xb8] sm:$0xf]
    %v4622 = vld [vmem:[#allocation13 + $0xbc] sm:$0xf]
    %v4623 = vld [vmem:[#allocation13 + $0xc0] sm:$0xf]
    %v4624 = vld [vmem:[#allocation13 + $0xc4] sm:$0xf]
    %v4625 = vld [vmem:[#allocation13 + $0xc8] sm:$0xf]
    %v4626 = vld [vmem:[#allocation13 + $0xcc] sm:$0xf]
    %v4627 = vld [vmem:[#allocation13 + $0xd0] sm:$0xf]
    %v4628 = vld [vmem:[#allocation13 + $0xd4] sm:$0xf]
    %v4629 = vld [vmem:[#allocation13 + $0xd8] sm:$0xf]
    %v4630 = vld [vmem:[#allocation13 + $0xdc] sm:$0xf]
    %v4631 = vld [vmem:[#allocation13 + $0xe0] sm:$0xf]
    %v4632 = vld [vmem:[#allocation13 + $0xe4] sm:$0xf]
    %v4633 = vld [vmem:[#allocation13 + $0xe8] sm:$0xf]
    %v4634 = vld [vmem:[#allocation13 + $0xec] sm:$0xf]
    %v4635 = vld [vmem:[#allocation13 + $0xf0] sm:$0xf]
    %v4636 = vld [vmem:[#allocation13 + $0xf4] sm:$0xf]
    %v4637 = vld [vmem:[#allocation13 + $0xf8] sm:$0xf]
    %v4638 = vld [vmem:[#allocation13 + $0xfc] sm:$0xf]
    %v4639 = vld [vmem:[%s11] sm:$0x1]
    %v4641 = vperm.slane %v4639, 0
    %v4707 = vunpack.c.l.b16 %v4575
    %v4708 = vunpack.c.l.b16 %v4576
    %v4709 = vunpack.c.l.b16 %v4577
    %v4710 = vunpack.c.l.b16 %v4578
    %v4711 = vunpack.c.l.b16 %v4579
    %v4712 = vunpack.c.l.b16 %v4580
    %v4713 = vunpack.c.l.b16 %v4581
    %v4714 = vunpack.c.l.b16 %v4582
    %v4715 = vunpack.c.l.b16 %v4583
    %v4716 = vunpack.c.l.b16 %v4584
    %v4717 = vunpack.c.l.b16 %v4585
    %v4718 = vunpack.c.l.b16 %v4586
    %v4719 = vunpack.c.l.b16 %v4587
    %v4720 = vunpack.c.l.b16 %v4588
    %v4721 = vunpack.c.l.b16 %v4589
    %v4722 = vunpack.c.l.b16 %v4590
    %v4723 = vunpack.c.l.b16 %v4591
    %v4724 = vunpack.c.l.b16 %v4592
    %v4725 = vunpack.c.l.b16 %v4593
    %v4726 = vunpack.c.l.b16 %v4594
    %v4727 = vunpack.c.l.b16 %v4595
    %v4728 = vunpack.c.l.b16 %v4596
    %v4729 = vunpack.c.l.b16 %v4597
    %v4730 = vunpack.c.l.b16 %v4598
    %v4731 = vunpack.c.l.b16 %v4599
    %v4732 = vunpack.c.l.b16 %v4600
    %v4733 = vunpack.c.l.b16 %v4601
    %v4734 = vunpack.c.l.b16 %v4602
    %v4735 = vunpack.c.l.b16 %v4603
    %v4736 = vunpack.c.l.b16 %v4604
    %v4737 = vunpack.c.l.b16 %v4605
    %v4738 = vunpack.c.l.b16 %v4606
    %v4739 = vunpack.c.l.b16 %v4607
    %v4740 = vunpack.c.l.b16 %v4608
    %v4741 = vunpack.c.l.b16 %v4609
    %v4742 = vunpack.c.l.b16 %v4610
    %v4743 = vunpack.c.l.b16 %v4611
    %v4744 = vunpack.c.l.b16 %v4612
    %v4745 = vunpack.c.l.b16 %v4613
    %v4746 = vunpack.c.l.b16 %v4614
    %v4747 = vunpack.c.l.b16 %v4615
    %v4748 = vunpack.c.l.b16 %v4616
    %v4749 = vunpack.c.l.b16 %v4617
    %v4750 = vunpack.c.l.b16 %v4618
    %v4751 = vunpack.c.l.b16 %v4619
    %v4752 = vunpack.c.l.b16 %v4620
    %v4753 = vunpack.c.l.b16 %v4621
    %v4754 = vunpack.c.l.b16 %v4622
    %v4755 = vunpack.c.l.b16 %v4623
    %v4756 = vunpack.c.l.b16 %v4624
    %v4757 = vunpack.c.l.b16 %v4625
    %v4758 = vunpack.c.l.b16 %v4626
    %v4759 = vunpack.c.l.b16 %v4627
    %v4760 = vunpack.c.l.b16 %v4628
    %v4761 = vunpack.c.l.b16 %v4629
    %v4762 = vunpack.c.l.b16 %v4630
    %v4763 = vunpack.c.l.b16 %v4631
    %v4764 = vunpack.c.l.b16 %v4632
    %v4765 = vunpack.c.l.b16 %v4633
    %v4766 = vunpack.c.l.b16 %v4634
    %v4767 = vunpack.c.l.b16 %v4635
    %v4768 = vunpack.c.l.b16 %v4636
    %v4769 = vunpack.c.l.b16 %v4637
    %v4770 = vunpack.c.l.b16 %v4638
    %v4771 = vpack.c.b16 %v4708, %v4707
    %v4772 = vpack.c.b16 %v4710, %v4709
    %v4773 = vpack.c.b16 %v4712, %v4711
    %v4774 = vpack.c.b16 %v4714, %v4713
    %v4775 = vpack.c.b16 %v4716, %v4715
    %v4776 = vpack.c.b16 %v4718, %v4717
    %v4777 = vpack.c.b16 %v4720, %v4719
    %v4778 = vpack.c.b16 %v4722, %v4721
    %v4779 = vpack.c.b16 %v4724, %v4723
    %v4780 = vpack.c.b16 %v4726, %v4725
    %v4781 = vpack.c.b16 %v4728, %v4727
    %v4782 = vpack.c.b16 %v4730, %v4729
    %v4783 = vpack.c.b16 %v4732, %v4731
    %v4784 = vpack.c.b16 %v4734, %v4733
    %v4785 = vpack.c.b16 %v4736, %v4735
    %v4786 = vpack.c.b16 %v4738, %v4737
    %v4787 = vpack.c.b16 %v4740, %v4739
    %v4788 = vpack.c.b16 %v4742, %v4741
    %v4789 = vpack.c.b16 %v4744, %v4743
    %v4790 = vpack.c.b16 %v4746, %v4745
    %v4791 = vpack.c.b16 %v4748, %v4747
    %v4792 = vpack.c.b16 %v4750, %v4749
    %v4793 = vpack.c.b16 %v4752, %v4751
    %v4794 = vpack.c.b16 %v4754, %v4753
    %v4795 = vpack.c.b16 %v4756, %v4755
    %v4796 = vpack.c.b16 %v4758, %v4757
    %v4797 = vpack.c.b16 %v4760, %v4759
    %v4798 = vpack.c.b16 %v4762, %v4761
    %v4799 = vpack.c.b16 %v4764, %v4763
    %v4800 = vpack.c.b16 %v4766, %v4765
    %v4801 = vpack.c.b16 %v4768, %v4767
    %v4802 = vpack.c.b16 %v4770, %v4769
    %4835 = vmatpush.bf16.msra.mxu0 %v4778
    %4836 = vmatpush.bf16.msra.mxu0 %v4777
    %4837 = vmatpush.bf16.msra.mxu0 %v4776
    %4838 = vmatpush.bf16.msra.mxu0 %v4775
    %4839 = vmatpush.bf16.msra.mxu0 %v4774
    %4840 = vmatpush.bf16.msra.mxu0 %v4773
    %4841 = vmatpush.bf16.msra.mxu0 %v4772
    %4842 = vmatpush.bf16.msra.mxu0 %v4771
    %4843 = vmatmul.bf16.gmra.mxu0 %v4543
    %v4844 = vpop.f32.mrf.mxu0
    %v4845 = vadd.f32 %v4641, %v4844
    %v4846 = vpop.f32.mrf.mxu0
    %v4847 = vadd.f32 %v4641, %v4846
    %4848 = vmatmul.bf16.gmra.mxu0 %v4547
    %v4849 = vpop.f32.mrf.mxu0
    %v4850 = vadd.f32 %v4641, %v4849
    %v4851 = vpop.f32.mrf.mxu0
    %v4852 = vadd.f32 %v4641, %v4851
    %4853 = vmatmul.bf16.gmra.mxu0 %v4551
    %v4854 = vpop.f32.mrf.mxu0
    %v4855 = vadd.f32 %v4641, %v4854
    %v4856 = vpop.f32.mrf.mxu0
    %v4857 = vadd.f32 %v4641, %v4856
    %4858 = vmatmul.bf16.gmra.mxu0 %v4555
    %v4859 = vpop.f32.mrf.mxu0
    %v4860 = vadd.f32 %v4641, %v4859
    %v4861 = vpop.f32.mrf.mxu0
    %v4862 = vadd.f32 %v4641, %v4861
    %4863 = vmatmul.bf16.gmra.mxu0 %v4559
    %v4864 = vpop.f32.mrf.mxu0
    %v4865 = vadd.f32 %v4641, %v4864
    %v4866 = vpop.f32.mrf.mxu0
    %v4867 = vadd.f32 %v4641, %v4866
    %4868 = vmatmul.bf16.gmra.mxu0 %v4563
    %v4869 = vpop.f32.mrf.mxu0
    %v4870 = vadd.f32 %v4641, %v4869
    %v4871 = vpop.f32.mrf.mxu0
    %v4872 = vadd.f32 %v4641, %v4871
    %4873 = vmatmul.bf16.gmra.mxu0 %v4567
    %v4874 = vpop.f32.mrf.mxu0
    %v4875 = vadd.f32 %v4641, %v4874
    %v4876 = vpop.f32.mrf.mxu0
    %v4877 = vadd.f32 %v4641, %v4876
    %4878 = vmatmul.bf16.gmra.mxu0 %v4571
    %v4879 = vpop.f32.mrf.mxu0
    %v4880 = vadd.f32 %v4641, %v4879
    %v4881 = vpop.f32.mrf.mxu0
    %v4882 = vadd.f32 %v4641, %v4881
    %4883 = vdwg.mxu0
    %4884 = vmatpush.bf16.msra.mxu0 %v4786
    %4885 = vmatpush.bf16.msra.mxu0 %v4785
    %4886 = vmatpush.bf16.msra.mxu0 %v4784
    %4887 = vmatpush.bf16.msra.mxu0 %v4783
    %4888 = vmatpush.bf16.msra.mxu0 %v4782
    %4889 = vmatpush.bf16.msra.mxu0 %v4781
    %4890 = vmatpush.bf16.msra.mxu0 %v4780
    %4891 = vmatpush.bf16.msra.mxu0 %v4779
    %4892 = vmatmul.bf16.gmra.mxu0 %v4544
    %v4893 = vpop.f32.mrf.mxu0
    %v4894 = vadd.f32 %v4845, %v4893
    %v4895 = vpop.f32.mrf.mxu0
    %v4896 = vadd.f32 %v4847, %v4895
    %4897 = vmatmul.bf16.gmra.mxu0 %v4548
    %v4898 = vpop.f32.mrf.mxu0
    %v4899 = vadd.f32 %v4850, %v4898
    %v4900 = vpop.f32.mrf.mxu0
    %v4901 = vadd.f32 %v4852, %v4900
    %4902 = vmatmul.bf16.gmra.mxu0 %v4552
    %v4903 = vpop.f32.mrf.mxu0
    %v4904 = vadd.f32 %v4855, %v4903
    %v4905 = vpop.f32.mrf.mxu0
    %v4906 = vadd.f32 %v4857, %v4905
    %4907 = vmatmul.bf16.gmra.mxu0 %v4556
    %v4908 = vpop.f32.mrf.mxu0
    %v4909 = vadd.f32 %v4860, %v4908
    %v4910 = vpop.f32.mrf.mxu0
    %v4911 = vadd.f32 %v4862, %v4910
    %4912 = vmatmul.bf16.gmra.mxu0 %v4560
    %v4913 = vpop.f32.mrf.mxu0
    %v4914 = vadd.f32 %v4865, %v4913
    %v4915 = vpop.f32.mrf.mxu0
    %v4916 = vadd.f32 %v4867, %v4915
    %4917 = vmatmul.bf16.gmra.mxu0 %v4564
    %v4918 = vpop.f32.mrf.mxu0
    %v4919 = vadd.f32 %v4870, %v4918
    %v4920 = vpop.f32.mrf.mxu0
    %v4921 = vadd.f32 %v4872, %v4920
    %4922 = vmatmul.bf16.gmra.mxu0 %v4568
    %v4923 = vpop.f32.mrf.mxu0
    %v4924 = vadd.f32 %v4875, %v4923
    %v4925 = vpop.f32.mrf.mxu0
    %v4926 = vadd.f32 %v4877, %v4925
    %4927 = vmatmul.bf16.gmra.mxu0 %v4572
    %v4928 = vpop.f32.mrf.mxu0
    %v4929 = vadd.f32 %v4880, %v4928
    %v4930 = vpop.f32.mrf.mxu0
    %v4931 = vadd.f32 %v4882, %v4930
    %4932 = vdwg.mxu0
    %4933 = vmatpush.bf16.msra.mxu0 %v4794
    %4934 = vmatpush.bf16.msra.mxu0 %v4793
    %4935 = vmatpush.bf16.msra.mxu0 %v4792
    %4936 = vmatpush.bf16.msra.mxu0 %v4791
    %4937 = vmatpush.bf16.msra.mxu0 %v4790
    %4938 = vmatpush.bf16.msra.mxu0 %v4789
    %4939 = vmatpush.bf16.msra.mxu0 %v4788
    %4940 = vmatpush.bf16.msra.mxu0 %v4787
    %4941 = vmatmul.bf16.gmra.mxu0 %v4545
    %v4942 = vpop.f32.mrf.mxu0
    %v4943 = vadd.f32 %v4894, %v4942
    %v4944 = vpop.f32.mrf.mxu0
    %v4945 = vadd.f32 %v4896, %v4944
    %4946 = vmatmul.bf16.gmra.mxu0 %v4549
    %v4947 = vpop.f32.mrf.mxu0
    %v4948 = vadd.f32 %v4899, %v4947
    %v4949 = vpop.f32.mrf.mxu0
    %v4950 = vadd.f32 %v4901, %v4949
    %4951 = vmatmul.bf16.gmra.mxu0 %v4553
    %v4952 = vpop.f32.mrf.mxu0
    %v4953 = vadd.f32 %v4904, %v4952
    %v4954 = vpop.f32.mrf.mxu0
    %v4955 = vadd.f32 %v4906, %v4954
    %4956 = vmatmul.bf16.gmra.mxu0 %v4557
    %v4957 = vpop.f32.mrf.mxu0
    %v4958 = vadd.f32 %v4909, %v4957
    %v4959 = vpop.f32.mrf.mxu0
    %v4960 = vadd.f32 %v4911, %v4959
    %4961 = vmatmul.bf16.gmra.mxu0 %v4561
    %v4962 = vpop.f32.mrf.mxu0
    %v4963 = vadd.f32 %v4914, %v4962
    %v4964 = vpop.f32.mrf.mxu0
    %v4965 = vadd.f32 %v4916, %v4964
    %4966 = vmatmul.bf16.gmra.mxu0 %v4565
    %v4967 = vpop.f32.mrf.mxu0
    %v4968 = vadd.f32 %v4919, %v4967
    %v4969 = vpop.f32.mrf.mxu0
    %v4970 = vadd.f32 %v4921, %v4969
    %4971 = vmatmul.bf16.gmra.mxu0 %v4569
    %v4972 = vpop.f32.mrf.mxu0
    %v4973 = vadd.f32 %v4924, %v4972
    %v4974 = vpop.f32.mrf.mxu0
    %v4975 = vadd.f32 %v4926, %v4974
    %4976 = vmatmul.bf16.gmra.mxu0 %v4573
    %v4977 = vpop.f32.mrf.mxu0
    %v4978 = vadd.f32 %v4929, %v4977
    %v4979 = vpop.f32.mrf.mxu0
    %v4980 = vadd.f32 %v4931, %v4979
    %4981 = vdwg.mxu0
    %4982 = vmatpush.bf16.msra.mxu0 %v4802
    %4983 = vmatpush.bf16.msra.mxu0 %v4801
    %4984 = vmatpush.bf16.msra.mxu0 %v4800
    %4985 = vmatpush.bf16.msra.mxu0 %v4799
    %4986 = vmatpush.bf16.msra.mxu0 %v4798
    %4987 = vmatpush.bf16.msra.mxu0 %v4797
    %4988 = vmatpush.bf16.msra.mxu0 %v4796
    %4989 = vmatpush.bf16.msra.mxu0 %v4795
    %4990 = vmatmul.bf16.gmra.mxu0 %v4546
    %v4991 = vpop.f32.mrf.mxu0
    %v4992 = vadd.f32 %v4943, %v4991
    %v4993 = vpop.f32.mrf.mxu0
    %v4994 = vadd.f32 %v4945, %v4993
    %4995 = vmatmul.bf16.gmra.mxu0 %v4550
    %v4996 = vpop.f32.mrf.mxu0
    %v4997 = vadd.f32 %v4948, %v4996
    %v4998 = vpop.f32.mrf.mxu0
    %v4999 = vadd.f32 %v4950, %v4998
    %5000 = vmatmul.bf16.gmra.mxu0 %v4554
    %v5001 = vpop.f32.mrf.mxu0
    %v5002 = vadd.f32 %v4953, %v5001
    %v5003 = vpop.f32.mrf.mxu0
    %v5004 = vadd.f32 %v4955, %v5003
    %5005 = vmatmul.bf16.gmra.mxu0 %v4558
    %v5006 = vpop.f32.mrf.mxu0
    %v5007 = vadd.f32 %v4958, %v5006
    %v5008 = vpop.f32.mrf.mxu0
    %v5009 = vadd.f32 %v4960, %v5008
    %5010 = vmatmul.bf16.gmra.mxu0 %v4562
    %v5011 = vpop.f32.mrf.mxu0
    %v5012 = vadd.f32 %v4963, %v5011
    %v5013 = vpop.f32.mrf.mxu0
    %v5014 = vadd.f32 %v4965, %v5013
    %5015 = vmatmul.bf16.gmra.mxu0 %v4566
    %v5016 = vpop.f32.mrf.mxu0
    %v5017 = vadd.f32 %v4968, %v5016
    %v5018 = vpop.f32.mrf.mxu0
    %v5019 = vadd.f32 %v4970, %v5018
    %5020 = vmatmul.bf16.gmra.mxu0 %v4570
    %v5021 = vpop.f32.mrf.mxu0
    %v5022 = vadd.f32 %v4973, %v5021
    %v5023 = vpop.f32.mrf.mxu0
    %v5024 = vadd.f32 %v4975, %v5023
    %5025 = vmatmul.bf16.gmra.mxu0 %v4574
    %v5026 = vpop.f32.mrf.mxu0
    %v5027 = vadd.f32 %v4978, %v5026
    %v5028 = vpop.f32.mrf.mxu0
    %v5029 = vadd.f32 %v4980, %v5028
    %5030 = vdwg.mxu0
    %v5031 = vadd.f32 %v3697, %v4992
    %v5032 = vadd.f32 %v3698, %v4994
    %v5033 = vadd.f32 %v3699, %v4997
    %v5034 = vadd.f32 %v3700, %v4999
    %v5035 = vadd.f32 %v3701, %v5002
    %v5036 = vadd.f32 %v3702, %v5004
    %v5037 = vadd.f32 %v3703, %v5007
    %v5038 = vadd.f32 %v3704, %v5009
    %v5039 = vadd.f32 %v3705, %v5012
    %v5040 = vadd.f32 %v3706, %v5014
    %v5041 = vadd.f32 %v3707, %v5017
    %v5042 = vadd.f32 %v3708, %v5019
    %v5043 = vadd.f32 %v3709, %v5022
    %v5044 = vadd.f32 %v3710, %v5024
    %v5045 = vadd.f32 %v3711, %v5027
    %v5046 = vadd.f32 %v3712, %v5029
    %5047 = vst [vmem:[#allocation14] sm:$0xff] %v5031
    %5048 = vst [vmem:[#allocation14 + $0x8] sm:$0xff] %v5032
    %5049 = vst [vmem:[#allocation14 + $0x10] sm:$0xff] %v5033
    %5050 = vst [vmem:[#allocation14 + $0x18] sm:$0xff] %v5034
    %5051 = vst [vmem:[#allocation14 + $0x20] sm:$0xff] %v5035
    %5052 = vst [vmem:[#allocation14 + $0x28] sm:$0xff] %v5036
    %5053 = vst [vmem:[#allocation14 + $0x30] sm:$0xff] %v5037
    %5054 = vst [vmem:[#allocation14 + $0x38] sm:$0xff] %v5038
    %5055 = vst [vmem:[#allocation14 + $0x40] sm:$0xff] %v5039
    %5056 = vst [vmem:[#allocation14 + $0x48] sm:$0xff] %v5040
    %5057 = vst [vmem:[#allocation14 + $0x50] sm:$0xff] %v5041
    %5058 = vst [vmem:[#allocation14 + $0x58] sm:$0xff] %v5042
    %5059 = vst [vmem:[#allocation14 + $0x60] sm:$0xff] %v5043
    %5060 = vst [vmem:[#allocation14 + $0x68] sm:$0xff] %v5044
    %5061 = vst [vmem:[#allocation14 + $0x70] sm:$0xff] %v5045
    %5062 = vst [vmem:[#allocation14 + $0x78] sm:$0xff] %v5046
    // Predicated region
    $region78: #{tpu_custom_call.1} parent=1 // pred_check
      _
    $region79: #{tpu_custom_call.1} parent=1 // pred_check_branch
      %5064 = sbr.rel (0) target = $region81
    $region80: #{tpu_custom_call.1} parent=1 // pred_region
      %5066 = vsyncadd [#allocation4], 0
      %s5067 = sshll.u32 [#allocation14], 4
      %s5068 = int_to_ptr.vmem [resolvable:$true] %s5067
      %s5069 = sshll.u32 %s12, 4
      %s5070 = int_to_ptr.hbm [resolvable:$true] %s5069
      %5075 = dma.vmem_to_hbm [thread:$0]  %s5068, 2048, %s5070, [#allocation4], 128, 128, 8
    $region81: #{tpu_custom_call.1} parent=1 // pred_fallthru
      _
    // Predicated region
    $region82: #{tpu_custom_call.1} parent=1 // pred_check
      _
    $region83: #{tpu_custom_call.1} parent=1 // pred_check_branch
      %5077 = sbr.rel (0) target = $region85
    $region84: #{tpu_custom_call.1} parent=1 // pred_region
      %5079 = dma.done [#allocation4], 2048
    $region85: #{tpu_custom_call.1} parent=1 // pred_fallthru
      _
    %5080 = vsyncpa [#allocation3], 1
    %5081 = vsyncpa [#allocation6], 1
    %5082 = vsyncpa [#allocation9], 1
    %5083 = vsyncpa [#allocation12], 1
    %5084 = vsyncpa [#allocation4], 1

</llo_original>
